<compile_context>
chip_gen: v5e
topology: v5e:2x2
jax: 0.10.0
libtpu: 0.0.40
codegen_flags: <defaults>
</compile_context>

<pallas_src>
import functools

import jax
import jax.numpy as jnp
from jax.experimental import pallas as pl
from jax.experimental.pallas import tpu as pltpu


# ---------------------------------------------------------------------------
# Pallas kernel: one grid step == one block of Bblk samples.
# ---------------------------------------------------------------------------
def hybgnn_kernel(x_ref, Lbig_ref, enc_w_ref, enc_b_ref, wslab_ref, pool_w_ref,
                  wfc_ref, aff_ref, out_ref, r_ref, a_ref, *, chan):
    f32 = jnp.float32
    Bblk, CP, T = x_ref.shape
    Fin = enc_w_ref.shape[1]            # GNN_in
    F = pool_w_ref.shape[0]             # GNN_out
    Nn = pool_w_ref.shape[1]            # N_next
    nc = out_ref.shape[2]               # num_classes
    cdt = wslab_ref.dtype               # matmul operand dtype (f32 or bf16)

    # Fused-slab column offsets: [Wf1 | Wf2 | Wi1 | Wf0 | M | Wi0].
    # Hop block starts at lane 0, attention block M at lane 4*F (=128 when
    # F=32) -> the two matmul-operand slices are 128-lane aligned.
    HOP, WI1, WF0, M0, WI0 = 0, 2 * F, 3 * F, 4 * F, 4 * F + Fin

    # --- EEGEncoder (flattened rows: Bblk*CP x T) ---------------------------
    # TODO(synk): exact EEGEncoder architecture not provided; modeled as
    # Conv1d(1, GNN_in, kernel_size=T) (== per-channel linear over time) + ELU.
    x2 = x_ref[...].reshape(Bblk * CP, T)
    feat2 = jnp.dot(x2, enc_w_ref[...], preferred_element_type=f32) + enc_b_ref[...]
    feat2 = jnp.where(feat2 > 0, feat2, jnp.exp(jnp.minimum(feat2, 0.0)) - 1.0)  # ELU

    # --- One fused feat-projection matmul (all weight consumers of feat) ----
    proj2 = jnp.dot(feat2.astype(cdt), wslab_ref[...], preferred_element_type=f32)

    # --- FGNN: K=3 polynomial conv, shared Laplacian, ONE wide 2-D matmul ---
    # TODO(synk): GCNN source not provided; modeled as K-hop polynomial conv.
    # L_big = I_Bblk (x) L, so L_big @ rows applies L per-sample in one dot.
    LP = jnp.dot(Lbig_ref[...], proj2[:, HOP:HOP + 2 * F].astype(cdt),
                 preferred_element_type=f32)                      # [L@P1 | L@P2]
    LLP2 = jnp.dot(Lbig_ref[...], LP[:, F:2 * F].astype(cdt),
                   preferred_element_type=f32)                    # L@L@P2
    x_fix = jnp.maximum(proj2[:, WF0:WF0 + F] + LP[:, 0:F] + LLP2, 0.0)
    x_fix = x_fix.reshape(Bblk, CP, F)

    feat3 = feat2.reshape(Bblk, CP, Fin)
    q3 = proj2[:, M0:M0 + Fin].reshape(Bblk, CP, Fin)             # feat @ (Wq Wk^T)/tem

    # --- AdjGenerator (head=1): scaled dot-product attention adjacency ------
    # TODO(synk): AdjGenerator source not provided; modeled as attention with
    # temperature Adj_Tem; Wq@Wk.T (and the scale) folded into the slab.
    scores = jnp.einsum('bif,bjf->bij', q3, feat3, preferred_element_type=f32)
    col_ok = jax.lax.broadcasted_iota(jnp.int32, (1, 1, CP), 2) < chan
    scores = jnp.where(col_ok, scores, -1e30)                     # mask padded cols
    scores = scores - jnp.max(scores, axis=-1, keepdims=True)
    e = jnp.exp(scores)
    A = e / jnp.sum(e, axis=-1, keepdims=True)                    # exact softmax
    a_ref[...] = A

    # --- IAGNN: instance-adaptive K=2 graph conv ----------------------------
    p_wi1 = proj2[:, WI1:WI1 + F].reshape(Bblk, CP, F)
    p_wi0 = proj2[:, WI0:WI0 + F].reshape(Bblk, CP, F)
    AP = jnp.einsum('bij,bjf->bif', A, p_wi1, preferred_element_type=f32)
    x_inst = jnp.maximum(p_wi0 + AP, 0.0)

    # --- Pool_Generator: soft assignment R, pool + unpool -------------------
    # TODO(synk): Pool_Generator source not provided; modeled DiffPool-style:
    # R = softmax((A x) W), x' = R (R^T x)  (channel dim kept).
    row_ok = (jax.lax.broadcasted_iota(jnp.int32, (1, CP, 1), 1) < chan).astype(f32)
    xi = x_inst * row_ok                                          # zero padded rows
    pw = jnp.broadcast_to(pool_w_ref[...].astype(f32), (Bblk, F, Nn))
    s = jnp.einsum('bif,bfn->bin', xi, pw, preferred_element_type=f32)
    pr = jnp.einsum('bij,bjn->bin', A, s, preferred_element_type=f32)
    pr = pr - jnp.max(pr, axis=-1, keepdims=True)
    pe = jnp.exp(pr)
    R = pe / jnp.sum(pe, axis=-1, keepdims=True)
    r_ref[...] = R
    # Reassociated un-pool x' = R (R^T x): unrolled over N_next (tiny, static),
    # no CPxCP intermediate and no extra lane-24 batched matmuls.
    x_unpool = None
    for n in range(Nn):
        r_n = R[:, :, n:n + 1]                                    # (Bblk, CP, 1)
        t_n = jnp.sum(r_n * xi, axis=1, keepdims=True)            # (Bblk, 1, F)
        term = r_n * t_n
        x_unpool = term if x_unpool is None else x_unpool + term

    # --- fc over concat([x_instance, x_fix], -1) + eval-mode BatchNorm ------
    # TODO(synk): BatchNorm1d implemented in eval mode (running stats); fc bias
    # is folded into the BN shift in the wrapper.
    parts = []
    for o in range(nc):                                           # nc small & static
        p = (x_unpool * wfc_ref[o, :, 0:F] +
             x_fix * wfc_ref[o, :, F:2 * F])                      # (Bblk, CP, F)
        parts.append(jnp.sum(jnp.sum(p, axis=2, keepdims=True),
                             axis=1, keepdims=True))              # (Bblk, 1, 1)
    logits = jnp.concatenate(parts, axis=-1)                      # (Bblk, 1, nc)
    out_ref[...] = logits * aff_ref[0:1, :] + aff_ref[1:2, :]


# ---------------------------------------------------------------------------
# Plain-JAX glue
# ---------------------------------------------------------------------------
def normalize_A(A, eps=1e-10):
    # TODO(synk): normalize_A source not provided; DGCNN-style normalized Laplacian.
    n = A.shape[0]
    A = jax.nn.relu(A)
    A = A * (1.0 - jnp.eye(n, dtype=A.dtype))
    A = A + A.T
    d = jnp.sum(A, axis=1)
    d_is = 1.0 / jnp.sqrt(d + eps)
    return jnp.eye(n, dtype=A.dtype) - (d_is[:, None] * A) * d_is[None, :]


def hybgnn_forward(x, params, *, GNN_in=32, GNN_out=32, head=1, N_next=4,
                   adj_tem=1.0, adj_dim=64, num_classes=2, block_bs=None,
                   use_bf16=False):
    assert head == 1, "HybGNN_IA concat/fc shapes are only consistent for head=1"
    bs, chan, T = x.shape
    f32 = jnp.float32
    cdt = jnp.bfloat16 if use_bf16 else f32

    CP = ((chan + 7) // 8) * 8                 # channel dim padded to sublane multiple

    # Batch block: ~bs/2 (>= 2 grid steps so v7x's two TensorCores both get
    # work via the "parallel" axis), multiple of 8, capped so I_B (x) L and the
    # per-block activations stay a few MiB of VMEM.  Override with block_bs.
    if block_bs is None:
        Bblk = ((max(1, (bs + 1) // 2) + 7) // 8) * 8
        Bblk = max(8, min(32, Bblk))
    else:
        Bblk = max(8, ((int(block_bs) + 7) // 8) * 8)
    bs_pad = ((bs + Bblk - 1) // Bblk) * Bblk
    nb = bs_pad // Bblk
    BC = Bblk * CP

    x_pad = jnp.pad(x.astype(f32),
                    ((0, bs_pad - bs), (0, CP - chan), (0, 0))).astype(cdt)

    L = normalize_A(params["A_FGNN"].astype(f32))
    L_pad = jnp.pad(L, ((0, CP - chan), (0, CP - chan)))
    # Block-diagonal I_Bblk (x) L: lets the kernel apply the shared Laplacian to
    # every sample of the block with ONE wide 2-D matmul (no batched matmuls,
    # no broadcast of L, no 3-D transposes).  Constant across the grid -> the
    # pipeline fetches it once.
    L_big = jnp.kron(jnp.eye(Bblk, dtype=f32), L_pad).astype(cdt)

    # Fold Wq Wk^T (and the temperature scale) + stack all feat-projections
    # into one lane-dense slab, ordered [Wf1 | Wf2 | Wi1 | Wf0 | M | Wi0] so
    # the hop block (lane 0) and attention block M (lane 4*GNN_out) are aligned.
    scale = 1.0 / (float(adj_tem) * (float(adj_dim) ** 0.5))
    M = (params["adj_wq"].astype(f32) @ params["adj_wk"].astype(f32).T) * scale
    fw = params["fgnn_w"].astype(f32)[0]          # (3, GNN_in, GNN_out)
    iw = params["iagnn_w"].astype(f32)[0]         # (2, GNN_in, GNN_out)
    wslab = jnp.concatenate([fw[1], fw[2], iw[1], fw[0], M, iw[0]],
                            axis=-1).astype(cdt)

    # fc weight -> (nc, chan, [instance | fix]) blocks, zero-padded along chan.
    fc_w3 = params["fc_w"].astype(f32).reshape(num_classes, chan, (head + 1) * GNN_out)
    wfc = jnp.pad(fc_w3, ((0, 0), (0, CP - chan), (0, 0))).astype(cdt)

    # Eval-mode BatchNorm folded to scale/shift, fc bias folded into the shift.
    bn_s = params["bn_gamma"].astype(f32) / jnp.sqrt(params["bn_var"].astype(f32) + 1e-5)
    bn_b = (params["bn_beta"].astype(f32) - params["bn_mean"].astype(f32) * bn_s
            + params["fc_b"].astype(f32) * bn_s)
    aff = jnp.concatenate([bn_s.reshape(1, num_classes),
                           bn_b.reshape(1, num_classes)], axis=0)

    kernel = functools.partial(hybgnn_kernel, chan=int(chan))
    slab_w = 5 * GNN_out + GNN_in

    in_specs = [
        pl.BlockSpec((Bblk, CP, T), lambda b: (b, 0, 0)),                  # x
        pl.BlockSpec((BC, BC), lambda b: (0, 0)),                          # I_B (x) L
        pl.BlockSpec((T, GNN_in), lambda b: (0, 0)),                       # enc_w
        pl.BlockSpec((1, GNN_in), lambda b: (0, 0)),                       # enc_b
        pl.BlockSpec((GNN_in, slab_w), lambda b: (0, 0)),                  # fused slab
        pl.BlockSpec((GNN_out, N_next), lambda b: (0, 0)),                 # pool_w
        pl.BlockSpec((num_classes, CP, 2 * GNN_out), lambda b: (0, 0, 0)), # fc weights
        pl.BlockSpec((2, num_classes), lambda b: (0, 0)),                  # BN affine
    ]
    out_specs = [
        pl.BlockSpec((Bblk, 1, num_classes), lambda b: (b, 0, 0)),         # logits
        pl.BlockSpec((Bblk, CP, N_next), lambda b: (b, 0, 0)),             # R
        pl.BlockSpec((Bblk, CP, CP), lambda b: (b, 0, 0)),                 # A_IAGNN
    ]
    out_shapes = (
        jax.ShapeDtypeStruct((bs_pad, 1, num_classes), f32),
        jax.ShapeDtypeStruct((bs_pad, CP, N_next), f32),
        jax.ShapeDtypeStruct((bs_pad, CP, CP), f32),
    )

    out_p, R_p, A_p = pl.pallas_call(
        kernel,
        out_shape=out_shapes,
        grid_spec=pltpu.PrefetchScalarGridSpec(
            num_scalar_prefetch=0,
            grid=(nb,),
            in_specs=in_specs,
            out_specs=out_specs,
        ),
        compiler_params=pltpu.CompilerParams(
            dimension_semantics=("parallel",)),
    )(x_pad, L_big,
      params["enc_w"].astype(cdt), params["enc_b"].astype(f32),
      wslab, params["pool_w"].astype(cdt), wfc, aff)

    out = out_p[:bs, 0, :]
    R = R_p[:bs, :chan, :]
    A = A_p[:bs, :chan, :chan][:, None, :, :]
    return out, R, A


# ---------------------------------------------------------------------------
# Deterministic parameter init + smoke test
# ---------------------------------------------------------------------------
if __name__ == "__main__":
    bs, chan, T = 16, 19, 64          # input_sample = 64, chan_num = 19
    GNN_in = GNN_out = 32
    head, N_next, adj_dim, num_classes = 1, 4, 64, 2
    adj_tem = 1.0

    key = jax.random.PRNGKey(0)
    ks = jax.random.split(key, 10)

    x = jax.random.normal(ks[0], (bs, chan, T), dtype=jnp.float32)

    def u(k, shape, lo=-0.1, hi=0.1):
        return jax.random.uniform(k, shape, jnp.float32, lo, hi)

    params = {
        "A_FGNN": jax.random.uniform(ks[1], (chan, chan), jnp.float32, 0.01, 0.5),
        "enc_w": u(ks[2], (T, GNN_in)),
        "enc_b": jnp.zeros((1, GNN_in), jnp.float32),
        "fgnn_w": u(ks[3], (1, 3, GNN_in, GNN_out)),
        "iagnn_w": u(ks[4], (head, 2, GNN_in, GNN_out)),
        "adj_wq": u(ks[5], (GNN_in, head * adj_dim)),
        "adj_wk": u(ks[6], (GNN_in, head * adj_dim)),
        "pool_w": u(ks[7], (GNN_out, N_next)),
        "fc_w": u(ks[8], (num_classes, chan * GNN_out * (head + 1)), -0.05, 0.05),
        "fc_b": jnp.zeros((1, num_classes), jnp.float32),
        "bn_gamma": jnp.ones((1, num_classes), jnp.float32),
        "bn_beta": jnp.zeros((1, num_classes), jnp.float32),
        "bn_mean": jnp.zeros((1, num_classes), jnp.float32),
        "bn_var": jnp.ones((1, num_classes), jnp.float32),
    }

    out, R, A = hybgnn_forward(
        x, params, GNN_in=GNN_in, GNN_out=GNN_out, head=head, N_next=N_next,
        adj_tem=adj_tem, adj_dim=adj_dim, num_classes=num_classes)
    jax.block_until_ready((out, R, A))

    assert out.shape == (bs, num_classes)
    assert R.shape == (bs, chan, N_next)
    assert A.shape == (bs, head, chan, chan)
    assert bool(jnp.isfinite(out).all())
    print("KERNEL_OK")
</pallas_src>

<mosaic_0001>
module attributes {stable_mosaic.version = 11 : i64} {
  func.func @hybgnn_kernel(%arg0: i32, %arg1: memref<8x24x64xf32, #tpu.memory_space<vmem>>, %arg2: memref<192x192xf32, #tpu.memory_space<vmem>>, %arg3: memref<64x32xf32, #tpu.memory_space<vmem>>, %arg4: memref<1x32xf32, #tpu.memory_space<vmem>>, %arg5: memref<32x192xf32, #tpu.memory_space<vmem>>, %arg6: memref<32x4xf32, #tpu.memory_space<vmem>>, %arg7: memref<2x24x64xf32, #tpu.memory_space<vmem>>, %arg8: memref<2x2xf32, #tpu.memory_space<vmem>>, %arg9: memref<8x1x2xf32, #tpu.memory_space<vmem>>, %arg10: memref<8x24x4xf32, #tpu.memory_space<vmem>>, %arg11: memref<8x24x24xf32, #tpu.memory_space<vmem>>) attributes {dimension_semantics = [#tpu.dimension_semantics<parallel>], iteration_bounds = array<i64: 2>, scalar_prefetch = 0 : i64, scratch_operands = 0 : i64, tpu.core_type = #tpu.core_type<tc>, window_params = [{transform_indices = @transform_0, window_bounds = array<i64: 8, 24, 64>}, {pipeline_mode = #tpu.pipeline_mode<synchronous>, transform_indices = @transform_1, window_bounds = array<i64: 192, 192>}, {pipeline_mode = #tpu.pipeline_mode<synchronous>, transform_indices = @transform_2, window_bounds = array<i64: 64, 32>}, {pipeline_mode = #tpu.pipeline_mode<synchronous>, transform_indices = @transform_3, window_bounds = array<i64: 1, 32>}, {pipeline_mode = #tpu.pipeline_mode<synchronous>, transform_indices = @transform_4, window_bounds = array<i64: 32, 192>}, {pipeline_mode = #tpu.pipeline_mode<synchronous>, transform_indices = @transform_5, window_bounds = array<i64: 32, 4>}, {pipeline_mode = #tpu.pipeline_mode<synchronous>, transform_indices = @transform_6, window_bounds = array<i64: 2, 24, 64>}, {pipeline_mode = #tpu.pipeline_mode<synchronous>, transform_indices = @transform_7, window_bounds = array<i64: 2, 2>}, {transform_indices = @transform_8, window_bounds = array<i64: 8, 1, 2>}, {transform_indices = @transform_9, window_bounds = array<i64: 8, 24, 4>}, {transform_indices = @transform_10, window_bounds = array<i64: 8, 24, 24>}]} {
    %c0 = arith.constant 0 : index
    %c0_0 = arith.constant 0 : index
    %c0_1 = arith.constant 0 : index
    %0 = vector.load %arg1[%c0, %c0_0, %c0_1] : memref<8x24x64xf32, #tpu.memory_space<vmem>>, vector<8x24x64xf32>
    %1 = vector.shape_cast %0 : vector<8x24x64xf32> to vector<192x64xf32>
    %c0_2 = arith.constant 0 : index
    %c0_3 = arith.constant 0 : index
    %2 = vector.load %arg3[%c0_2, %c0_3] : memref<64x32xf32, #tpu.memory_space<vmem>>, vector<64x32xf32>
    %cst = arith.constant dense<0.000000e+00> : vector<192x32xf32>
    %3 = tpu.matmul %1, %2, %cst {dimension_numbers = #tpu.dot_dimension_numbers<[1], [0], [0], [1], [0, 0, 1, 1], [], []>} : vector<192x64xf32>, vector<64x32xf32>, vector<192x32xf32> -> vector<192x32xf32>
    %c0_4 = arith.constant 0 : index
    %c0_5 = arith.constant 0 : index
    %4 = vector.load %arg4[%c0_4, %c0_5] : memref<1x32xf32, #tpu.memory_space<vmem>>, vector<1x32xf32>
    %5 = vector.broadcast %4 : vector<1x32xf32> to vector<192x32xf32>
    %6 = arith.addf %3, %5 : vector<192x32xf32>
    %cst_6 = arith.constant 0.000000e+00 : f32
    %7 = vector.broadcast %cst_6 : f32 to vector<192x32xf32>
    %8 = arith.cmpf ogt, %6, %7 : vector<192x32xf32>
    %cst_7 = arith.constant 0.000000e+00 : f32
    %9 = vector.broadcast %cst_7 : f32 to vector<192x32xf32>
    %10 = arith.minimumf %6, %9 : vector<192x32xf32>
    %11 = math.exp %10 : vector<192x32xf32>
    %cst_8 = arith.constant 1.000000e+00 : f32
    %12 = vector.broadcast %cst_8 : f32 to vector<192x32xf32>
    %13 = arith.subf %11, %12 : vector<192x32xf32>
    %14 = arith.select %8, %6, %13 : vector<192x32xi1>, vector<192x32xf32>
    %c0_9 = arith.constant 0 : index
    %c0_10 = arith.constant 0 : index
    %15 = vector.load %arg5[%c0_9, %c0_10] : memref<32x192xf32, #tpu.memory_space<vmem>>, vector<32x192xf32>
    %cst_11 = arith.constant dense<0.000000e+00> : vector<192x192xf32>
    %16 = tpu.matmul %14, %15, %cst_11 {dimension_numbers = #tpu.dot_dimension_numbers<[1], [0], [0], [1], [0, 0, 1, 1], [], []>} : vector<192x32xf32>, vector<32x192xf32>, vector<192x192xf32> -> vector<192x192xf32>
    %c0_12 = arith.constant 0 : index
    %c0_13 = arith.constant 0 : index
    %17 = vector.load %arg2[%c0_12, %c0_13] : memref<192x192xf32, #tpu.memory_space<vmem>>, vector<192x192xf32>
    %18 = vector.extract_strided_slice %16 {offsets = [0, 0], sizes = [192, 64], strides = [1, 1]} : vector<192x192xf32> to vector<192x64xf32>
    %cst_14 = arith.constant dense<0.000000e+00> : vector<192x64xf32>
    %19 = tpu.matmul %17, %18, %cst_14 {dimension_numbers = #tpu.dot_dimension_numbers<[1], [0], [0], [1], [0, 0, 1, 1], [], []>} : vector<192x192xf32>, vector<192x64xf32>, vector<192x64xf32> -> vector<192x64xf32>
    %c0_15 = arith.constant 0 : index
    %c0_16 = arith.constant 0 : index
    %20 = vector.load %arg2[%c0_15, %c0_16] : memref<192x192xf32, #tpu.memory_space<vmem>>, vector<192x192xf32>
    %21 = vector.extract_strided_slice %19 {offsets = [0, 32], sizes = [192, 32], strides = [1, 1]} : vector<192x64xf32> to vector<192x32xf32>
    %cst_17 = arith.constant dense<0.000000e+00> : vector<192x32xf32>
    %22 = tpu.matmul %20, %21, %cst_17 {dimension_numbers = #tpu.dot_dimension_numbers<[1], [0], [0], [1], [0, 0, 1, 1], [], []>} : vector<192x192xf32>, vector<192x32xf32>, vector<192x32xf32> -> vector<192x32xf32>
    %23 = vector.extract_strided_slice %16 {offsets = [0, 96], sizes = [192, 32], strides = [1, 1]} : vector<192x192xf32> to vector<192x32xf32>
    %24 = vector.extract_strided_slice %19 {offsets = [0, 0], sizes = [192, 32], strides = [1, 1]} : vector<192x64xf32> to vector<192x32xf32>
    %25 = arith.addf %23, %24 : vector<192x32xf32>
    %26 = arith.addf %25, %22 : vector<192x32xf32>
    %cst_18 = arith.constant 0.000000e+00 : f32
    %27 = vector.broadcast %cst_18 : f32 to vector<192x32xf32>
    %28 = arith.maximumf %26, %27 : vector<192x32xf32>
    %29 = vector.shape_cast %28 : vector<192x32xf32> to vector<8x24x32xf32>
    %30 = vector.shape_cast %14 : vector<192x32xf32> to vector<8x24x32xf32>
    %31 = vector.extract_strided_slice %16 {offsets = [0, 128], sizes = [192, 32], strides = [1, 1]} : vector<192x192xf32> to vector<192x32xf32>
    %32 = vector.shape_cast %31 : vector<192x32xf32> to vector<8x24x32xf32>
    "tpu.trace_start"() <{level = 10 : i32, message = "bif,bjf->bij"}> : () -> ()
    %cst_19 = arith.constant dense<0.000000e+00> : vector<8x24x24xf32>
    %33 = tpu.matmul %32, %30, %cst_19 {dimension_numbers = #tpu.dot_dimension_numbers<[2], [2], [1], [1], [0, 0, 0, 1, 1, 1], [0], [0]>} : vector<8x24x32xf32>, vector<8x24x32xf32>, vector<8x24x24xf32> -> vector<8x24x24xf32>
    "tpu.trace_stop"() : () -> ()
    %34 = tpu.iota {dimensions = array<i32: 2>} : vector<1x1x24xi32>
    %c19_i32 = arith.constant 19 : i32
    %35 = vector.broadcast %c19_i32 : i32 to vector<1x1x24xi32>
    %36 = arith.cmpi slt, %34, %35 : vector<1x1x24xi32>
    %cst_20 = arith.constant -1.000000e+30 : f32
    %37 = vector.shape_cast %36 : vector<1x1x24xi1> to vector<1x1x24xi1>
    %38 = vector.broadcast %37 : vector<1x1x24xi1> to vector<8x24x24xi1>
    %39 = vector.broadcast %cst_20 : f32 to vector<8x24x24xf32>
    %40 = arith.select %38, %33, %39 : vector<8x24x24xi1>, vector<8x24x24xf32>
    %cst_21 = arith.constant dense<0xFF800000> : vector<8x24xf32>
    %41 = vector.multi_reduction <maximumf>, %40, %cst_21 [2] : vector<8x24x24xf32> to vector<8x24xf32>
    %42 = vector.shape_cast %41 : vector<8x24xf32> to vector<8x24x1xf32>
    %43 = vector.broadcast %42 : vector<8x24x1xf32> to vector<8x24x24xf32>
    %44 = arith.subf %40, %43 : vector<8x24x24xf32>
    %45 = math.exp %44 : vector<8x24x24xf32>
    %cst_22 = arith.constant dense<0.000000e+00> : vector<8x24xf32>
    %46 = vector.multi_reduction <add>, %45, %cst_22 [2] : vector<8x24x24xf32> to vector<8x24xf32>
    %47 = vector.shape_cast %46 : vector<8x24xf32> to vector<8x24x1xf32>
    %48 = vector.broadcast %47 : vector<8x24x1xf32> to vector<8x24x24xf32>
    %49 = arith.divf %45, %48 : vector<8x24x24xf32>
    %c0_23 = arith.constant 0 : index
    %c0_24 = arith.constant 0 : index
    %c0_25 = arith.constant 0 : index
    %50 = vector.load %arg11[%c0_23, %c0_24, %c0_25] : memref<8x24x24xf32, #tpu.memory_space<vmem>>, vector<8x24x24xf32>
    tpu.vector_store %arg11[%c0_23, %c0_24, %c0_25], %49 {strides = array<i32>} : memref<8x24x24xf32, #tpu.memory_space<vmem>>, vector<8x24x24xf32>,
    %51 = vector.extract_strided_slice %16 {offsets = [0, 64], sizes = [192, 32], strides = [1, 1]} : vector<192x192xf32> to vector<192x32xf32>
    %52 = vector.shape_cast %51 : vector<192x32xf32> to vector<8x24x32xf32>
    %53 = vector.extract_strided_slice %16 {offsets = [0, 160], sizes = [192, 32], strides = [1, 1]} : vector<192x192xf32> to vector<192x32xf32>
    %54 = vector.shape_cast %53 : vector<192x32xf32> to vector<8x24x32xf32>
    "tpu.trace_start"() <{level = 10 : i32, message = "bij,bjf->bif"}> : () -> ()
    %cst_26 = arith.constant dense<0.000000e+00> : vector<8x24x32xf32>
    %55 = tpu.matmul %49, %52, %cst_26 {dimension_numbers = #tpu.dot_dimension_numbers<[2], [1], [1], [2], [0, 0, 0, 1, 1, 2], [0], [0]>} : vector<8x24x24xf32>, vector<8x24x32xf32>, vector<8x24x32xf32> -> vector<8x24x32xf32>
    "tpu.trace_stop"() : () -> ()
    %56 = arith.addf %54, %55 : vector<8x24x32xf32>
    %cst_27 = arith.constant 0.000000e+00 : f32
    %57 = vector.broadcast %cst_27 : f32 to vector<8x24x32xf32>
    %58 = arith.maximumf %56, %57 : vector<8x24x32xf32>
    %59 = tpu.iota {dimensions = array<i32: 1>} : vector<1x24x1xi32>
    %c19_i32_28 = arith.constant 19 : i32
    %60 = vector.broadcast %c19_i32_28 : i32 to vector<1x24x1xi32>
    %61 = arith.cmpi slt, %59, %60 : vector<1x24x1xi32>
    %62 = arith.extui %61 : vector<1x24x1xi1> to vector<1x24x1xi32>
    %63 = arith.sitofp %62 : vector<1x24x1xi32> to vector<1x24x1xf32>
    %64 = vector.broadcast %63 : vector<1x24x1xf32> to vector<8x24x32xf32>
    %65 = arith.mulf %58, %64 : vector<8x24x32xf32>
    %c0_29 = arith.constant 0 : index
    %c0_30 = arith.constant 0 : index
    %66 = vector.load %arg6[%c0_29, %c0_30] : memref<32x4xf32, #tpu.memory_space<vmem>>, vector<32x4xf32>
    %67 = vector.shape_cast %66 : vector<32x4xf32> to vector<1x32x4xf32>
    %68 = vector.broadcast %67 : vector<1x32x4xf32> to vector<8x32x4xf32>
    "tpu.trace_start"() <{level = 10 : i32, message = "bif,bfn->bin"}> : () -> ()
    %cst_31 = arith.constant dense<0.000000e+00> : vector<8x24x4xf32>
    %69 = tpu.matmul %65, %68, %cst_31 {dimension_numbers = #tpu.dot_dimension_numbers<[2], [1], [1], [2], [0, 0, 0, 1, 1, 2], [0], [0]>} : vector<8x24x32xf32>, vector<8x32x4xf32>, vector<8x24x4xf32> -> vector<8x24x4xf32>
    "tpu.trace_stop"() : () -> ()
    "tpu.trace_start"() <{level = 10 : i32, message = "bij,bjn->bin"}> : () -> ()
    %cst_32 = arith.constant dense<0.000000e+00> : vector<8x24x4xf32>
    %70 = tpu.matmul %49, %69, %cst_32 {dimension_numbers = #tpu.dot_dimension_numbers<[2], [1], [1], [2], [0, 0, 0, 1, 1, 2], [0], [0]>} : vector<8x24x24xf32>, vector<8x24x4xf32>, vector<8x24x4xf32> -> vector<8x24x4xf32>
    "tpu.trace_stop"() : () -> ()
    %cst_33 = arith.constant dense<0xFF800000> : vector<8x24xf32>
    %71 = vector.multi_reduction <maximumf>, %70, %cst_33 [2] : vector<8x24x4xf32> to vector<8x24xf32>
    %72 = vector.shape_cast %71 : vector<8x24xf32> to vector<8x24x1xf32>
    %73 = vector.broadcast %72 : vector<8x24x1xf32> to vector<8x24x4xf32>
    %74 = arith.subf %70, %73 : vector<8x24x4xf32>
    %75 = math.exp %74 : vector<8x24x4xf32>
    %cst_34 = arith.constant dense<0.000000e+00> : vector<8x24xf32>
    %76 = vector.multi_reduction <add>, %75, %cst_34 [2] : vector<8x24x4xf32> to vector<8x24xf32>
    %77 = vector.shape_cast %76 : vector<8x24xf32> to vector<8x24x1xf32>
    %78 = vector.broadcast %77 : vector<8x24x1xf32> to vector<8x24x4xf32>
    %79 = arith.divf %75, %78 : vector<8x24x4xf32>
    %c0_35 = arith.constant 0 : index
    %c0_36 = arith.constant 0 : index
    %c0_37 = arith.constant 0 : index
    %80 = vector.load %arg10[%c0_35, %c0_36, %c0_37] : memref<8x24x4xf32, #tpu.memory_space<vmem>>, vector<8x24x4xf32>
    tpu.vector_store %arg10[%c0_35, %c0_36, %c0_37], %79 {strides = array<i32>} : memref<8x24x4xf32, #tpu.memory_space<vmem>>, vector<8x24x4xf32>,
    %81 = vector.extract_strided_slice %79 {offsets = [0, 0, 0], sizes = [8, 24, 1], strides = [1, 1, 1]} : vector<8x24x4xf32> to vector<8x24x1xf32>
    %82 = vector.broadcast %81 : vector<8x24x1xf32> to vector<8x24x32xf32>
    %83 = arith.mulf %82, %65 : vector<8x24x32xf32>
    %cst_38 = arith.constant dense<0.000000e+00> : vector<8x32xf32>
    %84 = vector.multi_reduction <add>, %83, %cst_38 [1] : vector<8x24x32xf32> to vector<8x32xf32>
    %85 = vector.shape_cast %84 : vector<8x32xf32> to vector<8x1x32xf32>
    %86 = vector.broadcast %81 : vector<8x24x1xf32> to vector<8x24x32xf32>
    %87 = vector.broadcast %85 : vector<8x1x32xf32> to vector<8x24x32xf32>
    %88 = arith.mulf %86, %87 : vector<8x24x32xf32>
    %89 = vector.extract_strided_slice %79 {offsets = [0, 0, 1], sizes = [8, 24, 1], strides = [1, 1, 1]} : vector<8x24x4xf32> to vector<8x24x1xf32>
    %90 = vector.broadcast %89 : vector<8x24x1xf32> to vector<8x24x32xf32>
    %91 = arith.mulf %90, %65 : vector<8x24x32xf32>
    %cst_39 = arith.constant dense<0.000000e+00> : vector<8x32xf32>
    %92 = vector.multi_reduction <add>, %91, %cst_39 [1] : vector<8x24x32xf32> to vector<8x32xf32>
    %93 = vector.shape_cast %92 : vector<8x32xf32> to vector<8x1x32xf32>
    %94 = vector.broadcast %89 : vector<8x24x1xf32> to vector<8x24x32xf32>
    %95 = vector.broadcast %93 : vector<8x1x32xf32> to vector<8x24x32xf32>
    %96 = arith.mulf %94, %95 : vector<8x24x32xf32>
    %97 = arith.addf %88, %96 : vector<8x24x32xf32>
    %98 = vector.extract_strided_slice %79 {offsets = [0, 0, 2], sizes = [8, 24, 1], strides = [1, 1, 1]} : vector<8x24x4xf32> to vector<8x24x1xf32>
    %99 = vector.broadcast %98 : vector<8x24x1xf32> to vector<8x24x32xf32>
    %100 = arith.mulf %99, %65 : vector<8x24x32xf32>
    %cst_40 = arith.constant dense<0.000000e+00> : vector<8x32xf32>
    %101 = vector.multi_reduction <add>, %100, %cst_40 [1] : vector<8x24x32xf32> to vector<8x32xf32>
    %102 = vector.shape_cast %101 : vector<8x32xf32> to vector<8x1x32xf32>
    %103 = vector.broadcast %98 : vector<8x24x1xf32> to vector<8x24x32xf32>
    %104 = vector.broadcast %102 : vector<8x1x32xf32> to vector<8x24x32xf32>
    %105 = arith.mulf %103, %104 : vector<8x24x32xf32>
    %106 = arith.addf %97, %105 : vector<8x24x32xf32>
    %107 = vector.extract_strided_slice %79 {offsets = [0, 0, 3], sizes = [8, 24, 1], strides = [1, 1, 1]} : vector<8x24x4xf32> to vector<8x24x1xf32>
    %108 = vector.broadcast %107 : vector<8x24x1xf32> to vector<8x24x32xf32>
    %109 = arith.mulf %108, %65 : vector<8x24x32xf32>
    %cst_41 = arith.constant dense<0.000000e+00> : vector<8x32xf32>
    %110 = vector.multi_reduction <add>, %109, %cst_41 [1] : vector<8x24x32xf32> to vector<8x32xf32>
    %111 = vector.shape_cast %110 : vector<8x32xf32> to vector<8x1x32xf32>
    %112 = vector.broadcast %107 : vector<8x24x1xf32> to vector<8x24x32xf32>
    %113 = vector.broadcast %111 : vector<8x1x32xf32> to vector<8x24x32xf32>
    %114 = arith.mulf %112, %113 : vector<8x24x32xf32>
    %115 = arith.addf %106, %114 : vector<8x24x32xf32>
    %c0_42 = arith.constant 0 : index
    %c0_43 = arith.constant 0 : index
    %c0_44 = arith.constant 0 : index
    %116 = vector.load %arg7[%c0_42, %c0_43, %c0_44] : memref<2x24x64xf32, #tpu.memory_space<vmem>>, vector<1x24x32xf32>
    %117 = vector.shape_cast %116 : vector<1x24x32xf32> to vector<24x32xf32>
    %118 = vector.shape_cast %117 : vector<24x32xf32> to vector<1x24x32xf32>
    %119 = vector.broadcast %118 : vector<1x24x32xf32> to vector<8x24x32xf32>
    %120 = arith.mulf %115, %119 : vector<8x24x32xf32>
    %c0_45 = arith.constant 0 : index
    %c0_46 = arith.constant 0 : index
    %c32 = arith.constant 32 : index
    %121 = vector.load %arg7[%c0_45, %c0_46, %c32] : memref<2x24x64xf32, #tpu.memory_space<vmem>>, vector<1x24x32xf32>
    %122 = vector.shape_cast %121 : vector<1x24x32xf32> to vector<24x32xf32>
    %123 = vector.shape_cast %122 : vector<24x32xf32> to vector<1x24x32xf32>
    %124 = vector.broadcast %123 : vector<1x24x32xf32> to vector<8x24x32xf32>
    %125 = arith.mulf %29, %124 : vector<8x24x32xf32>
    %126 = arith.addf %120, %125 : vector<8x24x32xf32>
    %cst_47 = arith.constant dense<0.000000e+00> : vector<8x24xf32>
    %127 = vector.multi_reduction <add>, %126, %cst_47 [2] : vector<8x24x32xf32> to vector<8x24xf32>
    %128 = vector.shape_cast %127 : vector<8x24xf32> to vector<8x24x1xf32>
    %cst_48 = arith.constant dense<0.000000e+00> : vector<8x1xf32>
    %129 = vector.multi_reduction <add>, %128, %cst_48 [1] : vector<8x24x1xf32> to vector<8x1xf32>
    %130 = vector.shape_cast %129 : vector<8x1xf32> to vector<8x1x1xf32>
    %c1 = arith.constant 1 : index
    %c0_49 = arith.constant 0 : index
    %c0_50 = arith.constant 0 : index
    %131 = vector.load %arg7[%c1, %c0_49, %c0_50] : memref<2x24x64xf32, #tpu.memory_space<vmem>>, vector<1x24x32xf32>
    %132 = vector.shape_cast %131 : vector<1x24x32xf32> to vector<24x32xf32>
    %133 = vector.shape_cast %132 : vector<24x32xf32> to vector<1x24x32xf32>
    %134 = vector.broadcast %133 : vector<1x24x32xf32> to vector<8x24x32xf32>
    %135 = arith.mulf %115, %134 : vector<8x24x32xf32>
    %c1_51 = arith.constant 1 : index
    %c0_52 = arith.constant 0 : index
    %c32_53 = arith.constant 32 : index
    %136 = vector.load %arg7[%c1_51, %c0_52, %c32_53] : memref<2x24x64xf32, #tpu.memory_space<vmem>>, vector<1x24x32xf32>
    %137 = vector.shape_cast %136 : vector<1x24x32xf32> to vector<24x32xf32>
    %138 = vector.shape_cast %137 : vector<24x32xf32> to vector<1x24x32xf32>
    %139 = vector.broadcast %138 : vector<1x24x32xf32> to vector<8x24x32xf32>
    %140 = arith.mulf %29, %139 : vector<8x24x32xf32>
    %141 = arith.addf %135, %140 : vector<8x24x32xf32>
    %cst_54 = arith.constant dense<0.000000e+00> : vector<8x24xf32>
    %142 = vector.multi_reduction <add>, %141, %cst_54 [2] : vector<8x24x32xf32> to vector<8x24xf32>
    %143 = vector.shape_cast %142 : vector<8x24xf32> to vector<8x24x1xf32>
    %cst_55 = arith.constant dense<0.000000e+00> : vector<8x1xf32>
    %144 = vector.multi_reduction <add>, %143, %cst_55 [1] : vector<8x24x1xf32> to vector<8x1xf32>
    %145 = vector.shape_cast %144 : vector<8x1xf32> to vector<8x1x1xf32>
    %146 = tpu.concatenate %130, %145 in 2 : vector<8x1x1xf32>, vector<8x1x1xf32> -> vector<8x1x2xf32>
    %c0_56 = arith.constant 0 : index
    %c0_57 = arith.constant 0 : index
    %147 = vector.load %arg8[%c0_56, %c0_57] : memref<2x2xf32, #tpu.memory_space<vmem>>, vector<1x2xf32>
    %148 = vector.shape_cast %147 : vector<1x2xf32> to vector<1x1x2xf32>
    %149 = vector.broadcast %148 : vector<1x1x2xf32> to vector<8x1x2xf32>
    %150 = arith.mulf %146, %149 : vector<8x1x2xf32>
    %c1_58 = arith.constant 1 : index
    %c0_59 = arith.constant 0 : index
    %151 = vector.load %arg8[%c1_58, %c0_59] : memref<2x2xf32, #tpu.memory_space<vmem>>, vector<1x2xf32>
    %152 = vector.shape_cast %151 : vector<1x2xf32> to vector<1x1x2xf32>
    %153 = vector.broadcast %152 : vector<1x1x2xf32> to vector<8x1x2xf32>
    %154 = arith.addf %150, %153 : vector<8x1x2xf32>
    %c0_60 = arith.constant 0 : index
    %c0_61 = arith.constant 0 : index
    %c0_62 = arith.constant 0 : index
    %155 = vector.load %arg9[%c0_60, %c0_61, %c0_62] : memref<8x1x2xf32, #tpu.memory_space<vmem>>, vector<8x1x2xf32>
    tpu.vector_store %arg9[%c0_60, %c0_61, %c0_62], %154 {strides = array<i32>} : memref<8x1x2xf32, #tpu.memory_space<vmem>>, vector<8x1x2xf32>,
    return
  }
  func.func @transform_0(%arg0: i32) -> (i32, i32, i32) {
    %c0_i32 = arith.constant 0 : i32
    %c0_i32_0 = arith.constant 0 : i32
    %c0_i32_1 = arith.constant 0 : i32
    return %arg0, %c0_i32, %c0_i32_0 : i32, i32, i32
  }
  func.func @transform_1(%arg0: i32) -> (i32, i32) {
    %c0_i32 = arith.constant 0 : i32
    %c0_i32_0 = arith.constant 0 : i32
    %c0_i32_1 = arith.constant 0 : i32
    return %c0_i32, %c0_i32_0 : i32, i32
  }
  func.func @transform_2(%arg0: i32) -> (i32, i32) {
    %c0_i32 = arith.constant 0 : i32
    %c0_i32_0 = arith.constant 0 : i32
    %c0_i32_1 = arith.constant 0 : i32
    return %c0_i32, %c0_i32_0 : i32, i32
  }
  func.func @transform_3(%arg0: i32) -> (i32, i32) {
    %c0_i32 = arith.constant 0 : i32
    %c0_i32_0 = arith.constant 0 : i32
    %c0_i32_1 = arith.constant 0 : i32
    return %c0_i32, %c0_i32_0 : i32, i32
  }
  func.func @transform_4(%arg0: i32) -> (i32, i32) {
    %c0_i32 = arith.constant 0 : i32
    %c0_i32_0 = arith.constant 0 : i32
    %c0_i32_1 = arith.constant 0 : i32
    return %c0_i32, %c0_i32_0 : i32, i32
  }
  func.func @transform_5(%arg0: i32) -> (i32, i32) {
    %c0_i32 = arith.constant 0 : i32
    %c0_i32_0 = arith.constant 0 : i32
    %c0_i32_1 = arith.constant 0 : i32
    return %c0_i32, %c0_i32_0 : i32, i32
  }
  func.func @transform_6(%arg0: i32) -> (i32, i32, i32) {
    %c0_i32 = arith.constant 0 : i32
    %c0_i32_0 = arith.constant 0 : i32
    %c0_i32_1 = arith.constant 0 : i32
    %c0_i32_2 = arith.constant 0 : i32
    return %c0_i32, %c0_i32_0, %c0_i32_1 : i32, i32, i32
  }
  func.func @transform_7(%arg0: i32) -> (i32, i32) {
    %c0_i32 = arith.constant 0 : i32
    %c0_i32_0 = arith.constant 0 : i32
    %c0_i32_1 = arith.constant 0 : i32
    return %c0_i32, %c0_i32_0 : i32, i32
  }
  func.func @transform_8(%arg0: i32) -> (i32, i32, i32) {
    %c0_i32 = arith.constant 0 : i32
    %c0_i32_0 = arith.constant 0 : i32
    %c0_i32_1 = arith.constant 0 : i32
    return %arg0, %c0_i32, %c0_i32_0 : i32, i32, i32
  }
  func.func @transform_9(%arg0: i32) -> (i32, i32, i32) {
    %c0_i32 = arith.constant 0 : i32
    %c0_i32_0 = arith.constant 0 : i32
    %c0_i32_1 = arith.constant 0 : i32
    return %arg0, %c0_i32, %c0_i32_0 : i32, i32, i32
  }
  func.func @transform_10(%arg0: i32) -> (i32, i32, i32) {
    %c0_i32 = arith.constant 0 : i32
    %c0_i32_0 = arith.constant 0 : i32
    %c0_i32_1 = arith.constant 0 : i32
    return %arg0, %c0_i32, %c0_i32_0 : i32, i32, i32
  }
}

</mosaic_0001>

<llo_original>
// kernel: tpu_custom_call.1
$region0: #{tpu_custom_call.1}
  #allocation0 [shape = 'u32[]', space=smem, size = 0x4, offset = 0x4, fixed_abs, tag = 'smem constant byte address 0x4 - core index']
  #allocation1 [shape = 'u32[72,128]{1,0:T(1,128)}', space=vmem, size = 0x9000, scoped, tag = 'internal scratch']
  %s0 = inlined_call_operand.hbm [shape: f32[16,24,64], index: 0, kind: input, shape index: {}]
  %s1 = inlined_call_operand.hbm [shape: f32[192,192], index: 1, kind: input, shape index: {}]
  %s2 = inlined_call_operand.vmem [shape: f32[64,32], index: 2, kind: input, shape index: {}]
  %s3 = inlined_call_operand.vmem [shape: f32[1,32], index: 3, kind: input, shape index: {}]
  %s4 = inlined_call_operand.vmem [shape: f32[32,192], index: 4, kind: input, shape index: {}]
  %s5 = inlined_call_operand.vmem [shape: f32[32,4], index: 5, kind: input, shape index: {}]
  %s6 = inlined_call_operand.hbm [shape: f32[2,24,64], index: 6, kind: input, shape index: {}]
  %s7 = inlined_call_operand.vmem [shape: f32[2,2], index: 7, kind: input, shape index: {}]
  %s8 = inlined_call_operand.vmem [shape: f32[16,1,2], index: 8, kind: output, shape index: {0}]
  %s9 = inlined_call_operand.vmem [shape: f32[16,24,4], index: 9, kind: output, shape index: {1}]
  %s10 = inlined_call_operand.hbm [shape: f32[16,24,24], index: 10, kind: output, shape index: {2}]
  %11 = xla_tuple %s8, %s9, %s10
  %s12 = sld [smem:[#allocation0]]
  $region93: #{tpu_custom_call.1} parent=0
    _
  %s14 = ssub.s32 1, %s12
  %s15 = scalar_select 0, %s14, %s12
  $region1: #{tpu_custom_call.1} parent=0
    #allocation2 [shape = 'u8[196608]{0}', space=vmem, size = 0x30000, scoped, tag = 'input window, operand 0']
    #allocation3 [shape = 's32[2]{0}', space=sflag, size = 0x8, scoped, tag = 'scoped memory for tpu_custom_call.1']
    #allocation4 [shape = 's32[2]{0}', space=sflag, size = 0x8, scoped, tag = 'scoped memory for tpu_custom_call.1']
    #allocation5 [shape = 'u8[196608]{0}', space=vmem, size = 0x30000, scoped, tag = 'input window, operand 1, single buffered']
    #allocation6 [shape = 's32[1]{0}', space=sflag, size = 0x4, scoped, tag = 'scoped memory for tpu_custom_call.1']
    #allocation7 [shape = 'u8[24576]{0}', space=vmem, size = 0x6000, scoped, tag = 'input window, operand 6, single buffered']
    #allocation8 [shape = 'u8[196608]{0}', space=vmem, size = 0x30000, scoped, tag = 'output window, operand 2']
    %16 = vsyncpa [#allocation3], 0
    %s17 = scalar_lea.sflag [#allocation3], 1
    %18 = vsyncpa %s17, 0
    %19 = vsyncpa [#allocation6], 0
    %20 = vsyncpa [#allocation4], 0
    %s21 = scalar_lea.sflag [#allocation4], 1
    %22 = vsyncpa %s21, 0
    loop: start=0, step=1, limit=4
    $region2: #{tpu_custom_call.1} parent=1 // loop_pre_header
      _
    $region3: #{tpu_custom_call.1} parent=1 // loop_header
      %s24 = sphi 0, %s28
      %p25 = scmp.ge.s32.totalorder %s24, 4
      %s34 = sphi 0, %s36
      %s37 = sphi 0, %s34
      %s38 = sphi 0, %s37
      %s54 = sphi 0, %s38
      %s58 = sphi 0, %s58
      %s60 = sphi 0, %s58
      %s61 = sphi 0, %s60
      %s75 = sphi 0, %s61
      %s79 = sphi 0, %s79
      %s81 = sphi 0, %s79
      %s82 = sphi 0, %s81
      %s96 = sphi 0, %s82
      %s100 = sphi 0, %s100
      %s102 = sphi 0, %s100
      %s103 = sphi 0, %s102
      %s117 = sphi 0, %s103
      %s121 = sphi 0, %s121
      %s123 = sphi 0, %s121
      %s124 = sphi 0, %s123
      %s138 = sphi 0, %s124
      %s142 = sphi 0, %s142
      %s144 = sphi 0, %s142
      %s145 = sphi 0, %s144
      %s159 = sphi 0, %s145
      %s163 = sphi 0, %s163
      %s165 = sphi 0, %s163
      %s166 = sphi 0, %s165
      %s180 = sphi 0, %s166
      %s184 = sphi 0, %s184
      %s186 = sphi 0, %s184
      %s187 = sphi 0, %s186
      %s201 = sphi 0, %s187
      %s207 = sphi 0, %s209
      %s210 = sphi 0, %s207
      %s211 = sphi 0, %s210
      %s227 = sphi 0, %s211
      %s233 = sphi 0, %s235
      %s236 = sphi 0, %s233
      %s237 = sphi 0, %s236
      %s253 = sphi 0, %s237
      %s259 = sphi 0, %s261
      %s262 = sphi 0, %s259
      %s263 = sphi 0, %s262
      %s279 = sphi 0, %s263
    $region4: #{tpu_custom_call.1} parent=1 // loop_header_branch
      %27 = sbr.rel (%p25) target = $region8
    $region5: #{tpu_custom_call.1} parent=1 // loop_body
      %s29 = ssub.s32 %s24, 1
      %s30 = ssub.s32 %s24, 2
      %s31 = sadd.s32 %s24, 1
      %s32 = ssub.s32 %s24, %s31
      %p33 = scmp.eq.s32.totalorder %s32, 0
      %s35 = sadd.s32 %s34, 1
      %s36 = scalar_select %p33, %s34, %s35
      %p39 = pneg %p33
      %p40 = scmp.eq.s32.totalorder %s24, 1
      %p41 = por %p39, %p40
      %p42 = scmp.ne.s32.totalorder %s34, %s37
      %p43 = scmp.eq.s32.totalorder %s24, 0
      %p44 = por %p42, %p43
      %p45 = scmp.ne.s32.totalorder %s34, %s37
      %p46 = scmp.eq.s32.totalorder %s29, 1
      %p47 = por %p45, %p46
      %p48 = scmp.ne.s32.totalorder %s37, %s38
      %p49 = scmp.eq.s32.totalorder %s29, 0
      %p50 = por %p48, %p49
      %p51 = scmp.ne.s32.totalorder %s37, %s38
      %p52 = scmp.eq.s32.totalorder %s30, 1
      %p53 = por %p51, %p52
      %p55 = scmp.ne.s32.totalorder %s38, %s54
      %p56 = scmp.eq.s32.totalorder %s30, 0
      %p57 = por %p55, %p56
      %s59 = sadd.s32 %s58, 1
      %p62 = scmp.eq.s32.totalorder %s24, 1
      %p63 = scmp.ne.s32.totalorder %s58, %s60
      %p64 = scmp.eq.s32.totalorder %s24, 0
      %p65 = por %p63, %p64
      %p66 = scmp.ne.s32.totalorder %s58, %s60
      %p67 = scmp.eq.s32.totalorder %s29, 1
      %p68 = por %p66, %p67
      %p69 = scmp.ne.s32.totalorder %s60, %s61
      %p70 = scmp.eq.s32.totalorder %s29, 0
      %p71 = por %p69, %p70
      %p72 = scmp.ne.s32.totalorder %s60, %s61
      %p73 = scmp.eq.s32.totalorder %s30, 1
      %p74 = por %p72, %p73
      %p76 = scmp.ne.s32.totalorder %s61, %s75
      %p77 = scmp.eq.s32.totalorder %s30, 0
      %p78 = por %p76, %p77
      %s80 = sadd.s32 %s79, 1
      %p83 = scmp.eq.s32.totalorder %s24, 1
      %p84 = scmp.ne.s32.totalorder %s79, %s81
      %p85 = scmp.eq.s32.totalorder %s24, 0
      %p86 = por %p84, %p85
      %p87 = scmp.ne.s32.totalorder %s79, %s81
      %p88 = scmp.eq.s32.totalorder %s29, 1
      %p89 = por %p87, %p88
      %p90 = scmp.ne.s32.totalorder %s81, %s82
      %p91 = scmp.eq.s32.totalorder %s29, 0
      %p92 = por %p90, %p91
      %p93 = scmp.ne.s32.totalorder %s81, %s82
      %p94 = scmp.eq.s32.totalorder %s30, 1
      %p95 = por %p93, %p94
      %p97 = scmp.ne.s32.totalorder %s82, %s96
      %p98 = scmp.eq.s32.totalorder %s30, 0
      %p99 = por %p97, %p98
      %s101 = sadd.s32 %s100, 1
      %p104 = scmp.eq.s32.totalorder %s24, 1
      %p105 = scmp.ne.s32.totalorder %s100, %s102
      %p106 = scmp.eq.s32.totalorder %s24, 0
      %p107 = por %p105, %p106
      %p108 = scmp.ne.s32.totalorder %s100, %s102
      %p109 = scmp.eq.s32.totalorder %s29, 1
      %p110 = por %p108, %p109
      %p111 = scmp.ne.s32.totalorder %s102, %s103
      %p112 = scmp.eq.s32.totalorder %s29, 0
      %p113 = por %p111, %p112
      %p114 = scmp.ne.s32.totalorder %s102, %s103
      %p115 = scmp.eq.s32.totalorder %s30, 1
      %p116 = por %p114, %p115
      %p118 = scmp.ne.s32.totalorder %s103, %s117
      %p119 = scmp.eq.s32.totalorder %s30, 0
      %p120 = por %p118, %p119
      %s122 = sadd.s32 %s121, 1
      %p125 = scmp.eq.s32.totalorder %s24, 1
      %p126 = scmp.ne.s32.totalorder %s121, %s123
      %p127 = scmp.eq.s32.totalorder %s24, 0
      %p128 = por %p126, %p127
      %p129 = scmp.ne.s32.totalorder %s121, %s123
      %p130 = scmp.eq.s32.totalorder %s29, 1
      %p131 = por %p129, %p130
      %p132 = scmp.ne.s32.totalorder %s123, %s124
      %p133 = scmp.eq.s32.totalorder %s29, 0
      %p134 = por %p132, %p133
      %p135 = scmp.ne.s32.totalorder %s123, %s124
      %p136 = scmp.eq.s32.totalorder %s30, 1
      %p137 = por %p135, %p136
      %p139 = scmp.ne.s32.totalorder %s124, %s138
      %p140 = scmp.eq.s32.totalorder %s30, 0
      %p141 = por %p139, %p140
      %s143 = sadd.s32 %s142, 1
      %p146 = scmp.eq.s32.totalorder %s24, 1
      %p147 = scmp.ne.s32.totalorder %s142, %s144
      %p148 = scmp.eq.s32.totalorder %s24, 0
      %p149 = por %p147, %p148
      %p150 = scmp.ne.s32.totalorder %s142, %s144
      %p151 = scmp.eq.s32.totalorder %s29, 1
      %p152 = por %p150, %p151
      %p153 = scmp.ne.s32.totalorder %s144, %s145
      %p154 = scmp.eq.s32.totalorder %s29, 0
      %p155 = por %p153, %p154
      %p156 = scmp.ne.s32.totalorder %s144, %s145
      %p157 = scmp.eq.s32.totalorder %s30, 1
      %p158 = por %p156, %p157
      %p160 = scmp.ne.s32.totalorder %s145, %s159
      %p161 = scmp.eq.s32.totalorder %s30, 0
      %p162 = por %p160, %p161
      %s164 = sadd.s32 %s163, 1
      %p167 = scmp.eq.s32.totalorder %s24, 1
      %p168 = scmp.ne.s32.totalorder %s163, %s165
      %p169 = scmp.eq.s32.totalorder %s24, 0
      %p170 = por %p168, %p169
      %p171 = scmp.ne.s32.totalorder %s163, %s165
      %p172 = scmp.eq.s32.totalorder %s29, 1
      %p173 = por %p171, %p172
      %p174 = scmp.ne.s32.totalorder %s165, %s166
      %p175 = scmp.eq.s32.totalorder %s29, 0
      %p176 = por %p174, %p175
      %p177 = scmp.ne.s32.totalorder %s165, %s166
      %p178 = scmp.eq.s32.totalorder %s30, 1
      %p179 = por %p177, %p178
      %p181 = scmp.ne.s32.totalorder %s166, %s180
      %p182 = scmp.eq.s32.totalorder %s30, 0
      %p183 = por %p181, %p182
      %s185 = sadd.s32 %s184, 1
      %p188 = scmp.eq.s32.totalorder %s24, 1
      %p189 = scmp.ne.s32.totalorder %s184, %s186
      %p190 = scmp.eq.s32.totalorder %s24, 0
      %p191 = por %p189, %p190
      %p192 = scmp.ne.s32.totalorder %s184, %s186
      %p193 = scmp.eq.s32.totalorder %s29, 1
      %p194 = por %p192, %p193
      %p195 = scmp.ne.s32.totalorder %s186, %s187
      %p196 = scmp.eq.s32.totalorder %s29, 0
      %p197 = por %p195, %p196
      %p198 = scmp.ne.s32.totalorder %s186, %s187
      %p199 = scmp.eq.s32.totalorder %s30, 1
      %p200 = por %p198, %p199
      %p202 = scmp.ne.s32.totalorder %s187, %s201
      %p203 = scmp.eq.s32.totalorder %s30, 0
      %p204 = por %p202, %p203
      %s205 = ssub.s32 %s24, %s31
      %p206 = scmp.eq.s32.totalorder %s205, 0
      %s208 = sadd.s32 %s207, 1
      %s209 = scalar_select %p206, %s207, %s208
      %p212 = pneg %p206
      %p213 = scmp.eq.s32.totalorder %s24, 1
      %p214 = por %p212, %p213
      %p215 = scmp.ne.s32.totalorder %s207, %s210
      %p216 = scmp.eq.s32.totalorder %s24, 0
      %p217 = por %p215, %p216
      %p218 = scmp.ne.s32.totalorder %s207, %s210
      %p219 = scmp.eq.s32.totalorder %s29, 1
      %p220 = por %p218, %p219
      %p221 = scmp.ne.s32.totalorder %s210, %s211
      %p222 = scmp.eq.s32.totalorder %s29, 0
      %p223 = por %p221, %p222
      %p224 = scmp.ne.s32.totalorder %s210, %s211
      %p225 = scmp.eq.s32.totalorder %s30, 1
      %p226 = por %p224, %p225
      %p228 = scmp.ne.s32.totalorder %s211, %s227
      %p229 = scmp.eq.s32.totalorder %s30, 0
      %p230 = por %p228, %p229
      %s231 = ssub.s32 %s24, %s31
      %p232 = scmp.eq.s32.totalorder %s231, 0
      %s234 = sadd.s32 %s233, 1
      %s235 = scalar_select %p232, %s233, %s234
      %p238 = pneg %p232
      %p239 = scmp.eq.s32.totalorder %s24, 1
      %p240 = por %p238, %p239
      %p241 = scmp.ne.s32.totalorder %s233, %s236
      %p242 = scmp.eq.s32.totalorder %s24, 0
      %p243 = por %p241, %p242
      %p244 = scmp.ne.s32.totalorder %s233, %s236
      %p245 = scmp.eq.s32.totalorder %s29, 1
      %p246 = por %p244, %p245
      %p247 = scmp.ne.s32.totalorder %s236, %s237
      %p248 = scmp.eq.s32.totalorder %s29, 0
      %p249 = por %p247, %p248
      %p250 = scmp.ne.s32.totalorder %s236, %s237
      %p251 = scmp.eq.s32.totalorder %s30, 1
      %p252 = por %p250, %p251
      %p254 = scmp.ne.s32.totalorder %s237, %s253
      %p255 = scmp.eq.s32.totalorder %s30, 0
      %p256 = por %p254, %p255
      %s257 = ssub.s32 %s24, %s31
      %p258 = scmp.eq.s32.totalorder %s257, 0
      %s260 = sadd.s32 %s259, 1
      %s261 = scalar_select %p258, %s259, %s260
      %p264 = pneg %p258
      %p265 = scmp.eq.s32.totalorder %s24, 1
      %p266 = por %p264, %p265
      %p267 = scmp.ne.s32.totalorder %s259, %s262
      %p268 = scmp.eq.s32.totalorder %s24, 0
      %p269 = por %p267, %p268
      %p270 = scmp.ne.s32.totalorder %s259, %s262
      %p271 = scmp.eq.s32.totalorder %s29, 1
      %p272 = por %p270, %p271
      %p273 = scmp.ne.s32.totalorder %s262, %s263
      %p274 = scmp.eq.s32.totalorder %s29, 0
      %p275 = por %p273, %p274
      %p276 = scmp.ne.s32.totalorder %s262, %s263
      %p277 = scmp.eq.s32.totalorder %s30, 1
      %p278 = por %p276, %p277
      %p280 = scmp.ne.s32.totalorder %s263, %s279
      %p281 = scmp.eq.s32.totalorder %s30, 0
      %p282 = por %p280, %p281
      %p283 = scmp.le.s32.totalorder 1, %s24
      %p284 = scmp.lt.s32.totalorder %s24, 3
      %p285 = pnand %p283, %p284
      %p286 = pneg %p285
      // Predicated region
      $region9: #{tpu_custom_call.1} parent=5 // pred_check
        _
      $region10: #{tpu_custom_call.1} parent=5 // pred_check_branch
        %288 = sbr.rel (%p285) target = $region12
      $region11: #{tpu_custom_call.1} parent=5 // pred_region
        %s289 = ssub.s32 %s24, 1
        // Predicated region
        $region13: #{tpu_custom_call.1} parent=11 // pred_check
          %p290 = pneg %p71
        $region14: #{tpu_custom_call.1} parent=11 // pred_check_branch
          %292 = sbr.rel (%p290) target = $region16
        $region15: #{tpu_custom_call.1} parent=11 // pred_region
          %294 = vsyncadd [#allocation6], 0
          %s295 = sshll.u32 %s1, 4
          %s296 = int_to_ptr.hbm [resolvable:$true] %s295
          %s297 = sshll.u32 [#allocation5], 4
          %s298 = int_to_ptr.vmem [resolvable:$true] %s297
          %303 = dma.hbm_to_vmem [thread:$0]  %s296, 6144, %s298, [#allocation6], 256, 256, 16
        $region16: #{tpu_custom_call.1} parent=11 // pred_fallthru
          _
        // Predicated region
        $region17: #{tpu_custom_call.1} parent=11 // pred_check
          %p304 = pneg %p92
        $region18: #{tpu_custom_call.1} parent=11 // pred_check_branch
          %306 = sbr.rel (%p304) target = $region20
        $region19: #{tpu_custom_call.1} parent=11 // pred_region
          _
        $region20: #{tpu_custom_call.1} parent=11 // pred_fallthru
          _
        // Predicated region
        $region21: #{tpu_custom_call.1} parent=11 // pred_check
          %p307 = pneg %p113
        $region22: #{tpu_custom_call.1} parent=11 // pred_check_branch
          %309 = sbr.rel (%p307) target = $region24
        $region23: #{tpu_custom_call.1} parent=11 // pred_region
          _
        $region24: #{tpu_custom_call.1} parent=11 // pred_fallthru
          _
        // Predicated region
        $region25: #{tpu_custom_call.1} parent=11 // pred_check
          %p310 = pneg %p134
        $region26: #{tpu_custom_call.1} parent=11 // pred_check_branch
          %312 = sbr.rel (%p310) target = $region28
        $region27: #{tpu_custom_call.1} parent=11 // pred_region
          _
        $region28: #{tpu_custom_call.1} parent=11 // pred_fallthru
          _
        // Predicated region
        $region29: #{tpu_custom_call.1} parent=11 // pred_check
          %p313 = pneg %p155
        $region30: #{tpu_custom_call.1} parent=11 // pred_check_branch
          %315 = sbr.rel (%p313) target = $region32
        $region31: #{tpu_custom_call.1} parent=11 // pred_region
          _
        $region32: #{tpu_custom_call.1} parent=11 // pred_fallthru
          _
        // Predicated region
        $region33: #{tpu_custom_call.1} parent=11 // pred_check
          %p316 = pneg %p176
        $region34: #{tpu_custom_call.1} parent=11 // pred_check_branch
          %318 = sbr.rel (%p316) target = $region36
        $region35: #{tpu_custom_call.1} parent=11 // pred_region
          %320 = vsyncadd [#allocation6], 0
          %s321 = sshll.u32 %s6, 4
          %s322 = int_to_ptr.hbm [resolvable:$true] %s321
          %s323 = sshll.u32 [#allocation7], 4
          %s324 = int_to_ptr.vmem [resolvable:$true] %s323
          %329 = dma.hbm_to_vmem [thread:$0]  %s322, 768, %s324, [#allocation6], 128, 128, 8
        $region36: #{tpu_custom_call.1} parent=11 // pred_fallthru
          _
        // Predicated region
        $region37: #{tpu_custom_call.1} parent=11 // pred_check
          %p330 = pneg %p197
        $region38: #{tpu_custom_call.1} parent=11 // pred_check_branch
          %332 = sbr.rel (%p330) target = $region40
        $region39: #{tpu_custom_call.1} parent=11 // pred_region
          _
        $region40: #{tpu_custom_call.1} parent=11 // pred_fallthru
          _
      $region12: #{tpu_custom_call.1} parent=5 // pred_fallthru
        _
      %p333 = scmp.lt.s32.totalorder %s24, 2
      // Predicated region
      $region41: #{tpu_custom_call.1} parent=5 // pred_check
        %p334 = pneg %p333
      $region42: #{tpu_custom_call.1} parent=5 // pred_check_branch
        %336 = sbr.rel (%p334) target = $region44
      $region43: #{tpu_custom_call.1} parent=5 // pred_region
        // Predicated region
        $region45: #{tpu_custom_call.1} parent=43 // pred_check
          %p337 = pneg %p44
        $region46: #{tpu_custom_call.1} parent=43 // pred_check_branch
          %339 = sbr.rel (%p337) target = $region48
        $region47: #{tpu_custom_call.1} parent=43 // pred_region
          %s340 = sand.u32 %s34, 1
          %s341 = scalar_lea.sflag [#allocation3], %s340
          %s342 = sand.u32 %s34, 1
          %s343 = smul.addr %s342, 192
          %s344 = scalar_lea.vmem [#allocation2], %s343
          %s345 = smul.u32 8, %s24
          %347 = vsyncadd %s341, 0
          %s348 = smul.addr %s345, 3
          %s349 = smul.addr %s348, 8
          %s350 = scalar_lea.hbm %s0, %s349
          %s351 = sshll.u32 %s350, 4
          %s352 = int_to_ptr.hbm [resolvable:$true] %s351
          %s353 = sshll.u32 %s344, 4
          %s354 = int_to_ptr.vmem [resolvable:$true] %s353
          %359 = dma.hbm_to_vmem [thread:$0]  %s352, 3072, %s354, %s341, 128, 128, 8
        $region48: #{tpu_custom_call.1} parent=43 // pred_fallthru
          _
      $region44: #{tpu_custom_call.1} parent=5 // pred_fallthru
        _
      %p360 = scmp.le.s32.totalorder 1, %s24
      %p361 = scmp.lt.s32.totalorder %s24, 3
      %p362 = pnand %p360, %p361
      %p363 = pneg %p362
      // Predicated region
      $region49: #{tpu_custom_call.1} parent=5 // pred_check
        _
      $region50: #{tpu_custom_call.1} parent=5 // pred_check_branch
        %365 = sbr.rel (%p362) target = $region52
      $region51: #{tpu_custom_call.1} parent=5 // pred_region
        %s366 = ssub.s32 %s24, 1
        %s367 = sand.u32 %s37, 1
        %s368 = scalar_lea.sflag [#allocation3], %s367
        %s369 = sand.u32 %s37, 1
        %s370 = smul.addr %s369, 192
        %s371 = scalar_lea.vmem [#allocation2], %s370
        // Predicated region
        $region53: #{tpu_custom_call.1} parent=51 // pred_check
          %p372 = pneg %p50
        $region54: #{tpu_custom_call.1} parent=51 // pred_check_branch
          %374 = sbr.rel (%p372) target = $region56
        $region55: #{tpu_custom_call.1} parent=51 // pred_region
          %376 = dma.done %s368, 3072
        $region56: #{tpu_custom_call.1} parent=51 // pred_fallthru
          _
        // Predicated region
        $region57: #{tpu_custom_call.1} parent=51 // pred_check
          %p377 = pneg %p71
        $region58: #{tpu_custom_call.1} parent=51 // pred_check_branch
          %379 = sbr.rel (%p377) target = $region60
        $region59: #{tpu_custom_call.1} parent=51 // pred_region
          %381 = dma.done [#allocation6], 6144
        $region60: #{tpu_custom_call.1} parent=51 // pred_fallthru
          _
        // Predicated region
        $region61: #{tpu_custom_call.1} parent=51 // pred_check
          %p382 = pneg %p176
        $region62: #{tpu_custom_call.1} parent=51 // pred_check_branch
          %384 = sbr.rel (%p382) target = $region64
        $region63: #{tpu_custom_call.1} parent=51 // pred_region
          %386 = dma.done [#allocation6], 768
        $region64: #{tpu_custom_call.1} parent=51 // pred_fallthru
          _
        %s387 = sand.u32 %s37, 1
        %s388 = scalar_lea.sflag [#allocation3], %s387
        %s389 = sand.u32 %s37, 1
        %s390 = smul.addr %s389, 192
        %s391 = scalar_lea.vmem [#allocation2], %s390
        %p392 = pneg %p50
        %p393 = pneg %p47
        %p394 = pneg %p71
        %p395 = pneg %p68
        %p396 = pneg %p92
        %p397 = pneg %p89
        %p398 = pneg %p113
        %p399 = pneg %p110
        %p400 = pneg %p134
        %p401 = pneg %p131
        %p402 = pneg %p155
        %p403 = pneg %p152
        %p404 = pneg %p176
        %p405 = pneg %p173
        %p406 = pneg %p197
        %p407 = pneg %p194
        %p408 = pneg %p223
        %p409 = pneg %p220
        %s410 = smul.u32 8, %s29
        %p411 = scmp.lt.s32.totalorder %s410, 15
        %s412 = scalar_select %p411, %s410, 15
        %s413 = scalar_lea.vmem %s8, %s412
        %p414 = pneg %p249
        %p415 = pneg %p246
        %s416 = smul.u32 8, %s29
        %p417 = scmp.lt.s32.totalorder %s416, 15
        %s418 = scalar_select %p417, %s416, 15
        %s419 = smul.addr %s418, 3
        %s420 = smul.addr %s419, 8
        %s421 = scalar_lea.vmem %s9, %s420
        %p422 = pneg %p275
        %p423 = pneg %p272
        %s424 = sand.u32 %s262, 1
        %s425 = scalar_lea.sflag [#allocation4], %s424
        %s426 = sand.u32 %s262, 1
        %s427 = smul.addr %s426, 192
        %s428 = scalar_lea.vmem [#allocation8], %s427
        %s429 = smul.u32 8, %s29
        %s430 = smul.u32 8, %s29
        %p431 = scmp.lt.s32.totalorder %s430, 15
        %s432 = scalar_select %p431, %s430, 15
        %s433 = scalar_lea.vmem %s8, %s432
        %s434 = smul.u32 8, %s29
        %s435 = smul.u32 8, %s29
        %p436 = scmp.lt.s32.totalorder %s435, 15
        %s437 = scalar_select %p436, %s435, 15
        %s438 = smul.addr %s437, 3
        %s439 = smul.addr %s438, 8
        %s440 = scalar_lea.vmem %s9, %s439
        %s441 = smul.u32 8, %s29
        %s442 = smul.u32 8, %s29
        %v443 = vld [vmem:[%s371] sm:$0xff]
        %v444 = vld [vmem:[%s371 + $0x8] sm:$0xff]
        %v445 = vld [vmem:[%s371 + $0x10] sm:$0xff]
        %v446 = vld [vmem:[%s371 + $0x18] sm:$0xff]
        %v447 = vld [vmem:[%s371 + $0x20] sm:$0xff]
        %v448 = vld [vmem:[%s371 + $0x28] sm:$0xff]
        %v449 = vld [vmem:[%s371 + $0x30] sm:$0xff]
        %v450 = vld [vmem:[%s371 + $0x38] sm:$0xff]
        %v451 = vld [vmem:[%s371 + $0x40] sm:$0xff]
        %v452 = vld [vmem:[%s371 + $0x48] sm:$0xff]
        %v453 = vld [vmem:[%s371 + $0x50] sm:$0xff]
        %v454 = vld [vmem:[%s371 + $0x58] sm:$0xff]
        %v455 = vld [vmem:[%s371 + $0x60] sm:$0xff]
        %v456 = vld [vmem:[%s371 + $0x68] sm:$0xff]
        %v457 = vld [vmem:[%s371 + $0x70] sm:$0xff]
        %v458 = vld [vmem:[%s371 + $0x78] sm:$0xff]
        %v459 = vld [vmem:[%s371 + $0x80] sm:$0xff]
        %v460 = vld [vmem:[%s371 + $0x88] sm:$0xff]
        %v461 = vld [vmem:[%s371 + $0x90] sm:$0xff]
        %v462 = vld [vmem:[%s371 + $0x98] sm:$0xff]
        %v463 = vld [vmem:[%s371 + $0xa0] sm:$0xff]
        %v464 = vld [vmem:[%s371 + $0xa8] sm:$0xff]
        %v465 = vld [vmem:[%s371 + $0xb0] sm:$0xff]
        %v466 = vld [vmem:[%s371 + $0xb8] sm:$0xff]
        %v467 = vld [vmem:[%s2] sm:$0xff]
        %v468 = vld [vmem:[%s2 + $0x8] sm:$0xff]
        %v469 = vld [vmem:[%s2 + $0x10] sm:$0xff]
        %v470 = vld [vmem:[%s2 + $0x18] sm:$0xff]
        %v471 = vld [vmem:[%s2 + $0x20] sm:$0xff]
        %v472 = vld [vmem:[%s2 + $0x28] sm:$0xff]
        %v473 = vld [vmem:[%s2 + $0x30] sm:$0xff]
        %v474 = vld [vmem:[%s2 + $0x38] sm:$0xff]
        %v475 = vld [vmem:[%s3] sm:$0x1]
        %v477 = vperm.slane %v475, 0
        %vm479 = vcmask 523264
        %v481 = vsel %vm479, %v443, 0
        %v484 = vsel %vm479, %v444, 0
        %v487 = vsel %vm479, %v445, 0
        %v490 = vsel %vm479, %v446, 0
        %v493 = vsel %vm479, %v447, 0
        %v496 = vsel %vm479, %v448, 0
        %v499 = vsel %vm479, %v449, 0
        %v502 = vsel %vm479, %v450, 0
        %v505 = vsel %vm479, %v451, 0
        %v508 = vsel %vm479, %v452, 0
        %v511 = vsel %vm479, %v453, 0
        %v514 = vsel %vm479, %v454, 0
        %v517 = vsel %vm479, %v455, 0
        %v520 = vsel %vm479, %v456, 0
        %v523 = vsel %vm479, %v457, 0
        %v526 = vsel %vm479, %v458, 0
        %v529 = vsel %vm479, %v459, 0
        %v532 = vsel %vm479, %v460, 0
        %v535 = vsel %vm479, %v461, 0
        %v538 = vsel %vm479, %v462, 0
        %v541 = vsel %vm479, %v463, 0
        %v544 = vsel %vm479, %v464, 0
        %v547 = vsel %vm479, %v465, 0
        %v550 = vsel %vm479, %v466, 0
        %552 = vmatpush.msra.mxu0 0.0
        %553 = vmatpush.msra.mxu0 0.0
        %554 = vmatpush.msra.mxu0 0.0
        %555 = vmatpush.msra.mxu0 0.0
        %556 = vmatpush.msra.mxu0 0.0
        %557 = vmatpush.msra.mxu0 0.0
        %558 = vmatpush.msra.mxu0 0.0
        %559 = vmatpush.msra.mxu0 0.0
        %560 = vmatpush.msra.mxu0 %v474
        %561 = vmatpush.msra.mxu0 %v473
        %562 = vmatpush.msra.mxu0 %v472
        %563 = vmatpush.msra.mxu0 %v471
        %564 = vmatpush.msra.mxu0 %v470
        %565 = vmatpush.msra.mxu0 %v469
        %566 = vmatpush.msra.mxu0 %v468
        %567 = vmatpush.msra.mxu0 %v467
        %568 = vmatmul.f32.gmra.mxu0 %v481
        %v569 = vpop.f32.mrf.mxu0
        %v570 = vadd.f32 %v477, %v569
        %571 = vmatmul.f32.gmra.mxu0 %v484
        %v572 = vpop.f32.mrf.mxu0
        %v573 = vadd.f32 %v477, %v572
        %574 = vmatmul.f32.gmra.mxu0 %v487
        %v575 = vpop.f32.mrf.mxu0
        %v576 = vadd.f32 %v477, %v575
        %577 = vmatmul.f32.gmra.mxu0 %v490
        %v578 = vpop.f32.mrf.mxu0
        %v579 = vadd.f32 %v477, %v578
        %580 = vmatmul.f32.gmra.mxu0 %v493
        %v581 = vpop.f32.mrf.mxu0
        %v582 = vadd.f32 %v477, %v581
        %583 = vmatmul.f32.gmra.mxu0 %v496
        %v584 = vpop.f32.mrf.mxu0
        %v585 = vadd.f32 %v477, %v584
        %586 = vmatmul.f32.gmra.mxu0 %v499
        %v587 = vpop.f32.mrf.mxu0
        %v588 = vadd.f32 %v477, %v587
        %589 = vmatmul.f32.gmra.mxu0 %v502
        %v590 = vpop.f32.mrf.mxu0
        %v591 = vadd.f32 %v477, %v590
        %592 = vmatmul.f32.gmra.mxu0 %v505
        %v593 = vpop.f32.mrf.mxu0
        %v594 = vadd.f32 %v477, %v593
        %595 = vmatmul.f32.gmra.mxu0 %v508
        %v596 = vpop.f32.mrf.mxu0
        %v597 = vadd.f32 %v477, %v596
        %598 = vmatmul.f32.gmra.mxu0 %v511
        %v599 = vpop.f32.mrf.mxu0
        %v600 = vadd.f32 %v477, %v599
        %601 = vmatmul.f32.gmra.mxu0 %v514
        %v602 = vpop.f32.mrf.mxu0
        %v603 = vadd.f32 %v477, %v602
        %604 = vmatmul.f32.gmra.mxu0 %v517
        %v605 = vpop.f32.mrf.mxu0
        %v606 = vadd.f32 %v477, %v605
        %607 = vmatmul.f32.gmra.mxu0 %v520
        %v608 = vpop.f32.mrf.mxu0
        %v609 = vadd.f32 %v477, %v608
        %610 = vmatmul.f32.gmra.mxu0 %v523
        %v611 = vpop.f32.mrf.mxu0
        %v612 = vadd.f32 %v477, %v611
        %613 = vmatmul.f32.gmra.mxu0 %v526
        %v614 = vpop.f32.mrf.mxu0
        %v615 = vadd.f32 %v477, %v614
        %616 = vmatmul.f32.gmra.mxu0 %v529
        %v617 = vpop.f32.mrf.mxu0
        %v618 = vadd.f32 %v477, %v617
        %619 = vmatmul.f32.gmra.mxu0 %v532
        %v620 = vpop.f32.mrf.mxu0
        %v621 = vadd.f32 %v477, %v620
        %622 = vmatmul.f32.gmra.mxu0 %v535
        %v623 = vpop.f32.mrf.mxu0
        %v624 = vadd.f32 %v477, %v623
        %625 = vmatmul.f32.gmra.mxu0 %v538
        %v626 = vpop.f32.mrf.mxu0
        %v627 = vadd.f32 %v477, %v626
        %628 = vmatmul.f32.gmra.mxu0 %v541
        %v629 = vpop.f32.mrf.mxu0
        %v630 = vadd.f32 %v477, %v629
        %631 = vmatmul.f32.gmra.mxu0 %v544
        %v632 = vpop.f32.mrf.mxu0
        %v633 = vadd.f32 %v477, %v632
        %634 = vmatmul.f32.gmra.mxu0 %v547
        %v635 = vpop.f32.mrf.mxu0
        %v636 = vadd.f32 %v477, %v635
        %637 = vmatmul.f32.gmra.mxu0 %v550
        %v638 = vpop.f32.mrf.mxu0
        %v639 = vadd.f32 %v477, %v638
        %640 = vdwg.mxu0
        %vm641 = vcmp.gt.f32.partialorder %v570, 0.0
        %vm642 = vcmp.gt.f32.partialorder %v573, 0.0
        %vm643 = vcmp.gt.f32.partialorder %v576, 0.0
        %vm644 = vcmp.gt.f32.partialorder %v579, 0.0
        %vm645 = vcmp.gt.f32.partialorder %v582, 0.0
        %vm646 = vcmp.gt.f32.partialorder %v585, 0.0
        %vm647 = vcmp.gt.f32.partialorder %v588, 0.0
        %vm648 = vcmp.gt.f32.partialorder %v591, 0.0
        %vm649 = vcmp.gt.f32.partialorder %v594, 0.0
        %vm650 = vcmp.gt.f32.partialorder %v597, 0.0
        %vm651 = vcmp.gt.f32.partialorder %v600, 0.0
        %vm652 = vcmp.gt.f32.partialorder %v603, 0.0
        %vm653 = vcmp.gt.f32.partialorder %v606, 0.0
        %vm654 = vcmp.gt.f32.partialorder %v609, 0.0
        %vm655 = vcmp.gt.f32.partialorder %v612, 0.0
        %vm656 = vcmp.gt.f32.partialorder %v615, 0.0
        %vm657 = vcmp.gt.f32.partialorder %v618, 0.0
        %vm658 = vcmp.gt.f32.partialorder %v621, 0.0
        %vm659 = vcmp.gt.f32.partialorder %v624, 0.0
        %vm660 = vcmp.gt.f32.partialorder %v627, 0.0
        %vm661 = vcmp.gt.f32.partialorder %v630, 0.0
        %vm662 = vcmp.gt.f32.partialorder %v633, 0.0
        %vm663 = vcmp.gt.f32.partialorder %v636, 0.0
        %vm664 = vcmp.gt.f32.partialorder %v639, 0.0
        %v665 = vmin.f32 %v570, 0.0
        %v666 = vmin.f32 %v573, 0.0
        %v667 = vmin.f32 %v576, 0.0
        %v668 = vmin.f32 %v579, 0.0
        %v669 = vmin.f32 %v582, 0.0
        %v670 = vmin.f32 %v585, 0.0
        %v671 = vmin.f32 %v588, 0.0
        %v672 = vmin.f32 %v591, 0.0
        %v673 = vmin.f32 %v594, 0.0
        %v674 = vmin.f32 %v597, 0.0
        %v675 = vmin.f32 %v600, 0.0
        %v676 = vmin.f32 %v603, 0.0
        %v677 = vmin.f32 %v606, 0.0
        %v678 = vmin.f32 %v609, 0.0
        %v679 = vmin.f32 %v612, 0.0
        %v680 = vmin.f32 %v615, 0.0
        %v681 = vmin.f32 %v618, 0.0
        %v682 = vmin.f32 %v621, 0.0
        %v683 = vmin.f32 %v624, 0.0
        %v684 = vmin.f32 %v627, 0.0
        %v685 = vmin.f32 %v630, 0.0
        %v686 = vmin.f32 %v633, 0.0
        %v687 = vmin.f32 %v636, 0.0
        %v688 = vmin.f32 %v639, 0.0
        %v689 = vmul.f32 %v665, 1.442695
        %v690 = vpow.pop %v689
        %v691 = vmul.f32 %v666, 1.442695
        %v692 = vpow.pop %v691
        %v693 = vmul.f32 %v667, 1.442695
        %v694 = vpow.pop %v693
        %v695 = vmul.f32 %v668, 1.442695
        %v696 = vpow.pop %v695
        %v697 = vmul.f32 %v669, 1.442695
        %v698 = vpow.pop %v697
        %v699 = vmul.f32 %v670, 1.442695
        %v700 = vpow.pop %v699
        %v701 = vmul.f32 %v671, 1.442695
        %v702 = vpow.pop %v701
        %v703 = vmul.f32 %v672, 1.442695
        %v704 = vpow.pop %v703
        %v705 = vmul.f32 %v673, 1.442695
        %v706 = vpow.pop %v705
        %v707 = vmul.f32 %v674, 1.442695
        %v708 = vpow.pop %v707
        %v709 = vmul.f32 %v675, 1.442695
        %v710 = vpow.pop %v709
        %v711 = vmul.f32 %v676, 1.442695
        %v712 = vpow.pop %v711
        %v713 = vmul.f32 %v677, 1.442695
        %v714 = vpow.pop %v713
        %v715 = vmul.f32 %v678, 1.442695
        %v716 = vpow.pop %v715
        %v717 = vmul.f32 %v679, 1.442695
        %v718 = vpow.pop %v717
        %v719 = vmul.f32 %v680, 1.442695
        %v720 = vpow.pop %v719
        %v721 = vmul.f32 %v681, 1.442695
        %v722 = vpow.pop %v721
        %v723 = vmul.f32 %v682, 1.442695
        %v724 = vpow.pop %v723
        %v725 = vmul.f32 %v683, 1.442695
        %v726 = vpow.pop %v725
        %v727 = vmul.f32 %v684, 1.442695
        %v728 = vpow.pop %v727
        %v729 = vmul.f32 %v685, 1.442695
        %v730 = vpow.pop %v729
        %v731 = vmul.f32 %v686, 1.442695
        %v732 = vpow.pop %v731
        %v733 = vmul.f32 %v687, 1.442695
        %v734 = vpow.pop %v733
        %v735 = vmul.f32 %v688, 1.442695
        %v736 = vpow.pop %v735
        %v737 = vsub.f32 %v690, 1.0
        %v738 = vsub.f32 %v692, 1.0
        %v739 = vsub.f32 %v694, 1.0
        %v740 = vsub.f32 %v696, 1.0
        %v741 = vsub.f32 %v698, 1.0
        %v742 = vsub.f32 %v700, 1.0
        %v743 = vsub.f32 %v702, 1.0
        %v744 = vsub.f32 %v704, 1.0
        %v745 = vsub.f32 %v706, 1.0
        %v746 = vsub.f32 %v708, 1.0
        %v747 = vsub.f32 %v710, 1.0
        %v748 = vsub.f32 %v712, 1.0
        %v749 = vsub.f32 %v714, 1.0
        %v750 = vsub.f32 %v716, 1.0
        %v751 = vsub.f32 %v718, 1.0
        %v752 = vsub.f32 %v720, 1.0
        %v753 = vsub.f32 %v722, 1.0
        %v754 = vsub.f32 %v724, 1.0
        %v755 = vsub.f32 %v726, 1.0
        %v756 = vsub.f32 %v728, 1.0
        %v757 = vsub.f32 %v730, 1.0
        %v758 = vsub.f32 %v732, 1.0
        %v759 = vsub.f32 %v734, 1.0
        %v760 = vsub.f32 %v736, 1.0
        %v761 = vsel %vm641, %v570, %v737
        %v762 = vsel %vm642, %v573, %v738
        %v763 = vsel %vm643, %v576, %v739
        %v764 = vsel %vm644, %v579, %v740
        %v765 = vsel %vm645, %v582, %v741
        %v766 = vsel %vm646, %v585, %v742
        %v767 = vsel %vm647, %v588, %v743
        %v768 = vsel %vm648, %v591, %v744
        %v769 = vsel %vm649, %v594, %v745
        %v770 = vsel %vm650, %v597, %v746
        %v771 = vsel %vm651, %v600, %v747
        %v772 = vsel %vm652, %v603, %v748
        %v773 = vsel %vm653, %v606, %v749
        %v774 = vsel %vm654, %v609, %v750
        %v775 = vsel %vm655, %v612, %v751
        %v776 = vsel %vm656, %v615, %v752
        %v777 = vsel %vm657, %v618, %v753
        %v778 = vsel %vm658, %v621, %v754
        %v779 = vsel %vm659, %v624, %v755
        %v780 = vsel %vm660, %v627, %v756
        %v781 = vsel %vm661, %v630, %v757
        %v782 = vsel %vm662, %v633, %v758
        %v783 = vsel %vm663, %v636, %v759
        %v784 = vsel %vm664, %v639, %v760
        %v785 = vld [vmem:[%s4] sm:$0xff]
        %v786 = vld [vmem:[%s4 + $0x8] sm:$0xff]
        %v787 = vld [vmem:[%s4 + $0x10] sm:$0xff]
        %v788 = vld [vmem:[%s4 + $0x18] sm:$0xff]
        %v789 = vld [vmem:[%s4 + $0x20] sm:$0xff]
        %v790 = vld [vmem:[%s4 + $0x28] sm:$0xff]
        %v791 = vld [vmem:[%s4 + $0x30] sm:$0xff]
        %v792 = vld [vmem:[%s4 + $0x38] sm:$0xff]
        %vm793 = vcmask 261120
        %v795 = vsel %vm793, %v761, 0
        %v798 = vsel %vm793, %v762, 0
        %v801 = vsel %vm793, %v763, 0
        %v804 = vsel %vm793, %v764, 0
        %v807 = vsel %vm793, %v765, 0
        %v810 = vsel %vm793, %v766, 0
        %v813 = vsel %vm793, %v767, 0
        %v816 = vsel %vm793, %v768, 0
        %v819 = vsel %vm793, %v769, 0
        %v822 = vsel %vm793, %v770, 0
        %v825 = vsel %vm793, %v771, 0
        %v828 = vsel %vm793, %v772, 0
        %v831 = vsel %vm793, %v773, 0
        %v834 = vsel %vm793, %v774, 0
        %v837 = vsel %vm793, %v775, 0
        %v840 = vsel %vm793, %v776, 0
        %v843 = vsel %vm793, %v777, 0
        %v846 = vsel %vm793, %v778, 0
        %v849 = vsel %vm793, %v779, 0
        %v852 = vsel %vm793, %v780, 0
        %v855 = vsel %vm793, %v781, 0
        %v858 = vsel %vm793, %v782, 0
        %v861 = vsel %vm793, %v783, 0
        %v864 = vsel %vm793, %v784, 0
        %866 = vmatpush.msra.mxu0 0.0
        %867 = vmatpush.msra.mxu0 0.0
        %868 = vmatpush.msra.mxu0 0.0
        %869 = vmatpush.msra.mxu0 0.0
        %870 = vmatpush.msra.mxu0 0.0
        %871 = vmatpush.msra.mxu0 0.0
        %872 = vmatpush.msra.mxu0 0.0
        %873 = vmatpush.msra.mxu0 0.0
        %874 = vmatpush.msra.mxu0 0.0
        %875 = vmatpush.msra.mxu0 0.0
        %876 = vmatpush.msra.mxu0 0.0
        %877 = vmatpush.msra.mxu0 0.0
        %878 = vmatpush.msra.mxu0 %v791
        %879 = vmatpush.msra.mxu0 %v789
        %880 = vmatpush.msra.mxu0 %v787
        %881 = vmatpush.msra.mxu0 %v785
        %882 = vmatmul.f32.gmra.mxu0 %v795
        %v883 = vpop.f32.mrf.mxu0
        %v884 = vadd.f32 0.0, %v883
        %885 = vmatmul.f32.gmra.mxu0 %v798
        %v886 = vpop.f32.mrf.mxu0
        %v887 = vadd.f32 0.0, %v886
        %888 = vmatmul.f32.gmra.mxu0 %v801
        %v889 = vpop.f32.mrf.mxu0
        %v890 = vadd.f32 0.0, %v889
        %891 = vmatmul.f32.gmra.mxu0 %v804
        %v892 = vpop.f32.mrf.mxu0
        %v893 = vadd.f32 0.0, %v892
        %894 = vmatmul.f32.gmra.mxu0 %v807
        %v895 = vpop.f32.mrf.mxu0
        %v896 = vadd.f32 0.0, %v895
        %897 = vmatmul.f32.gmra.mxu0 %v810
        %v898 = vpop.f32.mrf.mxu0
        %v899 = vadd.f32 0.0, %v898
        %900 = vmatmul.f32.gmra.mxu0 %v813
        %v901 = vpop.f32.mrf.mxu0
        %v902 = vadd.f32 0.0, %v901
        %903 = vmatmul.f32.gmra.mxu0 %v816
        %v904 = vpop.f32.mrf.mxu0
        %v905 = vadd.f32 0.0, %v904
        %906 = vmatmul.f32.gmra.mxu0 %v819
        %v907 = vpop.f32.mrf.mxu0
        %v908 = vadd.f32 0.0, %v907
        %909 = vmatmul.f32.gmra.mxu0 %v822
        %v910 = vpop.f32.mrf.mxu0
        %v911 = vadd.f32 0.0, %v910
        %912 = vmatmul.f32.gmra.mxu0 %v825
        %v913 = vpop.f32.mrf.mxu0
        %v914 = vadd.f32 0.0, %v913
        %915 = vmatmul.f32.gmra.mxu0 %v828
        %v916 = vpop.f32.mrf.mxu0
        %v917 = vadd.f32 0.0, %v916
        %918 = vmatmul.f32.gmra.mxu0 %v831
        %v919 = vpop.f32.mrf.mxu0
        %v920 = vadd.f32 0.0, %v919
        %921 = vmatmul.f32.gmra.mxu0 %v834
        %v922 = vpop.f32.mrf.mxu0
        %v923 = vadd.f32 0.0, %v922
        %924 = vmatmul.f32.gmra.mxu0 %v837
        %v925 = vpop.f32.mrf.mxu0
        %v926 = vadd.f32 0.0, %v925
        %927 = vmatmul.f32.gmra.mxu0 %v840
        %v928 = vpop.f32.mrf.mxu0
        %v929 = vadd.f32 0.0, %v928
        %930 = vmatmul.f32.gmra.mxu0 %v843
        %v931 = vpop.f32.mrf.mxu0
        %v932 = vadd.f32 0.0, %v931
        %933 = vmatmul.f32.gmra.mxu0 %v846
        %v934 = vpop.f32.mrf.mxu0
        %v935 = vadd.f32 0.0, %v934
        %936 = vmatmul.f32.gmra.mxu0 %v849
        %v937 = vpop.f32.mrf.mxu0
        %v938 = vadd.f32 0.0, %v937
        %939 = vmatmul.f32.gmra.mxu0 %v852
        %v940 = vpop.f32.mrf.mxu0
        %v941 = vadd.f32 0.0, %v940
        %942 = vmatmul.f32.gmra.mxu0 %v855
        %v943 = vpop.f32.mrf.mxu0
        %v944 = vadd.f32 0.0, %v943
        %945 = vmatmul.f32.gmra.mxu0 %v858
        %v946 = vpop.f32.mrf.mxu0
        %v947 = vadd.f32 0.0, %v946
        %948 = vmatmul.f32.gmra.mxu0 %v861
        %v949 = vpop.f32.mrf.mxu0
        %v950 = vadd.f32 0.0, %v949
        %951 = vmatmul.f32.gmra.mxu0 %v864
        %v952 = vpop.f32.mrf.mxu0
        %v953 = vadd.f32 0.0, %v952
        %954 = vdwg.mxu0
        %955 = vmatpush.msra.mxu0 0.0
        %956 = vmatpush.msra.mxu0 0.0
        %957 = vmatpush.msra.mxu0 0.0
        %958 = vmatpush.msra.mxu0 0.0
        %959 = vmatpush.msra.mxu0 0.0
        %960 = vmatpush.msra.mxu0 0.0
        %961 = vmatpush.msra.mxu0 0.0
        %962 = vmatpush.msra.mxu0 0.0
        %963 = vmatpush.msra.mxu0 0.0
        %964 = vmatpush.msra.mxu0 0.0
        %965 = vmatpush.msra.mxu0 0.0
        %966 = vmatpush.msra.mxu0 0.0
        %967 = vmatpush.msra.mxu0 %v792
        %968 = vmatpush.msra.mxu0 %v790
        %969 = vmatpush.msra.mxu0 %v788
        %970 = vmatpush.msra.mxu0 %v786
        %971 = vmatmul.f32.gmra.mxu0 %v795
        %v972 = vpop.f32.mrf.mxu0
        %v973 = vadd.f32 0.0, %v972
        %974 = vmatmul.f32.gmra.mxu0 %v798
        %v975 = vpop.f32.mrf.mxu0
        %v976 = vadd.f32 0.0, %v975
        %977 = vmatmul.f32.gmra.mxu0 %v801
        %v978 = vpop.f32.mrf.mxu0
        %v979 = vadd.f32 0.0, %v978
        %980 = vmatmul.f32.gmra.mxu0 %v804
        %v981 = vpop.f32.mrf.mxu0
        %v982 = vadd.f32 0.0, %v981
        %983 = vmatmul.f32.gmra.mxu0 %v807
        %v984 = vpop.f32.mrf.mxu0
        %v985 = vadd.f32 0.0, %v984
        %986 = vmatmul.f32.gmra.mxu0 %v810
        %v987 = vpop.f32.mrf.mxu0
        %v988 = vadd.f32 0.0, %v987
        %989 = vmatmul.f32.gmra.mxu0 %v813
        %v990 = vpop.f32.mrf.mxu0
        %v991 = vadd.f32 0.0, %v990
        %992 = vmatmul.f32.gmra.mxu0 %v816
        %v993 = vpop.f32.mrf.mxu0
        %v994 = vadd.f32 0.0, %v993
        %995 = vmatmul.f32.gmra.mxu0 %v819
        %v996 = vpop.f32.mrf.mxu0
        %v997 = vadd.f32 0.0, %v996
        %998 = vmatmul.f32.gmra.mxu0 %v822
        %v999 = vpop.f32.mrf.mxu0
        %v1000 = vadd.f32 0.0, %v999
        %1001 = vmatmul.f32.gmra.mxu0 %v825
        %v1002 = vpop.f32.mrf.mxu0
        %v1003 = vadd.f32 0.0, %v1002
        %1004 = vmatmul.f32.gmra.mxu0 %v828
        %v1005 = vpop.f32.mrf.mxu0
        %v1006 = vadd.f32 0.0, %v1005
        %1007 = vmatmul.f32.gmra.mxu0 %v831
        %v1008 = vpop.f32.mrf.mxu0
        %v1009 = vadd.f32 0.0, %v1008
        %1010 = vmatmul.f32.gmra.mxu0 %v834
        %v1011 = vpop.f32.mrf.mxu0
        %v1012 = vadd.f32 0.0, %v1011
        %1013 = vmatmul.f32.gmra.mxu0 %v837
        %v1014 = vpop.f32.mrf.mxu0
        %v1015 = vadd.f32 0.0, %v1014
        %1016 = vmatmul.f32.gmra.mxu0 %v840
        %v1017 = vpop.f32.mrf.mxu0
        %v1018 = vadd.f32 0.0, %v1017
        %1019 = vmatmul.f32.gmra.mxu0 %v843
        %v1020 = vpop.f32.mrf.mxu0
        %v1021 = vadd.f32 0.0, %v1020
        %1022 = vmatmul.f32.gmra.mxu0 %v846
        %v1023 = vpop.f32.mrf.mxu0
        %v1024 = vadd.f32 0.0, %v1023
        %1025 = vmatmul.f32.gmra.mxu0 %v849
        %v1026 = vpop.f32.mrf.mxu0
        %v1027 = vadd.f32 0.0, %v1026
        %1028 = vmatmul.f32.gmra.mxu0 %v852
        %v1029 = vpop.f32.mrf.mxu0
        %v1030 = vadd.f32 0.0, %v1029
        %1031 = vmatmul.f32.gmra.mxu0 %v855
        %v1032 = vpop.f32.mrf.mxu0
        %v1033 = vadd.f32 0.0, %v1032
        %1034 = vmatmul.f32.gmra.mxu0 %v858
        %v1035 = vpop.f32.mrf.mxu0
        %v1036 = vadd.f32 0.0, %v1035
        %1037 = vmatmul.f32.gmra.mxu0 %v861
        %v1038 = vpop.f32.mrf.mxu0
        %v1039 = vadd.f32 0.0, %v1038
        %1040 = vmatmul.f32.gmra.mxu0 %v864
        %v1041 = vpop.f32.mrf.mxu0
        %v1042 = vadd.f32 0.0, %v1041
        %1043 = vdwg.mxu0
        %v1044 = vld [vmem:[#allocation5] sm:$0xff]
        %v1045 = vld [vmem:[#allocation5 + $0x8] sm:$0xff]
        %v1046 = vld [vmem:[#allocation5 + $0x10] sm:$0xff]
        %v1047 = vld [vmem:[#allocation5 + $0x18] sm:$0xff]
        %v1048 = vld [vmem:[#allocation5 + $0x20] sm:$0xff]
        %v1049 = vld [vmem:[#allocation5 + $0x28] sm:$0xff]
        %v1050 = vld [vmem:[#allocation5 + $0x30] sm:$0xff]
        %v1051 = vld [vmem:[#allocation5 + $0x38] sm:$0xff]
        %v1052 = vld [vmem:[#allocation5 + $0x40] sm:$0xff]
        %v1053 = vld [vmem:[#allocation5 + $0x48] sm:$0xff]
        %v1054 = vld [vmem:[#allocation5 + $0x50] sm:$0xff]
        %v1055 = vld [vmem:[#allocation5 + $0x58] sm:$0xff]
        %v1056 = vld [vmem:[#allocation5 + $0x60] sm:$0xff]
        %v1057 = vld [vmem:[#allocation5 + $0x68] sm:$0xff]
        %v1058 = vld [vmem:[#allocation5 + $0x70] sm:$0xff]
        %v1059 = vld [vmem:[#allocation5 + $0x78] sm:$0xff]
        %v1060 = vld [vmem:[#allocation5 + $0x80] sm:$0xff]
        %v1061 = vld [vmem:[#allocation5 + $0x88] sm:$0xff]
        %v1062 = vld [vmem:[#allocation5 + $0x90] sm:$0xff]
        %v1063 = vld [vmem:[#allocation5 + $0x98] sm:$0xff]
        %v1064 = vld [vmem:[#allocation5 + $0xa0] sm:$0xff]
        %v1065 = vld [vmem:[#allocation5 + $0xa8] sm:$0xff]
        %v1066 = vld [vmem:[#allocation5 + $0xb0] sm:$0xff]
        %v1067 = vld [vmem:[#allocation5 + $0xb8] sm:$0xff]
        %v1068 = vld [vmem:[#allocation5 + $0xc0] sm:$0xff]
        %v1069 = vld [vmem:[#allocation5 + $0xc8] sm:$0xff]
        %v1070 = vld [vmem:[#allocation5 + $0xd0] sm:$0xff]
        %v1071 = vld [vmem:[#allocation5 + $0xd8] sm:$0xff]
        %v1072 = vld [vmem:[#allocation5 + $0xe0] sm:$0xff]
        %v1073 = vld [vmem:[#allocation5 + $0xe8] sm:$0xff]
        %v1074 = vld [vmem:[#allocation5 + $0xf0] sm:$0xff]
        %v1075 = vld [vmem:[#allocation5 + $0xf8] sm:$0xff]
        %v1076 = vld [vmem:[#allocation5 + $0x100] sm:$0xff]
        %v1077 = vld [vmem:[#allocation5 + $0x108] sm:$0xff]
        %v1078 = vld [vmem:[#allocation5 + $0x110] sm:$0xff]
        %v1079 = vld [vmem:[#allocation5 + $0x118] sm:$0xff]
        %v1080 = vld [vmem:[#allocation5 + $0x120] sm:$0xff]
        %v1081 = vld [vmem:[#allocation5 + $0x128] sm:$0xff]
        %v1082 = vld [vmem:[#allocation5 + $0x130] sm:$0xff]
        %v1083 = vld [vmem:[#allocation5 + $0x138] sm:$0xff]
        %v1084 = vld [vmem:[#allocation5 + $0x140] sm:$0xff]
        %v1085 = vld [vmem:[#allocation5 + $0x148] sm:$0xff]
        %v1086 = vld [vmem:[#allocation5 + $0x150] sm:$0xff]
        %v1087 = vld [vmem:[#allocation5 + $0x158] sm:$0xff]
        %v1088 = vld [vmem:[#allocation5 + $0x160] sm:$0xff]
        %v1089 = vld [vmem:[#allocation5 + $0x168] sm:$0xff]
        %v1090 = vld [vmem:[#allocation5 + $0x170] sm:$0xff]
        %v1091 = vld [vmem:[#allocation5 + $0x178] sm:$0xff]
        %v1093 = vsel %vm479, %v1045, 0
        %v1096 = vsel %vm479, %v1047, 0
        %v1099 = vsel %vm479, %v1049, 0
        %v1102 = vsel %vm479, %v1051, 0
        %v1105 = vsel %vm479, %v1053, 0
        %v1108 = vsel %vm479, %v1055, 0
        %v1111 = vsel %vm479, %v1057, 0
        %v1114 = vsel %vm479, %v1059, 0
        %v1117 = vsel %vm479, %v1061, 0
        %v1120 = vsel %vm479, %v1063, 0
        %v1123 = vsel %vm479, %v1065, 0
        %v1126 = vsel %vm479, %v1067, 0
        %v1129 = vsel %vm479, %v1069, 0
        %v1132 = vsel %vm479, %v1071, 0
        %v1135 = vsel %vm479, %v1073, 0
        %v1138 = vsel %vm479, %v1075, 0
        %v1141 = vsel %vm479, %v1077, 0
        %v1144 = vsel %vm479, %v1079, 0
        %v1147 = vsel %vm479, %v1081, 0
        %v1150 = vsel %vm479, %v1083, 0
        %v1153 = vsel %vm479, %v1085, 0
        %v1156 = vsel %vm479, %v1087, 0
        %v1159 = vsel %vm479, %v1089, 0
        %v1162 = vsel %vm479, %v1091, 0
        %1164 = vmatpush.msra.mxu0 %v929
        %1165 = vmatpush.msra.mxu0 %v926
        %1166 = vmatpush.msra.mxu0 %v923
        %1167 = vmatpush.msra.mxu0 %v920
        %1168 = vmatpush.msra.mxu0 %v917
        %1169 = vmatpush.msra.mxu0 %v914
        %1170 = vmatpush.msra.mxu0 %v911
        %1171 = vmatpush.msra.mxu0 %v908
        %1172 = vmatpush.msra.mxu0 %v905
        %1173 = vmatpush.msra.mxu0 %v902
        %1174 = vmatpush.msra.mxu0 %v899
        %1175 = vmatpush.msra.mxu0 %v896
        %1176 = vmatpush.msra.mxu0 %v893
        %1177 = vmatpush.msra.mxu0 %v890
        %1178 = vmatpush.msra.mxu0 %v887
        %1179 = vmatpush.msra.mxu0 %v884
        %1180 = vmatmul.f32.gmra.mxu0 %v1044
        %v1181 = vpop.f32.mrf.mxu0
        %v1182 = vadd.f32 0.0, %v1181
        %1183 = vmatmul.f32.gmra.mxu0 %v1046
        %v1184 = vpop.f32.mrf.mxu0
        %v1185 = vadd.f32 0.0, %v1184
        %1186 = vmatmul.f32.gmra.mxu0 %v1048
        %v1187 = vpop.f32.mrf.mxu0
        %v1188 = vadd.f32 0.0, %v1187
        %1189 = vmatmul.f32.gmra.mxu0 %v1050
        %v1190 = vpop.f32.mrf.mxu0
        %v1191 = vadd.f32 0.0, %v1190
        %1192 = vmatmul.f32.gmra.mxu0 %v1052
        %v1193 = vpop.f32.mrf.mxu0
        %v1194 = vadd.f32 0.0, %v1193
        %1195 = vmatmul.f32.gmra.mxu0 %v1054
        %v1196 = vpop.f32.mrf.mxu0
        %v1197 = vadd.f32 0.0, %v1196
        %1198 = vmatmul.f32.gmra.mxu0 %v1056
        %v1199 = vpop.f32.mrf.mxu0
        %v1200 = vadd.f32 0.0, %v1199
        %1201 = vmatmul.f32.gmra.mxu0 %v1058
        %v1202 = vpop.f32.mrf.mxu0
        %v1203 = vadd.f32 0.0, %v1202
        %1204 = vmatmul.f32.gmra.mxu0 %v1060
        %v1205 = vpop.f32.mrf.mxu0
        %v1206 = vadd.f32 0.0, %v1205
        %1207 = vmatmul.f32.gmra.mxu0 %v1062
        %v1208 = vpop.f32.mrf.mxu0
        %v1209 = vadd.f32 0.0, %v1208
        %1210 = vmatmul.f32.gmra.mxu0 %v1064
        %v1211 = vpop.f32.mrf.mxu0
        %v1212 = vadd.f32 0.0, %v1211
        %1213 = vmatmul.f32.gmra.mxu0 %v1066
        %v1214 = vpop.f32.mrf.mxu0
        %v1215 = vadd.f32 0.0, %v1214
        %1216 = vmatmul.f32.gmra.mxu0 %v1068
        %v1217 = vpop.f32.mrf.mxu0
        %v1218 = vadd.f32 0.0, %v1217
        %1219 = vmatmul.f32.gmra.mxu0 %v1070
        %v1220 = vpop.f32.mrf.mxu0
        %v1221 = vadd.f32 0.0, %v1220
        %1222 = vmatmul.f32.gmra.mxu0 %v1072
        %v1223 = vpop.f32.mrf.mxu0
        %v1224 = vadd.f32 0.0, %v1223
        %1225 = vmatmul.f32.gmra.mxu0 %v1074
        %v1226 = vpop.f32.mrf.mxu0
        %v1227 = vadd.f32 0.0, %v1226
        %1228 = vmatmul.f32.gmra.mxu0 %v1076
        %v1229 = vpop.f32.mrf.mxu0
        %v1230 = vadd.f32 0.0, %v1229
        %1231 = vmatmul.f32.gmra.mxu0 %v1078
        %v1232 = vpop.f32.mrf.mxu0
        %v1233 = vadd.f32 0.0, %v1232
        %1234 = vmatmul.f32.gmra.mxu0 %v1080
        %v1235 = vpop.f32.mrf.mxu0
        %v1236 = vadd.f32 0.0, %v1235
        %1237 = vmatmul.f32.gmra.mxu0 %v1082
        %v1238 = vpop.f32.mrf.mxu0
        %v1239 = vadd.f32 0.0, %v1238
        %1240 = vmatmul.f32.gmra.mxu0 %v1084
        %v1241 = vpop.f32.mrf.mxu0
        %v1242 = vadd.f32 0.0, %v1241
        %1243 = vmatmul.f32.gmra.mxu0 %v1086
        %v1244 = vpop.f32.mrf.mxu0
        %v1245 = vadd.f32 0.0, %v1244
        %1246 = vmatmul.f32.gmra.mxu0 %v1088
        %v1247 = vpop.f32.mrf.mxu0
        %v1248 = vadd.f32 0.0, %v1247
        %1249 = vmatmul.f32.gmra.mxu0 %v1090
        %v1250 = vpop.f32.mrf.mxu0
        %v1251 = vadd.f32 0.0, %v1250
        %1252 = vdwg.mxu0
        %1253 = vmatpush.msra.mxu0 0.0
        %1254 = vmatpush.msra.mxu0 0.0
        %1255 = vmatpush.msra.mxu0 0.0
        %1256 = vmatpush.msra.mxu0 0.0
        %1257 = vmatpush.msra.mxu0 0.0
        %1258 = vmatpush.msra.mxu0 0.0
        %1259 = vmatpush.msra.mxu0 0.0
        %1260 = vmatpush.msra.mxu0 0.0
        %1261 = vmatpush.msra.mxu0 %v953
        %1262 = vmatpush.msra.mxu0 %v950
        %1263 = vmatpush.msra.mxu0 %v947
        %1264 = vmatpush.msra.mxu0 %v944
        %1265 = vmatpush.msra.mxu0 %v941
        %1266 = vmatpush.msra.mxu0 %v938
        %1267 = vmatpush.msra.mxu0 %v935
        %1268 = vmatpush.msra.mxu0 %v932
        %1269 = vmatmul.f32.gmra.mxu0 %v1093
        %v1270 = vpop.f32.mrf.mxu0
        %v1271 = vadd.f32 %v1182, %v1270
        %1272 = vmatmul.f32.gmra.mxu0 %v1096
        %v1273 = vpop.f32.mrf.mxu0
        %v1274 = vadd.f32 %v1185, %v1273
        %1275 = vmatmul.f32.gmra.mxu0 %v1099
        %v1276 = vpop.f32.mrf.mxu0
        %v1277 = vadd.f32 %v1188, %v1276
        %1278 = vmatmul.f32.gmra.mxu0 %v1102
        %v1279 = vpop.f32.mrf.mxu0
        %v1280 = vadd.f32 %v1191, %v1279
        %1281 = vmatmul.f32.gmra.mxu0 %v1105
        %v1282 = vpop.f32.mrf.mxu0
        %v1283 = vadd.f32 %v1194, %v1282
        %1284 = vmatmul.f32.gmra.mxu0 %v1108
        %v1285 = vpop.f32.mrf.mxu0
        %v1286 = vadd.f32 %v1197, %v1285
        %1287 = vmatmul.f32.gmra.mxu0 %v1111
        %v1288 = vpop.f32.mrf.mxu0
        %v1289 = vadd.f32 %v1200, %v1288
        %1290 = vmatmul.f32.gmra.mxu0 %v1114
        %v1291 = vpop.f32.mrf.mxu0
        %v1292 = vadd.f32 %v1203, %v1291
        %1293 = vmatmul.f32.gmra.mxu0 %v1117
        %v1294 = vpop.f32.mrf.mxu0
        %v1295 = vadd.f32 %v1206, %v1294
        %1296 = vmatmul.f32.gmra.mxu0 %v1120
        %v1297 = vpop.f32.mrf.mxu0
        %v1298 = vadd.f32 %v1209, %v1297
        %1299 = vmatmul.f32.gmra.mxu0 %v1123
        %v1300 = vpop.f32.mrf.mxu0
        %v1301 = vadd.f32 %v1212, %v1300
        %1302 = vmatmul.f32.gmra.mxu0 %v1126
        %v1303 = vpop.f32.mrf.mxu0
        %v1304 = vadd.f32 %v1215, %v1303
        %1305 = vmatmul.f32.gmra.mxu0 %v1129
        %v1306 = vpop.f32.mrf.mxu0
        %v1307 = vadd.f32 %v1218, %v1306
        %1308 = vmatmul.f32.gmra.mxu0 %v1132
        %v1309 = vpop.f32.mrf.mxu0
        %v1310 = vadd.f32 %v1221, %v1309
        %1311 = vmatmul.f32.gmra.mxu0 %v1135
        %v1312 = vpop.f32.mrf.mxu0
        %v1313 = vadd.f32 %v1224, %v1312
        %1314 = vmatmul.f32.gmra.mxu0 %v1138
        %v1315 = vpop.f32.mrf.mxu0
        %v1316 = vadd.f32 %v1227, %v1315
        %1317 = vmatmul.f32.gmra.mxu0 %v1141
        %v1318 = vpop.f32.mrf.mxu0
        %v1319 = vadd.f32 %v1230, %v1318
        %1320 = vmatmul.f32.gmra.mxu0 %v1144
        %v1321 = vpop.f32.mrf.mxu0
        %v1322 = vadd.f32 %v1233, %v1321
        %1323 = vmatmul.f32.gmra.mxu0 %v1147
        %v1324 = vpop.f32.mrf.mxu0
        %v1325 = vadd.f32 %v1236, %v1324
        %1326 = vmatmul.f32.gmra.mxu0 %v1150
        %v1327 = vpop.f32.mrf.mxu0
        %v1328 = vadd.f32 %v1239, %v1327
        %1329 = vmatmul.f32.gmra.mxu0 %v1153
        %v1330 = vpop.f32.mrf.mxu0
        %v1331 = vadd.f32 %v1242, %v1330
        %1332 = vmatmul.f32.gmra.mxu0 %v1156
        %v1333 = vpop.f32.mrf.mxu0
        %v1334 = vadd.f32 %v1245, %v1333
        %1335 = vmatmul.f32.gmra.mxu0 %v1159
        %v1336 = vpop.f32.mrf.mxu0
        %v1337 = vadd.f32 %v1248, %v1336
        %1338 = vmatmul.f32.gmra.mxu0 %v1162
        %v1339 = vpop.f32.mrf.mxu0
        %v1340 = vadd.f32 %v1251, %v1339
        %1341 = vdwg.mxu0
        %1366 = vrot.lane.b32.xlu0 %v1271, 96
        %v1367 = vpop.permute.xlu0 %1366
        %1368 = vrot.lane.b32.xlu0 %v1274, 96
        %v1369 = vpop.permute.xlu0 %1368
        %1370 = vrot.lane.b32.xlu0 %v1277, 96
        %v1371 = vpop.permute.xlu0 %1370
        %1372 = vrot.lane.b32.xlu0 %v1280, 96
        %v1373 = vpop.permute.xlu0 %1372
        %1374 = vrot.lane.b32.xlu0 %v1283, 96
        %v1375 = vpop.permute.xlu0 %1374
        %1376 = vrot.lane.b32.xlu0 %v1286, 96
        %v1377 = vpop.permute.xlu0 %1376
        %1378 = vrot.lane.b32.xlu0 %v1289, 96
        %v1379 = vpop.permute.xlu0 %1378
        %1380 = vrot.lane.b32.xlu0 %v1292, 96
        %v1381 = vpop.permute.xlu0 %1380
        %1382 = vrot.lane.b32.xlu0 %v1295, 96
        %v1383 = vpop.permute.xlu0 %1382
        %1384 = vrot.lane.b32.xlu0 %v1298, 96
        %v1385 = vpop.permute.xlu0 %1384
        %1386 = vrot.lane.b32.xlu0 %v1301, 96
        %v1387 = vpop.permute.xlu0 %1386
        %1388 = vrot.lane.b32.xlu0 %v1304, 96
        %v1389 = vpop.permute.xlu0 %1388
        %1390 = vrot.lane.b32.xlu0 %v1307, 96
        %v1391 = vpop.permute.xlu0 %1390
        %1392 = vrot.lane.b32.xlu0 %v1310, 96
        %v1393 = vpop.permute.xlu0 %1392
        %1394 = vrot.lane.b32.xlu0 %v1313, 96
        %v1395 = vpop.permute.xlu0 %1394
        %1396 = vrot.lane.b32.xlu0 %v1316, 96
        %v1397 = vpop.permute.xlu0 %1396
        %1398 = vrot.lane.b32.xlu0 %v1319, 96
        %v1399 = vpop.permute.xlu0 %1398
        %1400 = vrot.lane.b32.xlu0 %v1322, 96
        %v1401 = vpop.permute.xlu0 %1400
        %1402 = vrot.lane.b32.xlu0 %v1325, 96
        %v1403 = vpop.permute.xlu0 %1402
        %1404 = vrot.lane.b32.xlu0 %v1328, 96
        %v1405 = vpop.permute.xlu0 %1404
        %1406 = vrot.lane.b32.xlu0 %v1331, 96
        %v1407 = vpop.permute.xlu0 %1406
        %1408 = vrot.lane.b32.xlu0 %v1334, 96
        %v1409 = vpop.permute.xlu0 %1408
        %1410 = vrot.lane.b32.xlu0 %v1337, 96
        %v1411 = vpop.permute.xlu0 %1410
        %1412 = vrot.lane.b32.xlu0 %v1340, 96
        %v1413 = vpop.permute.xlu0 %1412
        %1438 = vmatpush.msra.mxu0 %v1397
        %1439 = vmatpush.msra.mxu0 %v1395
        %1440 = vmatpush.msra.mxu0 %v1393
        %1441 = vmatpush.msra.mxu0 %v1391
        %1442 = vmatpush.msra.mxu0 %v1389
        %1443 = vmatpush.msra.mxu0 %v1387
        %1444 = vmatpush.msra.mxu0 %v1385
        %1445 = vmatpush.msra.mxu0 %v1383
        %1446 = vmatpush.msra.mxu0 %v1381
        %1447 = vmatpush.msra.mxu0 %v1379
        %1448 = vmatpush.msra.mxu0 %v1377
        %1449 = vmatpush.msra.mxu0 %v1375
        %1450 = vmatpush.msra.mxu0 %v1373
        %1451 = vmatpush.msra.mxu0 %v1371
        %1452 = vmatpush.msra.mxu0 %v1369
        %1453 = vmatpush.msra.mxu0 %v1367
        %1454 = vmatmul.f32.gmra.mxu0 %v1044
        %v1455 = vpop.f32.mrf.mxu0
        %v1456 = vadd.f32 0.0, %v1455
        %1457 = vmatmul.f32.gmra.mxu0 %v1046
        %v1458 = vpop.f32.mrf.mxu0
        %v1459 = vadd.f32 0.0, %v1458
        %1460 = vmatmul.f32.gmra.mxu0 %v1048
        %v1461 = vpop.f32.mrf.mxu0
        %v1462 = vadd.f32 0.0, %v1461
        %1463 = vmatmul.f32.gmra.mxu0 %v1050
        %v1464 = vpop.f32.mrf.mxu0
        %v1465 = vadd.f32 0.0, %v1464
        %1466 = vmatmul.f32.gmra.mxu0 %v1052
        %v1467 = vpop.f32.mrf.mxu0
        %v1468 = vadd.f32 0.0, %v1467
        %1469 = vmatmul.f32.gmra.mxu0 %v1054
        %v1470 = vpop.f32.mrf.mxu0
        %v1471 = vadd.f32 0.0, %v1470
        %1472 = vmatmul.f32.gmra.mxu0 %v1056
        %v1473 = vpop.f32.mrf.mxu0
        %v1474 = vadd.f32 0.0, %v1473
        %1475 = vmatmul.f32.gmra.mxu0 %v1058
        %v1476 = vpop.f32.mrf.mxu0
        %v1477 = vadd.f32 0.0, %v1476
        %1478 = vmatmul.f32.gmra.mxu0 %v1060
        %v1479 = vpop.f32.mrf.mxu0
        %v1480 = vadd.f32 0.0, %v1479
        %1481 = vmatmul.f32.gmra.mxu0 %v1062
        %v1482 = vpop.f32.mrf.mxu0
        %v1483 = vadd.f32 0.0, %v1482
        %1484 = vmatmul.f32.gmra.mxu0 %v1064
        %v1485 = vpop.f32.mrf.mxu0
        %v1486 = vadd.f32 0.0, %v1485
        %1487 = vmatmul.f32.gmra.mxu0 %v1066
        %v1488 = vpop.f32.mrf.mxu0
        %v1489 = vadd.f32 0.0, %v1488
        %1490 = vmatmul.f32.gmra.mxu0 %v1068
        %v1491 = vpop.f32.mrf.mxu0
        %v1492 = vadd.f32 0.0, %v1491
        %1493 = vmatmul.f32.gmra.mxu0 %v1070
        %v1494 = vpop.f32.mrf.mxu0
        %v1495 = vadd.f32 0.0, %v1494
        %1496 = vmatmul.f32.gmra.mxu0 %v1072
        %v1497 = vpop.f32.mrf.mxu0
        %v1498 = vadd.f32 0.0, %v1497
        %1499 = vmatmul.f32.gmra.mxu0 %v1074
        %v1500 = vpop.f32.mrf.mxu0
        %v1501 = vadd.f32 0.0, %v1500
        %1502 = vmatmul.f32.gmra.mxu0 %v1076
        %v1503 = vpop.f32.mrf.mxu0
        %v1504 = vadd.f32 0.0, %v1503
        %1505 = vmatmul.f32.gmra.mxu0 %v1078
        %v1506 = vpop.f32.mrf.mxu0
        %v1507 = vadd.f32 0.0, %v1506
        %1508 = vmatmul.f32.gmra.mxu0 %v1080
        %v1509 = vpop.f32.mrf.mxu0
        %v1510 = vadd.f32 0.0, %v1509
        %1511 = vmatmul.f32.gmra.mxu0 %v1082
        %v1512 = vpop.f32.mrf.mxu0
        %v1513 = vadd.f32 0.0, %v1512
        %1514 = vmatmul.f32.gmra.mxu0 %v1084
        %v1515 = vpop.f32.mrf.mxu0
        %v1516 = vadd.f32 0.0, %v1515
        %1517 = vmatmul.f32.gmra.mxu0 %v1086
        %v1518 = vpop.f32.mrf.mxu0
        %v1519 = vadd.f32 0.0, %v1518
        %1520 = vmatmul.f32.gmra.mxu0 %v1088
        %v1521 = vpop.f32.mrf.mxu0
        %v1522 = vadd.f32 0.0, %v1521
        %1523 = vmatmul.f32.gmra.mxu0 %v1090
        %v1524 = vpop.f32.mrf.mxu0
        %v1525 = vadd.f32 0.0, %v1524
        %1526 = vdwg.mxu0
        %1527 = vmatpush.msra.mxu0 0.0
        %1528 = vmatpush.msra.mxu0 0.0
        %1529 = vmatpush.msra.mxu0 0.0
        %1530 = vmatpush.msra.mxu0 0.0
        %1531 = vmatpush.msra.mxu0 0.0
        %1532 = vmatpush.msra.mxu0 0.0
        %1533 = vmatpush.msra.mxu0 0.0
        %1534 = vmatpush.msra.mxu0 0.0
        %1535 = vmatpush.msra.mxu0 %v1413
        %1536 = vmatpush.msra.mxu0 %v1411
        %1537 = vmatpush.msra.mxu0 %v1409
        %1538 = vmatpush.msra.mxu0 %v1407
        %1539 = vmatpush.msra.mxu0 %v1405
        %1540 = vmatpush.msra.mxu0 %v1403
        %1541 = vmatpush.msra.mxu0 %v1401
        %1542 = vmatpush.msra.mxu0 %v1399
        %1543 = vmatmul.f32.gmra.mxu0 %v1093
        %v1544 = vpop.f32.mrf.mxu0
        %v1545 = vadd.f32 %v1456, %v1544
        %1546 = vmatmul.f32.gmra.mxu0 %v1096
        %v1547 = vpop.f32.mrf.mxu0
        %v1548 = vadd.f32 %v1459, %v1547
        %1549 = vmatmul.f32.gmra.mxu0 %v1099
        %v1550 = vpop.f32.mrf.mxu0
        %v1551 = vadd.f32 %v1462, %v1550
        %1552 = vmatmul.f32.gmra.mxu0 %v1102
        %v1553 = vpop.f32.mrf.mxu0
        %v1554 = vadd.f32 %v1465, %v1553
        %1555 = vmatmul.f32.gmra.mxu0 %v1105
        %v1556 = vpop.f32.mrf.mxu0
        %v1557 = vadd.f32 %v1468, %v1556
        %1558 = vmatmul.f32.gmra.mxu0 %v1108
        %v1559 = vpop.f32.mrf.mxu0
        %v1560 = vadd.f32 %v1471, %v1559
        %1561 = vmatmul.f32.gmra.mxu0 %v1111
        %v1562 = vpop.f32.mrf.mxu0
        %v1563 = vadd.f32 %v1474, %v1562
        %1564 = vmatmul.f32.gmra.mxu0 %v1114
        %v1565 = vpop.f32.mrf.mxu0
        %v1566 = vadd.f32 %v1477, %v1565
        %1567 = vmatmul.f32.gmra.mxu0 %v1117
        %v1568 = vpop.f32.mrf.mxu0
        %v1569 = vadd.f32 %v1480, %v1568
        %1570 = vmatmul.f32.gmra.mxu0 %v1120
        %v1571 = vpop.f32.mrf.mxu0
        %v1572 = vadd.f32 %v1483, %v1571
        %1573 = vmatmul.f32.gmra.mxu0 %v1123
        %v1574 = vpop.f32.mrf.mxu0
        %v1575 = vadd.f32 %v1486, %v1574
        %1576 = vmatmul.f32.gmra.mxu0 %v1126
        %v1577 = vpop.f32.mrf.mxu0
        %v1578 = vadd.f32 %v1489, %v1577
        %1579 = vmatmul.f32.gmra.mxu0 %v1129
        %v1580 = vpop.f32.mrf.mxu0
        %v1581 = vadd.f32 %v1492, %v1580
        %1582 = vmatmul.f32.gmra.mxu0 %v1132
        %v1583 = vpop.f32.mrf.mxu0
        %v1584 = vadd.f32 %v1495, %v1583
        %1585 = vmatmul.f32.gmra.mxu0 %v1135
        %v1586 = vpop.f32.mrf.mxu0
        %v1587 = vadd.f32 %v1498, %v1586
        %1588 = vmatmul.f32.gmra.mxu0 %v1138
        %v1589 = vpop.f32.mrf.mxu0
        %v1590 = vadd.f32 %v1501, %v1589
        %1591 = vmatmul.f32.gmra.mxu0 %v1141
        %v1592 = vpop.f32.mrf.mxu0
        %v1593 = vadd.f32 %v1504, %v1592
        %1594 = vmatmul.f32.gmra.mxu0 %v1144
        %v1595 = vpop.f32.mrf.mxu0
        %v1596 = vadd.f32 %v1507, %v1595
        %1597 = vmatmul.f32.gmra.mxu0 %v1147
        %v1598 = vpop.f32.mrf.mxu0
        %v1599 = vadd.f32 %v1510, %v1598
        %1600 = vmatmul.f32.gmra.mxu0 %v1150
        %v1601 = vpop.f32.mrf.mxu0
        %v1602 = vadd.f32 %v1513, %v1601
        %1603 = vmatmul.f32.gmra.mxu0 %v1153
        %v1604 = vpop.f32.mrf.mxu0
        %v1605 = vadd.f32 %v1516, %v1604
        %1606 = vmatmul.f32.gmra.mxu0 %v1156
        %v1607 = vpop.f32.mrf.mxu0
        %v1608 = vadd.f32 %v1519, %v1607
        %1609 = vmatmul.f32.gmra.mxu0 %v1159
        %v1610 = vpop.f32.mrf.mxu0
        %v1611 = vadd.f32 %v1522, %v1610
        %1612 = vmatmul.f32.gmra.mxu0 %v1162
        %v1613 = vpop.f32.mrf.mxu0
        %v1614 = vadd.f32 %v1525, %v1613
        %1615 = vdwg.mxu0
        %v1616 = vadd.f32 %v884, %v1367
        %v1617 = vadd.f32 %v887, %v1369
        %v1618 = vadd.f32 %v890, %v1371
        %v1619 = vadd.f32 %v893, %v1373
        %v1620 = vadd.f32 %v896, %v1375
        %v1621 = vadd.f32 %v899, %v1377
        %v1622 = vadd.f32 %v902, %v1379
        %v1623 = vadd.f32 %v905, %v1381
        %v1624 = vadd.f32 %v908, %v1383
        %v1625 = vadd.f32 %v911, %v1385
        %v1626 = vadd.f32 %v914, %v1387
        %v1627 = vadd.f32 %v917, %v1389
        %v1628 = vadd.f32 %v920, %v1391
        %v1629 = vadd.f32 %v923, %v1393
        %v1630 = vadd.f32 %v926, %v1395
        %v1631 = vadd.f32 %v929, %v1397
        %v1632 = vadd.f32 %v932, %v1399
        %v1633 = vadd.f32 %v935, %v1401
        %v1634 = vadd.f32 %v938, %v1403
        %v1635 = vadd.f32 %v941, %v1405
        %v1636 = vadd.f32 %v944, %v1407
        %v1637 = vadd.f32 %v947, %v1409
        %v1638 = vadd.f32 %v950, %v1411
        %v1639 = vadd.f32 %v953, %v1413
        %1664 = vrot.lane.b32.xlu0 %v1545, 96
        %v1665 = vpop.permute.xlu0 %1664
        %1666 = vrot.lane.b32.xlu0 %v1548, 96
        %v1667 = vpop.permute.xlu0 %1666
        %1668 = vrot.lane.b32.xlu0 %v1551, 96
        %v1669 = vpop.permute.xlu0 %1668
        %1670 = vrot.lane.b32.xlu0 %v1554, 96
        %v1671 = vpop.permute.xlu0 %1670
        %1672 = vrot.lane.b32.xlu0 %v1557, 96
        %v1673 = vpop.permute.xlu0 %1672
        %1674 = vrot.lane.b32.xlu0 %v1560, 96
        %v1675 = vpop.permute.xlu0 %1674
        %1676 = vrot.lane.b32.xlu0 %v1563, 96
        %v1677 = vpop.permute.xlu0 %1676
        %1678 = vrot.lane.b32.xlu0 %v1566, 96
        %v1679 = vpop.permute.xlu0 %1678
        %1680 = vrot.lane.b32.xlu0 %v1569, 96
        %v1681 = vpop.permute.xlu0 %1680
        %1682 = vrot.lane.b32.xlu0 %v1572, 96
        %v1683 = vpop.permute.xlu0 %1682
        %1684 = vrot.lane.b32.xlu0 %v1575, 96
        %v1685 = vpop.permute.xlu0 %1684
        %1686 = vrot.lane.b32.xlu0 %v1578, 96
        %v1687 = vpop.permute.xlu0 %1686
        %1688 = vrot.lane.b32.xlu0 %v1581, 96
        %v1689 = vpop.permute.xlu0 %1688
        %1690 = vrot.lane.b32.xlu0 %v1584, 96
        %v1691 = vpop.permute.xlu0 %1690
        %1692 = vrot.lane.b32.xlu0 %v1587, 96
        %v1693 = vpop.permute.xlu0 %1692
        %1694 = vrot.lane.b32.xlu0 %v1590, 96
        %v1695 = vpop.permute.xlu0 %1694
        %1696 = vrot.lane.b32.xlu0 %v1593, 96
        %v1697 = vpop.permute.xlu0 %1696
        %1698 = vrot.lane.b32.xlu0 %v1596, 96
        %v1699 = vpop.permute.xlu0 %1698
        %1700 = vrot.lane.b32.xlu0 %v1599, 96
        %v1701 = vpop.permute.xlu0 %1700
        %1702 = vrot.lane.b32.xlu0 %v1602, 96
        %v1703 = vpop.permute.xlu0 %1702
        %1704 = vrot.lane.b32.xlu0 %v1605, 96
        %v1705 = vpop.permute.xlu0 %1704
        %1706 = vrot.lane.b32.xlu0 %v1608, 96
        %v1707 = vpop.permute.xlu0 %1706
        %1708 = vrot.lane.b32.xlu0 %v1611, 96
        %v1709 = vpop.permute.xlu0 %1708
        %1710 = vrot.lane.b32.xlu0 %v1614, 96
        %v1711 = vpop.permute.xlu0 %1710
        %v1736 = vadd.f32 %v1616, %v1665
        %v1737 = vadd.f32 %v1617, %v1667
        %v1738 = vadd.f32 %v1618, %v1669
        %v1739 = vadd.f32 %v1619, %v1671
        %v1740 = vadd.f32 %v1620, %v1673
        %v1741 = vadd.f32 %v1621, %v1675
        %v1742 = vadd.f32 %v1622, %v1677
        %v1743 = vadd.f32 %v1623, %v1679
        %v1744 = vadd.f32 %v1624, %v1681
        %v1745 = vadd.f32 %v1625, %v1683
        %v1746 = vadd.f32 %v1626, %v1685
        %v1747 = vadd.f32 %v1627, %v1687
        %v1748 = vadd.f32 %v1628, %v1689
        %v1749 = vadd.f32 %v1629, %v1691
        %v1750 = vadd.f32 %v1630, %v1693
        %v1751 = vadd.f32 %v1631, %v1695
        %v1752 = vadd.f32 %v1632, %v1697
        %v1753 = vadd.f32 %v1633, %v1699
        %v1754 = vadd.f32 %v1634, %v1701
        %v1755 = vadd.f32 %v1635, %v1703
        %v1756 = vadd.f32 %v1636, %v1705
        %v1757 = vadd.f32 %v1637, %v1707
        %v1758 = vadd.f32 %v1638, %v1709
        %v1759 = vadd.f32 %v1639, %v1711
        %v1760 = vmax.f32 %v1736, 0.0
        %v1761 = vmax.f32 %v1737, 0.0
        %v1762 = vmax.f32 %v1738, 0.0
        %v1763 = vmax.f32 %v1739, 0.0
        %v1764 = vmax.f32 %v1740, 0.0
        %v1765 = vmax.f32 %v1741, 0.0
        %v1766 = vmax.f32 %v1742, 0.0
        %v1767 = vmax.f32 %v1743, 0.0
        %v1768 = vmax.f32 %v1744, 0.0
        %v1769 = vmax.f32 %v1745, 0.0
        %v1770 = vmax.f32 %v1746, 0.0
        %v1771 = vmax.f32 %v1747, 0.0
        %v1772 = vmax.f32 %v1748, 0.0
        %v1773 = vmax.f32 %v1749, 0.0
        %v1774 = vmax.f32 %v1750, 0.0
        %v1775 = vmax.f32 %v1751, 0.0
        %v1776 = vmax.f32 %v1752, 0.0
        %v1777 = vmax.f32 %v1753, 0.0
        %v1778 = vmax.f32 %v1754, 0.0
        %v1779 = vmax.f32 %v1755, 0.0
        %v1780 = vmax.f32 %v1756, 0.0
        %v1781 = vmax.f32 %v1757, 0.0
        %v1782 = vmax.f32 %v1758, 0.0
        %v1783 = vmax.f32 %v1759, 0.0
        %v1785 = vsel %vm793, %v973, 0
        %v1788 = vsel %vm793, %v976, 0
        %v1791 = vsel %vm793, %v979, 0
        %1793 = vmatpush.xpose.msra.mxu0 0.0
        %1794 = vmatpush.xpose.msra.mxu0 0.0
        %1795 = vmatpush.xpose.msra.mxu0 0.0
        %1796 = vmatpush.xpose.msra.mxu0 0.0
        %1797 = vmatpush.xpose.msra.mxu0 0.0
        %1798 = vmatpush.xpose.msra.mxu0 0.0
        %1799 = vmatpush.xpose.msra.mxu0 0.0
        %1800 = vmatpush.xpose.msra.mxu0 0.0
        %1801 = vmatpush.xpose.msra.mxu0 0.0
        %1802 = vmatpush.xpose.msra.mxu0 0.0
        %1803 = vmatpush.xpose.msra.mxu0 0.0
        %1804 = vmatpush.xpose.msra.mxu0 0.0
        %1805 = vmatpush.xpose.msra.mxu0 0.0
        %1806 = vmatpush.xpose.msra.mxu0 %v801
        %1807 = vmatpush.xpose.msra.mxu0 %v798
        %1808 = vmatpush.xpose.msra.mxu0 %v795
        %1809 = vmatmul.f32.gmra.mxu0 %v1785
        %v1810 = vpop.f32.mrf.mxu0
        %v1811 = vadd.f32 0.0, %v1810
        %1812 = vmatmul.f32.gmra.mxu0 %v1788
        %v1813 = vpop.f32.mrf.mxu0
        %v1814 = vadd.f32 0.0, %v1813
        %1815 = vmatmul.f32.gmra.mxu0 %v1791
        %v1816 = vpop.f32.mrf.mxu0
        %v1817 = vadd.f32 0.0, %v1816
        %1818 = vdwg.mxu0
        %v1820 = vsel %vm793, %v982, 0
        %v1823 = vsel %vm793, %v985, 0
        %v1826 = vsel %vm793, %v988, 0
        %1828 = vmatpush.xpose.msra.mxu0 0.0
        %1829 = vmatpush.xpose.msra.mxu0 0.0
        %1830 = vmatpush.xpose.msra.mxu0 0.0
        %1831 = vmatpush.xpose.msra.mxu0 0.0
        %1832 = vmatpush.xpose.msra.mxu0 0.0
        %1833 = vmatpush.xpose.msra.mxu0 0.0
        %1834 = vmatpush.xpose.msra.mxu0 0.0
        %1835 = vmatpush.xpose.msra.mxu0 0.0
        %1836 = vmatpush.xpose.msra.mxu0 0.0
        %1837 = vmatpush.xpose.msra.mxu0 0.0
        %1838 = vmatpush.xpose.msra.mxu0 0.0
        %1839 = vmatpush.xpose.msra.mxu0 0.0
        %1840 = vmatpush.xpose.msra.mxu0 0.0
        %1841 = vmatpush.xpose.msra.mxu0 %v810
        %1842 = vmatpush.xpose.msra.mxu0 %v807
        %1843 = vmatpush.xpose.msra.mxu0 %v804
        %1844 = vmatmul.f32.gmra.mxu0 %v1820
        %v1845 = vpop.f32.mrf.mxu0
        %v1846 = vadd.f32 0.0, %v1845
        %1847 = vmatmul.f32.gmra.mxu0 %v1823
        %v1848 = vpop.f32.mrf.mxu0
        %v1849 = vadd.f32 0.0, %v1848
        %1850 = vmatmul.f32.gmra.mxu0 %v1826
        %v1851 = vpop.f32.mrf.mxu0
        %v1852 = vadd.f32 0.0, %v1851
        %1853 = vdwg.mxu0
        %v1855 = vsel %vm793, %v991, 0
        %v1858 = vsel %vm793, %v994, 0
        %v1861 = vsel %vm793, %v997, 0
        %1863 = vmatpush.xpose.msra.mxu0 0.0
        %1864 = vmatpush.xpose.msra.mxu0 0.0
        %1865 = vmatpush.xpose.msra.mxu0 0.0
        %1866 = vmatpush.xpose.msra.mxu0 0.0
        %1867 = vmatpush.xpose.msra.mxu0 0.0
        %1868 = vmatpush.xpose.msra.mxu0 0.0
        %1869 = vmatpush.xpose.msra.mxu0 0.0
        %1870 = vmatpush.xpose.msra.mxu0 0.0
        %1871 = vmatpush.xpose.msra.mxu0 0.0
        %1872 = vmatpush.xpose.msra.mxu0 0.0
        %1873 = vmatpush.xpose.msra.mxu0 0.0
        %1874 = vmatpush.xpose.msra.mxu0 0.0
        %1875 = vmatpush.xpose.msra.mxu0 0.0
        %1876 = vmatpush.xpose.msra.mxu0 %v819
        %1877 = vmatpush.xpose.msra.mxu0 %v816
        %1878 = vmatpush.xpose.msra.mxu0 %v813
        %1879 = vmatmul.f32.gmra.mxu0 %v1855
        %v1880 = vpop.f32.mrf.mxu0
        %v1881 = vadd.f32 0.0, %v1880
        %1882 = vmatmul.f32.gmra.mxu0 %v1858
        %v1883 = vpop.f32.mrf.mxu0
        %v1884 = vadd.f32 0.0, %v1883
        %1885 = vmatmul.f32.gmra.mxu0 %v1861
        %v1886 = vpop.f32.mrf.mxu0
        %v1887 = vadd.f32 0.0, %v1886
        %1888 = vdwg.mxu0
        %v1890 = vsel %vm793, %v1000, 0
        %v1893 = vsel %vm793, %v1003, 0
        %v1896 = vsel %vm793, %v1006, 0
        %1898 = vmatpush.xpose.msra.mxu0 0.0
        %1899 = vmatpush.xpose.msra.mxu0 0.0
        %1900 = vmatpush.xpose.msra.mxu0 0.0
        %1901 = vmatpush.xpose.msra.mxu0 0.0
        %1902 = vmatpush.xpose.msra.mxu0 0.0
        %1903 = vmatpush.xpose.msra.mxu0 0.0
        %1904 = vmatpush.xpose.msra.mxu0 0.0
        %1905 = vmatpush.xpose.msra.mxu0 0.0
        %1906 = vmatpush.xpose.msra.mxu0 0.0
        %1907 = vmatpush.xpose.msra.mxu0 0.0
        %1908 = vmatpush.xpose.msra.mxu0 0.0
        %1909 = vmatpush.xpose.msra.mxu0 0.0
        %1910 = vmatpush.xpose.msra.mxu0 0.0
        %1911 = vmatpush.xpose.msra.mxu0 %v828
        %1912 = vmatpush.xpose.msra.mxu0 %v825
        %1913 = vmatpush.xpose.msra.mxu0 %v822
        %1914 = vmatmul.f32.gmra.mxu0 %v1890
        %v1915 = vpop.f32.mrf.mxu0
        %v1916 = vadd.f32 0.0, %v1915
        %1917 = vmatmul.f32.gmra.mxu0 %v1893
        %v1918 = vpop.f32.mrf.mxu0
        %v1919 = vadd.f32 0.0, %v1918
        %1920 = vmatmul.f32.gmra.mxu0 %v1896
        %v1921 = vpop.f32.mrf.mxu0
        %v1922 = vadd.f32 0.0, %v1921
        %1923 = vdwg.mxu0
        %v1925 = vsel %vm793, %v1009, 0
        %v1928 = vsel %vm793, %v1012, 0
        %v1931 = vsel %vm793, %v1015, 0
        %1933 = vmatpush.xpose.msra.mxu0 0.0
        %1934 = vmatpush.xpose.msra.mxu0 0.0
        %1935 = vmatpush.xpose.msra.mxu0 0.0
        %1936 = vmatpush.xpose.msra.mxu0 0.0
        %1937 = vmatpush.xpose.msra.mxu0 0.0
        %1938 = vmatpush.xpose.msra.mxu0 0.0
        %1939 = vmatpush.xpose.msra.mxu0 0.0
        %1940 = vmatpush.xpose.msra.mxu0 0.0
        %1941 = vmatpush.xpose.msra.mxu0 0.0
        %1942 = vmatpush.xpose.msra.mxu0 0.0
        %1943 = vmatpush.xpose.msra.mxu0 0.0
        %1944 = vmatpush.xpose.msra.mxu0 0.0
        %1945 = vmatpush.xpose.msra.mxu0 0.0
        %1946 = vmatpush.xpose.msra.mxu0 %v837
        %1947 = vmatpush.xpose.msra.mxu0 %v834
        %1948 = vmatpush.xpose.msra.mxu0 %v831
        %1949 = vmatmul.f32.gmra.mxu0 %v1925
        %v1950 = vpop.f32.mrf.mxu0
        %v1951 = vadd.f32 0.0, %v1950
        %1952 = vmatmul.f32.gmra.mxu0 %v1928
        %v1953 = vpop.f32.mrf.mxu0
        %v1954 = vadd.f32 0.0, %v1953
        %1955 = vmatmul.f32.gmra.mxu0 %v1931
        %v1956 = vpop.f32.mrf.mxu0
        %v1957 = vadd.f32 0.0, %v1956
        %1958 = vdwg.mxu0
        %v1960 = vsel %vm793, %v1018, 0
        %v1963 = vsel %vm793, %v1021, 0
        %v1966 = vsel %vm793, %v1024, 0
        %1968 = vmatpush.xpose.msra.mxu0 0.0
        %1969 = vmatpush.xpose.msra.mxu0 0.0
        %1970 = vmatpush.xpose.msra.mxu0 0.0
        %1971 = vmatpush.xpose.msra.mxu0 0.0
        %1972 = vmatpush.xpose.msra.mxu0 0.0
        %1973 = vmatpush.xpose.msra.mxu0 0.0
        %1974 = vmatpush.xpose.msra.mxu0 0.0
        %1975 = vmatpush.xpose.msra.mxu0 0.0
        %1976 = vmatpush.xpose.msra.mxu0 0.0
        %1977 = vmatpush.xpose.msra.mxu0 0.0
        %1978 = vmatpush.xpose.msra.mxu0 0.0
        %1979 = vmatpush.xpose.msra.mxu0 0.0
        %1980 = vmatpush.xpose.msra.mxu0 0.0
        %1981 = vmatpush.xpose.msra.mxu0 %v846
        %1982 = vmatpush.xpose.msra.mxu0 %v843
        %1983 = vmatpush.xpose.msra.mxu0 %v840
        %1984 = vmatmul.f32.gmra.mxu0 %v1960
        %v1985 = vpop.f32.mrf.mxu0
        %v1986 = vadd.f32 0.0, %v1985
        %1987 = vmatmul.f32.gmra.mxu0 %v1963
        %v1988 = vpop.f32.mrf.mxu0
        %v1989 = vadd.f32 0.0, %v1988
        %1990 = vmatmul.f32.gmra.mxu0 %v1966
        %v1991 = vpop.f32.mrf.mxu0
        %v1992 = vadd.f32 0.0, %v1991
        %1993 = vdwg.mxu0
        %v1995 = vsel %vm793, %v1027, 0
        %v1998 = vsel %vm793, %v1030, 0
        %v2001 = vsel %vm793, %v1033, 0
        %2003 = vmatpush.xpose.msra.mxu0 0.0
        %2004 = vmatpush.xpose.msra.mxu0 0.0
        %2005 = vmatpush.xpose.msra.mxu0 0.0
        %2006 = vmatpush.xpose.msra.mxu0 0.0
        %2007 = vmatpush.xpose.msra.mxu0 0.0
        %2008 = vmatpush.xpose.msra.mxu0 0.0
        %2009 = vmatpush.xpose.msra.mxu0 0.0
        %2010 = vmatpush.xpose.msra.mxu0 0.0
        %2011 = vmatpush.xpose.msra.mxu0 0.0
        %2012 = vmatpush.xpose.msra.mxu0 0.0
        %2013 = vmatpush.xpose.msra.mxu0 0.0
        %2014 = vmatpush.xpose.msra.mxu0 0.0
        %2015 = vmatpush.xpose.msra.mxu0 0.0
        %2016 = vmatpush.xpose.msra.mxu0 %v855
        %2017 = vmatpush.xpose.msra.mxu0 %v852
        %2018 = vmatpush.xpose.msra.mxu0 %v849
        %2019 = vmatmul.f32.gmra.mxu0 %v1995
        %v2020 = vpop.f32.mrf.mxu0
        %v2021 = vadd.f32 0.0, %v2020
        %2022 = vmatmul.f32.gmra.mxu0 %v1998
        %v2023 = vpop.f32.mrf.mxu0
        %v2024 = vadd.f32 0.0, %v2023
        %2025 = vmatmul.f32.gmra.mxu0 %v2001
        %v2026 = vpop.f32.mrf.mxu0
        %v2027 = vadd.f32 0.0, %v2026
        %2028 = vdwg.mxu0
        %v2030 = vsel %vm793, %v1036, 0
        %v2033 = vsel %vm793, %v1039, 0
        %v2036 = vsel %vm793, %v1042, 0
        %2038 = vmatpush.xpose.msra.mxu0 0.0
        %2039 = vmatpush.xpose.msra.mxu0 0.0
        %2040 = vmatpush.xpose.msra.mxu0 0.0
        %2041 = vmatpush.xpose.msra.mxu0 0.0
        %2042 = vmatpush.xpose.msra.mxu0 0.0
        %2043 = vmatpush.xpose.msra.mxu0 0.0
        %2044 = vmatpush.xpose.msra.mxu0 0.0
        %2045 = vmatpush.xpose.msra.mxu0 0.0
        %2046 = vmatpush.xpose.msra.mxu0 0.0
        %2047 = vmatpush.xpose.msra.mxu0 0.0
        %2048 = vmatpush.xpose.msra.mxu0 0.0
        %2049 = vmatpush.xpose.msra.mxu0 0.0
        %2050 = vmatpush.xpose.msra.mxu0 0.0
        %2051 = vmatpush.xpose.msra.mxu0 %v864
        %2052 = vmatpush.xpose.msra.mxu0 %v861
        %2053 = vmatpush.xpose.msra.mxu0 %v858
        %2054 = vmatmul.f32.gmra.mxu0 %v2030
        %v2055 = vpop.f32.mrf.mxu0
        %v2056 = vadd.f32 0.0, %v2055
        %2057 = vmatmul.f32.gmra.mxu0 %v2033
        %v2058 = vpop.f32.mrf.mxu0
        %v2059 = vadd.f32 0.0, %v2058
        %2060 = vmatmul.f32.gmra.mxu0 %v2036
        %v2061 = vpop.f32.mrf.mxu0
        %v2062 = vadd.f32 0.0, %v2061
        %2063 = vdwg.mxu0
        %v2064 = vlaneseq
        %v2065 = vand.u32 %v2064, 127
        %vm2066 = vcmp.lt.s32.totalorder %v2065, 19
        %v2067 = vsel %vm2066, 1, 0
        %vm2068 = vcmp.eq.s32.totalorder %v2067, 1
        %v2069 = vsel %vm2068, %v1811, -1e+30
        %v2070 = vsel %vm2068, %v1814, -1e+30
        %v2071 = vsel %vm2068, %v1817, -1e+30
        %v2072 = vsel %vm2068, %v1846, -1e+30
        %v2073 = vsel %vm2068, %v1849, -1e+30
        %v2074 = vsel %vm2068, %v1852, -1e+30
        %v2075 = vsel %vm2068, %v1881, -1e+30
        %v2076 = vsel %vm2068, %v1884, -1e+30
        %v2077 = vsel %vm2068, %v1887, -1e+30
        %v2078 = vsel %vm2068, %v1916, -1e+30
        %v2079 = vsel %vm2068, %v1919, -1e+30
        %v2080 = vsel %vm2068, %v1922, -1e+30
        %v2081 = vsel %vm2068, %v1951, -1e+30
        %v2082 = vsel %vm2068, %v1954, -1e+30
        %v2083 = vsel %vm2068, %v1957, -1e+30
        %v2084 = vsel %vm2068, %v1986, -1e+30
        %v2085 = vsel %vm2068, %v1989, -1e+30
        %v2086 = vsel %vm2068, %v1992, -1e+30
        %v2087 = vsel %vm2068, %v2021, -1e+30
        %v2088 = vsel %vm2068, %v2024, -1e+30
        %v2089 = vsel %vm2068, %v2027, -1e+30
        %v2090 = vsel %vm2068, %v2056, -1e+30
        %v2091 = vsel %vm2068, %v2059, -1e+30
        %v2092 = vsel %vm2068, %v2062, -1e+30
        %vm2093 = vcmask 195584
        %v2094 = vsel %vm2093, %v2069, -inf
        %2095 = vmax.xlane.f32.xlu0 %v2094
        %v2096 = vpop.xlane.xlu0 %2095
        %v2097 = vsel %vm2093, %v2070, -inf
        %2098 = vmax.xlane.f32.xlu0 %v2097
        %v2099 = vpop.xlane.xlu0 %2098
        %v2100 = vsel %vm2093, %v2071, -inf
        %2101 = vmax.xlane.f32.xlu0 %v2100
        %v2102 = vpop.xlane.xlu0 %2101
        %v2103 = vsel %vm2093, %v2072, -inf
        %2104 = vmax.xlane.f32.xlu0 %v2103
        %v2105 = vpop.xlane.xlu0 %2104
        %v2106 = vsel %vm2093, %v2073, -inf
        %2107 = vmax.xlane.f32.xlu0 %v2106
        %v2108 = vpop.xlane.xlu0 %2107
        %v2109 = vsel %vm2093, %v2074, -inf
        %2110 = vmax.xlane.f32.xlu0 %v2109
        %v2111 = vpop.xlane.xlu0 %2110
        %v2112 = vsel %vm2093, %v2075, -inf
        %2113 = vmax.xlane.f32.xlu0 %v2112
        %v2114 = vpop.xlane.xlu0 %2113
        %v2115 = vsel %vm2093, %v2076, -inf
        %2116 = vmax.xlane.f32.xlu0 %v2115
        %v2117 = vpop.xlane.xlu0 %2116
        %v2118 = vsel %vm2093, %v2077, -inf
        %2119 = vmax.xlane.f32.xlu0 %v2118
        %v2120 = vpop.xlane.xlu0 %2119
        %v2121 = vsel %vm2093, %v2078, -inf
        %2122 = vmax.xlane.f32.xlu0 %v2121
        %v2123 = vpop.xlane.xlu0 %2122
        %v2124 = vsel %vm2093, %v2079, -inf
        %2125 = vmax.xlane.f32.xlu0 %v2124
        %v2126 = vpop.xlane.xlu0 %2125
        %v2127 = vsel %vm2093, %v2080, -inf
        %2128 = vmax.xlane.f32.xlu0 %v2127
        %v2129 = vpop.xlane.xlu0 %2128
        %v2130 = vsel %vm2093, %v2081, -inf
        %2131 = vmax.xlane.f32.xlu0 %v2130
        %v2132 = vpop.xlane.xlu0 %2131
        %v2133 = vsel %vm2093, %v2082, -inf
        %2134 = vmax.xlane.f32.xlu0 %v2133
        %v2135 = vpop.xlane.xlu0 %2134
        %v2136 = vsel %vm2093, %v2083, -inf
        %2137 = vmax.xlane.f32.xlu0 %v2136
        %v2138 = vpop.xlane.xlu0 %2137
        %v2139 = vsel %vm2093, %v2084, -inf
        %2140 = vmax.xlane.f32.xlu0 %v2139
        %v2141 = vpop.xlane.xlu0 %2140
        %v2142 = vsel %vm2093, %v2085, -inf
        %2143 = vmax.xlane.f32.xlu0 %v2142
        %v2144 = vpop.xlane.xlu0 %2143
        %v2145 = vsel %vm2093, %v2086, -inf
        %2146 = vmax.xlane.f32.xlu0 %v2145
        %v2147 = vpop.xlane.xlu0 %2146
        %v2148 = vsel %vm2093, %v2087, -inf
        %2149 = vmax.xlane.f32.xlu0 %v2148
        %v2150 = vpop.xlane.xlu0 %2149
        %v2151 = vsel %vm2093, %v2088, -inf
        %2152 = vmax.xlane.f32.xlu0 %v2151
        %v2153 = vpop.xlane.xlu0 %2152
        %v2154 = vsel %vm2093, %v2089, -inf
        %2155 = vmax.xlane.f32.xlu0 %v2154
        %v2156 = vpop.xlane.xlu0 %2155
        %v2157 = vsel %vm2093, %v2090, -inf
        %2158 = vmax.xlane.f32.xlu0 %v2157
        %v2159 = vpop.xlane.xlu0 %2158
        %v2160 = vsel %vm2093, %v2091, -inf
        %2161 = vmax.xlane.f32.xlu0 %v2160
        %v2162 = vpop.xlane.xlu0 %2161
        %v2163 = vsel %vm2093, %v2092, -inf
        %2164 = vmax.xlane.f32.xlu0 %v2163
        %v2165 = vpop.xlane.xlu0 %2164
        %v2166 = vsub.f32 %v2069, %v2096
        %v2167 = vsub.f32 %v2070, %v2099
        %v2168 = vsub.f32 %v2071, %v2102
        %v2169 = vsub.f32 %v2072, %v2105
        %v2170 = vsub.f32 %v2073, %v2108
        %v2171 = vsub.f32 %v2074, %v2111
        %v2172 = vsub.f32 %v2075, %v2114
        %v2173 = vsub.f32 %v2076, %v2117
        %v2174 = vsub.f32 %v2077, %v2120
        %v2175 = vsub.f32 %v2078, %v2123
        %v2176 = vsub.f32 %v2079, %v2126
        %v2177 = vsub.f32 %v2080, %v2129
        %v2178 = vsub.f32 %v2081, %v2132
        %v2179 = vsub.f32 %v2082, %v2135
        %v2180 = vsub.f32 %v2083, %v2138
        %v2181 = vsub.f32 %v2084, %v2141
        %v2182 = vsub.f32 %v2085, %v2144
        %v2183 = vsub.f32 %v2086, %v2147
        %v2184 = vsub.f32 %v2087, %v2150
        %v2185 = vsub.f32 %v2088, %v2153
        %v2186 = vsub.f32 %v2089, %v2156
        %v2187 = vsub.f32 %v2090, %v2159
        %v2188 = vsub.f32 %v2091, %v2162
        %v2189 = vsub.f32 %v2092, %v2165
        %v2190 = vmul.f32 %v2166, 1.442695
        %v2191 = vpow.pop %v2190
        %v2192 = vmul.f32 %v2167, 1.442695
        %v2193 = vpow.pop %v2192
        %v2194 = vmul.f32 %v2168, 1.442695
        %v2195 = vpow.pop %v2194
        %v2196 = vmul.f32 %v2169, 1.442695
        %v2197 = vpow.pop %v2196
        %v2198 = vmul.f32 %v2170, 1.442695
        %v2199 = vpow.pop %v2198
        %v2200 = vmul.f32 %v2171, 1.442695
        %v2201 = vpow.pop %v2200
        %v2202 = vmul.f32 %v2172, 1.442695
        %v2203 = vpow.pop %v2202
        %v2204 = vmul.f32 %v2173, 1.442695
        %v2205 = vpow.pop %v2204
        %v2206 = vmul.f32 %v2174, 1.442695
        %v2207 = vpow.pop %v2206
        %v2208 = vmul.f32 %v2175, 1.442695
        %v2209 = vpow.pop %v2208
        %v2210 = vmul.f32 %v2176, 1.442695
        %v2211 = vpow.pop %v2210
        %v2212 = vmul.f32 %v2177, 1.442695
        %v2213 = vpow.pop %v2212
        %v2214 = vmul.f32 %v2178, 1.442695
        %v2215 = vpow.pop %v2214
        %v2216 = vmul.f32 %v2179, 1.442695
        %v2217 = vpow.pop %v2216
        %v2218 = vmul.f32 %v2180, 1.442695
        %v2219 = vpow.pop %v2218
        %v2220 = vmul.f32 %v2181, 1.442695
        %v2221 = vpow.pop %v2220
        %v2222 = vmul.f32 %v2182, 1.442695
        %v2223 = vpow.pop %v2222
        %v2224 = vmul.f32 %v2183, 1.442695
        %v2225 = vpow.pop %v2224
        %v2226 = vmul.f32 %v2184, 1.442695
        %v2227 = vpow.pop %v2226
        %v2228 = vmul.f32 %v2185, 1.442695
        %v2229 = vpow.pop %v2228
        %v2230 = vmul.f32 %v2186, 1.442695
        %v2231 = vpow.pop %v2230
        %v2232 = vmul.f32 %v2187, 1.442695
        %v2233 = vpow.pop %v2232
        %v2234 = vmul.f32 %v2188, 1.442695
        %v2235 = vpow.pop %v2234
        %v2236 = vmul.f32 %v2189, 1.442695
        %v2237 = vpow.pop %v2236
        %v2238 = vsel %vm2093, %v2191, 0.0
        %2239 = vadd.xlane.f32.xlu0 %v2238
        %v2240 = vpop.xlane.xlu0 %2239
        %v2241 = vsel %vm2093, %v2193, 0.0
        %2242 = vadd.xlane.f32.xlu0 %v2241
        %v2243 = vpop.xlane.xlu0 %2242
        %v2244 = vsel %vm2093, %v2195, 0.0
        %2245 = vadd.xlane.f32.xlu0 %v2244
        %v2246 = vpop.xlane.xlu0 %2245
        %v2247 = vsel %vm2093, %v2197, 0.0
        %2248 = vadd.xlane.f32.xlu0 %v2247
        %v2249 = vpop.xlane.xlu0 %2248
        %v2250 = vsel %vm2093, %v2199, 0.0
        %2251 = vadd.xlane.f32.xlu0 %v2250
        %v2252 = vpop.xlane.xlu0 %2251
        %v2253 = vsel %vm2093, %v2201, 0.0
        %2254 = vadd.xlane.f32.xlu0 %v2253
        %v2255 = vpop.xlane.xlu0 %2254
        %v2256 = vsel %vm2093, %v2203, 0.0
        %2257 = vadd.xlane.f32.xlu0 %v2256
        %v2258 = vpop.xlane.xlu0 %2257
        %v2259 = vsel %vm2093, %v2205, 0.0
        %2260 = vadd.xlane.f32.xlu0 %v2259
        %v2261 = vpop.xlane.xlu0 %2260
        %v2262 = vsel %vm2093, %v2207, 0.0
        %2263 = vadd.xlane.f32.xlu0 %v2262
        %v2264 = vpop.xlane.xlu0 %2263
        %v2265 = vsel %vm2093, %v2209, 0.0
        %2266 = vadd.xlane.f32.xlu0 %v2265
        %v2267 = vpop.xlane.xlu0 %2266
        %v2268 = vsel %vm2093, %v2211, 0.0
        %2269 = vadd.xlane.f32.xlu0 %v2268
        %v2270 = vpop.xlane.xlu0 %2269
        %v2271 = vsel %vm2093, %v2213, 0.0
        %2272 = vadd.xlane.f32.xlu0 %v2271
        %v2273 = vpop.xlane.xlu0 %2272
        %v2274 = vsel %vm2093, %v2215, 0.0
        %2275 = vadd.xlane.f32.xlu0 %v2274
        %v2276 = vpop.xlane.xlu0 %2275
        %v2277 = vsel %vm2093, %v2217, 0.0
        %2278 = vadd.xlane.f32.xlu0 %v2277
        %v2279 = vpop.xlane.xlu0 %2278
        %v2280 = vsel %vm2093, %v2219, 0.0
        %2281 = vadd.xlane.f32.xlu0 %v2280
        %v2282 = vpop.xlane.xlu0 %2281
        %v2283 = vsel %vm2093, %v2221, 0.0
        %2284 = vadd.xlane.f32.xlu0 %v2283
        %v2285 = vpop.xlane.xlu0 %2284
        %v2286 = vsel %vm2093, %v2223, 0.0
        %2287 = vadd.xlane.f32.xlu0 %v2286
        %v2288 = vpop.xlane.xlu0 %2287
        %v2289 = vsel %vm2093, %v2225, 0.0
        %2290 = vadd.xlane.f32.xlu0 %v2289
        %v2291 = vpop.xlane.xlu0 %2290
        %v2292 = vsel %vm2093, %v2227, 0.0
        %2293 = vadd.xlane.f32.xlu0 %v2292
        %v2294 = vpop.xlane.xlu0 %2293
        %v2295 = vsel %vm2093, %v2229, 0.0
        %2296 = vadd.xlane.f32.xlu0 %v2295
        %v2297 = vpop.xlane.xlu0 %2296
        %v2298 = vsel %vm2093, %v2231, 0.0
        %2299 = vadd.xlane.f32.xlu0 %v2298
        %v2300 = vpop.xlane.xlu0 %2299
        %v2301 = vsel %vm2093, %v2233, 0.0
        %2302 = vadd.xlane.f32.xlu0 %v2301
        %v2303 = vpop.xlane.xlu0 %2302
        %v2304 = vsel %vm2093, %v2235, 0.0
        %2305 = vadd.xlane.f32.xlu0 %v2304
        %v2306 = vpop.xlane.xlu0 %2305
        %v2307 = vsel %vm2093, %v2237, 0.0
        %2308 = vadd.xlane.f32.xlu0 %v2307
        %v2309 = vpop.xlane.xlu0 %2308
        %v2310 = vrcp.pop %v2240
        %v2311 = vmul.f32 %v2240, %v2310
        %v2312 = vsub.f32 1.0, %v2311
        %v2313 = vmul.f32 %v2310, %v2312
        %v2314 = vadd.f32 %v2310, %v2313
        %vm2315 = vweird.f32 %v2240
        %vm2316 = vweird.f32 %v2310
        %vm2317 = vmor %vm2315, %vm2316
        %v2318 = vsel %vm2317, %v2310, %v2314
        %v2319 = vand.u32 2147483647, %v2240
        %vm2320 = vcmp.eq.f32.partialorder %v2319, 8.507059e+37
        %v2321 = vand.u32 %v2240, 2147483648
        %v2322 = vor.u32 1.1754944e-38, %v2321
        %v2323 = vsel %vm2320, %v2322, %v2318
        %v2324 = vmul.f32 %v2191, %v2323
        %v2325 = vrcp.pop %v2243
        %v2326 = vmul.f32 %v2243, %v2325
        %v2327 = vsub.f32 1.0, %v2326
        %v2328 = vmul.f32 %v2325, %v2327
        %v2329 = vadd.f32 %v2325, %v2328
        %vm2330 = vweird.f32 %v2243
        %vm2331 = vweird.f32 %v2325
        %vm2332 = vmor %vm2330, %vm2331
        %v2333 = vsel %vm2332, %v2325, %v2329
        %v2334 = vand.u32 2147483647, %v2243
        %vm2335 = vcmp.eq.f32.partialorder %v2334, 8.507059e+37
        %v2336 = vand.u32 %v2243, 2147483648
        %v2337 = vor.u32 1.1754944e-38, %v2336
        %v2338 = vsel %vm2335, %v2337, %v2333
        %v2339 = vmul.f32 %v2193, %v2338
        %v2340 = vrcp.pop %v2246
        %v2341 = vmul.f32 %v2246, %v2340
        %v2342 = vsub.f32 1.0, %v2341
        %v2343 = vmul.f32 %v2340, %v2342
        %v2344 = vadd.f32 %v2340, %v2343
        %vm2345 = vweird.f32 %v2246
        %vm2346 = vweird.f32 %v2340
        %vm2347 = vmor %vm2345, %vm2346
        %v2348 = vsel %vm2347, %v2340, %v2344
        %v2349 = vand.u32 2147483647, %v2246
        %vm2350 = vcmp.eq.f32.partialorder %v2349, 8.507059e+37
        %v2351 = vand.u32 %v2246, 2147483648
        %v2352 = vor.u32 1.1754944e-38, %v2351
        %v2353 = vsel %vm2350, %v2352, %v2348
        %v2354 = vmul.f32 %v2195, %v2353
        %v2355 = vrcp.pop %v2249
        %v2356 = vmul.f32 %v2249, %v2355
        %v2357 = vsub.f32 1.0, %v2356
        %v2358 = vmul.f32 %v2355, %v2357
        %v2359 = vadd.f32 %v2355, %v2358
        %vm2360 = vweird.f32 %v2249
        %vm2361 = vweird.f32 %v2355
        %vm2362 = vmor %vm2360, %vm2361
        %v2363 = vsel %vm2362, %v2355, %v2359
        %v2364 = vand.u32 2147483647, %v2249
        %vm2365 = vcmp.eq.f32.partialorder %v2364, 8.507059e+37
        %v2366 = vand.u32 %v2249, 2147483648
        %v2367 = vor.u32 1.1754944e-38, %v2366
        %v2368 = vsel %vm2365, %v2367, %v2363
        %v2369 = vmul.f32 %v2197, %v2368
        %v2370 = vrcp.pop %v2252
        %v2371 = vmul.f32 %v2252, %v2370
        %v2372 = vsub.f32 1.0, %v2371
        %v2373 = vmul.f32 %v2370, %v2372
        %v2374 = vadd.f32 %v2370, %v2373
        %vm2375 = vweird.f32 %v2252
        %vm2376 = vweird.f32 %v2370
        %vm2377 = vmor %vm2375, %vm2376
        %v2378 = vsel %vm2377, %v2370, %v2374
        %v2379 = vand.u32 2147483647, %v2252
        %vm2380 = vcmp.eq.f32.partialorder %v2379, 8.507059e+37
        %v2381 = vand.u32 %v2252, 2147483648
        %v2382 = vor.u32 1.1754944e-38, %v2381
        %v2383 = vsel %vm2380, %v2382, %v2378
        %v2384 = vmul.f32 %v2199, %v2383
        %v2385 = vrcp.pop %v2255
        %v2386 = vmul.f32 %v2255, %v2385
        %v2387 = vsub.f32 1.0, %v2386
        %v2388 = vmul.f32 %v2385, %v2387
        %v2389 = vadd.f32 %v2385, %v2388
        %vm2390 = vweird.f32 %v2255
        %vm2391 = vweird.f32 %v2385
        %vm2392 = vmor %vm2390, %vm2391
        %v2393 = vsel %vm2392, %v2385, %v2389
        %v2394 = vand.u32 2147483647, %v2255
        %vm2395 = vcmp.eq.f32.partialorder %v2394, 8.507059e+37
        %v2396 = vand.u32 %v2255, 2147483648
        %v2397 = vor.u32 1.1754944e-38, %v2396
        %v2398 = vsel %vm2395, %v2397, %v2393
        %v2399 = vmul.f32 %v2201, %v2398
        %v2400 = vrcp.pop %v2258
        %v2401 = vmul.f32 %v2258, %v2400
        %v2402 = vsub.f32 1.0, %v2401
        %v2403 = vmul.f32 %v2400, %v2402
        %v2404 = vadd.f32 %v2400, %v2403
        %vm2405 = vweird.f32 %v2258
        %vm2406 = vweird.f32 %v2400
        %vm2407 = vmor %vm2405, %vm2406
        %v2408 = vsel %vm2407, %v2400, %v2404
        %v2409 = vand.u32 2147483647, %v2258
        %vm2410 = vcmp.eq.f32.partialorder %v2409, 8.507059e+37
        %v2411 = vand.u32 %v2258, 2147483648
        %v2412 = vor.u32 1.1754944e-38, %v2411
        %v2413 = vsel %vm2410, %v2412, %v2408
        %v2414 = vmul.f32 %v2203, %v2413
        %v2415 = vrcp.pop %v2261
        %v2416 = vmul.f32 %v2261, %v2415
        %v2417 = vsub.f32 1.0, %v2416
        %v2418 = vmul.f32 %v2415, %v2417
        %v2419 = vadd.f32 %v2415, %v2418
        %vm2420 = vweird.f32 %v2261
        %vm2421 = vweird.f32 %v2415
        %vm2422 = vmor %vm2420, %vm2421
        %v2423 = vsel %vm2422, %v2415, %v2419
        %v2424 = vand.u32 2147483647, %v2261
        %vm2425 = vcmp.eq.f32.partialorder %v2424, 8.507059e+37
        %v2426 = vand.u32 %v2261, 2147483648
        %v2427 = vor.u32 1.1754944e-38, %v2426
        %v2428 = vsel %vm2425, %v2427, %v2423
        %v2429 = vmul.f32 %v2205, %v2428
        %v2430 = vrcp.pop %v2264
        %v2431 = vmul.f32 %v2264, %v2430
        %v2432 = vsub.f32 1.0, %v2431
        %v2433 = vmul.f32 %v2430, %v2432
        %v2434 = vadd.f32 %v2430, %v2433
        %vm2435 = vweird.f32 %v2264
        %vm2436 = vweird.f32 %v2430
        %vm2437 = vmor %vm2435, %vm2436
        %v2438 = vsel %vm2437, %v2430, %v2434
        %v2439 = vand.u32 2147483647, %v2264
        %vm2440 = vcmp.eq.f32.partialorder %v2439, 8.507059e+37
        %v2441 = vand.u32 %v2264, 2147483648
        %v2442 = vor.u32 1.1754944e-38, %v2441
        %v2443 = vsel %vm2440, %v2442, %v2438
        %v2444 = vmul.f32 %v2207, %v2443
        %v2445 = vrcp.pop %v2267
        %v2446 = vmul.f32 %v2267, %v2445
        %v2447 = vsub.f32 1.0, %v2446
        %v2448 = vmul.f32 %v2445, %v2447
        %v2449 = vadd.f32 %v2445, %v2448
        %vm2450 = vweird.f32 %v2267
        %vm2451 = vweird.f32 %v2445
        %vm2452 = vmor %vm2450, %vm2451
        %v2453 = vsel %vm2452, %v2445, %v2449
        %v2454 = vand.u32 2147483647, %v2267
        %vm2455 = vcmp.eq.f32.partialorder %v2454, 8.507059e+37
        %v2456 = vand.u32 %v2267, 2147483648
        %v2457 = vor.u32 1.1754944e-38, %v2456
        %v2458 = vsel %vm2455, %v2457, %v2453
        %v2459 = vmul.f32 %v2209, %v2458
        %v2460 = vrcp.pop %v2270
        %v2461 = vmul.f32 %v2270, %v2460
        %v2462 = vsub.f32 1.0, %v2461
        %v2463 = vmul.f32 %v2460, %v2462
        %v2464 = vadd.f32 %v2460, %v2463
        %vm2465 = vweird.f32 %v2270
        %vm2466 = vweird.f32 %v2460
        %vm2467 = vmor %vm2465, %vm2466
        %v2468 = vsel %vm2467, %v2460, %v2464
        %v2469 = vand.u32 2147483647, %v2270
        %vm2470 = vcmp.eq.f32.partialorder %v2469, 8.507059e+37
        %v2471 = vand.u32 %v2270, 2147483648
        %v2472 = vor.u32 1.1754944e-38, %v2471
        %v2473 = vsel %vm2470, %v2472, %v2468
        %v2474 = vmul.f32 %v2211, %v2473
        %v2475 = vrcp.pop %v2273
        %v2476 = vmul.f32 %v2273, %v2475
        %v2477 = vsub.f32 1.0, %v2476
        %v2478 = vmul.f32 %v2475, %v2477
        %v2479 = vadd.f32 %v2475, %v2478
        %vm2480 = vweird.f32 %v2273
        %vm2481 = vweird.f32 %v2475
        %vm2482 = vmor %vm2480, %vm2481
        %v2483 = vsel %vm2482, %v2475, %v2479
        %v2484 = vand.u32 2147483647, %v2273
        %vm2485 = vcmp.eq.f32.partialorder %v2484, 8.507059e+37
        %v2486 = vand.u32 %v2273, 2147483648
        %v2487 = vor.u32 1.1754944e-38, %v2486
        %v2488 = vsel %vm2485, %v2487, %v2483
        %v2489 = vmul.f32 %v2213, %v2488
        %v2490 = vrcp.pop %v2276
        %v2491 = vmul.f32 %v2276, %v2490
        %v2492 = vsub.f32 1.0, %v2491
        %v2493 = vmul.f32 %v2490, %v2492
        %v2494 = vadd.f32 %v2490, %v2493
        %vm2495 = vweird.f32 %v2276
        %vm2496 = vweird.f32 %v2490
        %vm2497 = vmor %vm2495, %vm2496
        %v2498 = vsel %vm2497, %v2490, %v2494
        %v2499 = vand.u32 2147483647, %v2276
        %vm2500 = vcmp.eq.f32.partialorder %v2499, 8.507059e+37
        %v2501 = vand.u32 %v2276, 2147483648
        %v2502 = vor.u32 1.1754944e-38, %v2501
        %v2503 = vsel %vm2500, %v2502, %v2498
        %v2504 = vmul.f32 %v2215, %v2503
        %v2505 = vrcp.pop %v2279
        %v2506 = vmul.f32 %v2279, %v2505
        %v2507 = vsub.f32 1.0, %v2506
        %v2508 = vmul.f32 %v2505, %v2507
        %v2509 = vadd.f32 %v2505, %v2508
        %vm2510 = vweird.f32 %v2279
        %vm2511 = vweird.f32 %v2505
        %vm2512 = vmor %vm2510, %vm2511
        %v2513 = vsel %vm2512, %v2505, %v2509
        %v2514 = vand.u32 2147483647, %v2279
        %vm2515 = vcmp.eq.f32.partialorder %v2514, 8.507059e+37
        %v2516 = vand.u32 %v2279, 2147483648
        %v2517 = vor.u32 1.1754944e-38, %v2516
        %v2518 = vsel %vm2515, %v2517, %v2513
        %v2519 = vmul.f32 %v2217, %v2518
        %v2520 = vrcp.pop %v2282
        %v2521 = vmul.f32 %v2282, %v2520
        %v2522 = vsub.f32 1.0, %v2521
        %v2523 = vmul.f32 %v2520, %v2522
        %v2524 = vadd.f32 %v2520, %v2523
        %vm2525 = vweird.f32 %v2282
        %vm2526 = vweird.f32 %v2520
        %vm2527 = vmor %vm2525, %vm2526
        %v2528 = vsel %vm2527, %v2520, %v2524
        %v2529 = vand.u32 2147483647, %v2282
        %vm2530 = vcmp.eq.f32.partialorder %v2529, 8.507059e+37
        %v2531 = vand.u32 %v2282, 2147483648
        %v2532 = vor.u32 1.1754944e-38, %v2531
        %v2533 = vsel %vm2530, %v2532, %v2528
        %v2534 = vmul.f32 %v2219, %v2533
        %v2535 = vrcp.pop %v2285
        %v2536 = vmul.f32 %v2285, %v2535
        %v2537 = vsub.f32 1.0, %v2536
        %v2538 = vmul.f32 %v2535, %v2537
        %v2539 = vadd.f32 %v2535, %v2538
        %vm2540 = vweird.f32 %v2285
        %vm2541 = vweird.f32 %v2535
        %vm2542 = vmor %vm2540, %vm2541
        %v2543 = vsel %vm2542, %v2535, %v2539
        %v2544 = vand.u32 2147483647, %v2285
        %vm2545 = vcmp.eq.f32.partialorder %v2544, 8.507059e+37
        %v2546 = vand.u32 %v2285, 2147483648
        %v2547 = vor.u32 1.1754944e-38, %v2546
        %v2548 = vsel %vm2545, %v2547, %v2543
        %v2549 = vmul.f32 %v2221, %v2548
        %v2550 = vrcp.pop %v2288
        %v2551 = vmul.f32 %v2288, %v2550
        %v2552 = vsub.f32 1.0, %v2551
        %v2553 = vmul.f32 %v2550, %v2552
        %v2554 = vadd.f32 %v2550, %v2553
        %vm2555 = vweird.f32 %v2288
        %vm2556 = vweird.f32 %v2550
        %vm2557 = vmor %vm2555, %vm2556
        %v2558 = vsel %vm2557, %v2550, %v2554
        %v2559 = vand.u32 2147483647, %v2288
        %vm2560 = vcmp.eq.f32.partialorder %v2559, 8.507059e+37
        %v2561 = vand.u32 %v2288, 2147483648
        %v2562 = vor.u32 1.1754944e-38, %v2561
        %v2563 = vsel %vm2560, %v2562, %v2558
        %v2564 = vmul.f32 %v2223, %v2563
        %v2565 = vrcp.pop %v2291
        %v2566 = vmul.f32 %v2291, %v2565
        %v2567 = vsub.f32 1.0, %v2566
        %v2568 = vmul.f32 %v2565, %v2567
        %v2569 = vadd.f32 %v2565, %v2568
        %vm2570 = vweird.f32 %v2291
        %vm2571 = vweird.f32 %v2565
        %vm2572 = vmor %vm2570, %vm2571
        %v2573 = vsel %vm2572, %v2565, %v2569
        %v2574 = vand.u32 2147483647, %v2291
        %vm2575 = vcmp.eq.f32.partialorder %v2574, 8.507059e+37
        %v2576 = vand.u32 %v2291, 2147483648
        %v2577 = vor.u32 1.1754944e-38, %v2576
        %v2578 = vsel %vm2575, %v2577, %v2573
        %v2579 = vmul.f32 %v2225, %v2578
        %v2580 = vrcp.pop %v2294
        %v2581 = vmul.f32 %v2294, %v2580
        %v2582 = vsub.f32 1.0, %v2581
        %v2583 = vmul.f32 %v2580, %v2582
        %v2584 = vadd.f32 %v2580, %v2583
        %vm2585 = vweird.f32 %v2294
        %vm2586 = vweird.f32 %v2580
        %vm2587 = vmor %vm2585, %vm2586
        %v2588 = vsel %vm2587, %v2580, %v2584
        %v2589 = vand.u32 2147483647, %v2294
        %vm2590 = vcmp.eq.f32.partialorder %v2589, 8.507059e+37
        %v2591 = vand.u32 %v2294, 2147483648
        %v2592 = vor.u32 1.1754944e-38, %v2591
        %v2593 = vsel %vm2590, %v2592, %v2588
        %v2594 = vmul.f32 %v2227, %v2593
        %v2595 = vrcp.pop %v2297
        %v2596 = vmul.f32 %v2297, %v2595
        %v2597 = vsub.f32 1.0, %v2596
        %v2598 = vmul.f32 %v2595, %v2597
        %v2599 = vadd.f32 %v2595, %v2598
        %vm2600 = vweird.f32 %v2297
        %vm2601 = vweird.f32 %v2595
        %vm2602 = vmor %vm2600, %vm2601
        %v2603 = vsel %vm2602, %v2595, %v2599
        %v2604 = vand.u32 2147483647, %v2297
        %vm2605 = vcmp.eq.f32.partialorder %v2604, 8.507059e+37
        %v2606 = vand.u32 %v2297, 2147483648
        %v2607 = vor.u32 1.1754944e-38, %v2606
        %v2608 = vsel %vm2605, %v2607, %v2603
        %v2609 = vmul.f32 %v2229, %v2608
        %v2610 = vrcp.pop %v2300
        %v2611 = vmul.f32 %v2300, %v2610
        %v2612 = vsub.f32 1.0, %v2611
        %v2613 = vmul.f32 %v2610, %v2612
        %v2614 = vadd.f32 %v2610, %v2613
        %vm2615 = vweird.f32 %v2300
        %vm2616 = vweird.f32 %v2610
        %vm2617 = vmor %vm2615, %vm2616
        %v2618 = vsel %vm2617, %v2610, %v2614
        %v2619 = vand.u32 2147483647, %v2300
        %vm2620 = vcmp.eq.f32.partialorder %v2619, 8.507059e+37
        %v2621 = vand.u32 %v2300, 2147483648
        %v2622 = vor.u32 1.1754944e-38, %v2621
        %v2623 = vsel %vm2620, %v2622, %v2618
        %v2624 = vmul.f32 %v2231, %v2623
        %v2625 = vrcp.pop %v2303
        %v2626 = vmul.f32 %v2303, %v2625
        %v2627 = vsub.f32 1.0, %v2626
        %v2628 = vmul.f32 %v2625, %v2627
        %v2629 = vadd.f32 %v2625, %v2628
        %vm2630 = vweird.f32 %v2303
        %vm2631 = vweird.f32 %v2625
        %vm2632 = vmor %vm2630, %vm2631
        %v2633 = vsel %vm2632, %v2625, %v2629
        %v2634 = vand.u32 2147483647, %v2303
        %vm2635 = vcmp.eq.f32.partialorder %v2634, 8.507059e+37
        %v2636 = vand.u32 %v2303, 2147483648
        %v2637 = vor.u32 1.1754944e-38, %v2636
        %v2638 = vsel %vm2635, %v2637, %v2633
        %v2639 = vmul.f32 %v2233, %v2638
        %v2640 = vrcp.pop %v2306
        %v2641 = vmul.f32 %v2306, %v2640
        %v2642 = vsub.f32 1.0, %v2641
        %v2643 = vmul.f32 %v2640, %v2642
        %v2644 = vadd.f32 %v2640, %v2643
        %vm2645 = vweird.f32 %v2306
        %vm2646 = vweird.f32 %v2640
        %vm2647 = vmor %vm2645, %vm2646
        %v2648 = vsel %vm2647, %v2640, %v2644
        %v2649 = vand.u32 2147483647, %v2306
        %vm2650 = vcmp.eq.f32.partialorder %v2649, 8.507059e+37
        %v2651 = vand.u32 %v2306, 2147483648
        %v2652 = vor.u32 1.1754944e-38, %v2651
        %v2653 = vsel %vm2650, %v2652, %v2648
        %v2654 = vmul.f32 %v2235, %v2653
        %v2655 = vrcp.pop %v2309
        %v2656 = vmul.f32 %v2309, %v2655
        %v2657 = vsub.f32 1.0, %v2656
        %v2658 = vmul.f32 %v2655, %v2657
        %v2659 = vadd.f32 %v2655, %v2658
        %vm2660 = vweird.f32 %v2309
        %vm2661 = vweird.f32 %v2655
        %vm2662 = vmor %vm2660, %vm2661
        %v2663 = vsel %vm2662, %v2655, %v2659
        %v2664 = vand.u32 2147483647, %v2309
        %vm2665 = vcmp.eq.f32.partialorder %v2664, 8.507059e+37
        %v2666 = vand.u32 %v2309, 2147483648
        %v2667 = vor.u32 1.1754944e-38, %v2666
        %v2668 = vsel %vm2665, %v2667, %v2663
        %v2669 = vmul.f32 %v2237, %v2668
        %2670 = vst.msk [vmem:[%s428] sm:$0xff] %vm2093, %v2324
        %2671 = vst.msk [vmem:[%s428 + $0x8] sm:$0xff] %vm2093, %v2339
        %2672 = vst.msk [vmem:[%s428 + $0x10] sm:$0xff] %vm2093, %v2354
        %2673 = vst.msk [vmem:[%s428 + $0x18] sm:$0xff] %vm2093, %v2369
        %2674 = vst.msk [vmem:[%s428 + $0x20] sm:$0xff] %vm2093, %v2384
        %2675 = vst.msk [vmem:[%s428 + $0x28] sm:$0xff] %vm2093, %v2399
        %2676 = vst.msk [vmem:[%s428 + $0x30] sm:$0xff] %vm2093, %v2414
        %2677 = vst.msk [vmem:[%s428 + $0x38] sm:$0xff] %vm2093, %v2429
        %2678 = vst.msk [vmem:[%s428 + $0x40] sm:$0xff] %vm2093, %v2444
        %2679 = vst.msk [vmem:[%s428 + $0x48] sm:$0xff] %vm2093, %v2459
        %2680 = vst.msk [vmem:[%s428 + $0x50] sm:$0xff] %vm2093, %v2474
        %2681 = vst.msk [vmem:[%s428 + $0x58] sm:$0xff] %vm2093, %v2489
        %2682 = vst.msk [vmem:[%s428 + $0x60] sm:$0xff] %vm2093, %v2504
        %2683 = vst.msk [vmem:[%s428 + $0x68] sm:$0xff] %vm2093, %v2519
        %2684 = vst.msk [vmem:[%s428 + $0x70] sm:$0xff] %vm2093, %v2534
        %2685 = vst.msk [vmem:[%s428 + $0x78] sm:$0xff] %vm2093, %v2549
        %2686 = vst.msk [vmem:[%s428 + $0x80] sm:$0xff] %vm2093, %v2564
        %2687 = vst.msk [vmem:[%s428 + $0x88] sm:$0xff] %vm2093, %v2579
        %2688 = vst.msk [vmem:[%s428 + $0x90] sm:$0xff] %vm2093, %v2594
        %2689 = vst.msk [vmem:[%s428 + $0x98] sm:$0xff] %vm2093, %v2609
        %2690 = vst.msk [vmem:[%s428 + $0xa0] sm:$0xff] %vm2093, %v2624
        %2691 = vst.msk [vmem:[%s428 + $0xa8] sm:$0xff] %vm2093, %v2639
        %2692 = vst.msk [vmem:[%s428 + $0xb0] sm:$0xff] %vm2093, %v2654
        %2693 = vst.msk [vmem:[%s428 + $0xb8] sm:$0xff] %vm2093, %v2669
        %2697 = vrot.lane.b32.xlu0 %v884, 64
        %v2698 = vpop.permute.xlu0 %2697
        %2699 = vrot.lane.b32.xlu0 %v887, 64
        %v2700 = vpop.permute.xlu0 %2699
        %2701 = vrot.lane.b32.xlu0 %v890, 64
        %v2702 = vpop.permute.xlu0 %2701
        %v2707 = vsel %vm2093, %v2324, 0
        %v2710 = vsel %vm2093, %v2339, 0
        %v2713 = vsel %vm2093, %v2354, 0
        %2715 = vmatpush.msra.mxu0 0.0
        %2716 = vmatpush.msra.mxu0 0.0
        %2717 = vmatpush.msra.mxu0 0.0
        %2718 = vmatpush.msra.mxu0 0.0
        %2719 = vmatpush.msra.mxu0 0.0
        %2720 = vmatpush.msra.mxu0 0.0
        %2721 = vmatpush.msra.mxu0 0.0
        %2722 = vmatpush.msra.mxu0 0.0
        %2723 = vmatpush.msra.mxu0 0.0
        %2724 = vmatpush.msra.mxu0 0.0
        %2725 = vmatpush.msra.mxu0 0.0
        %2726 = vmatpush.msra.mxu0 0.0
        %2727 = vmatpush.msra.mxu0 0.0
        %2728 = vmatpush.msra.mxu0 %v2702
        %2729 = vmatpush.msra.mxu0 %v2700
        %2730 = vmatpush.msra.mxu0 %v2698
        %2731 = vmatmul.f32.gmra.mxu0 %v2707
        %v2732 = vpop.f32.mrf.mxu0
        %v2733 = vadd.f32 0.0, %v2732
        %2734 = vmatmul.f32.gmra.mxu0 %v2710
        %v2735 = vpop.f32.mrf.mxu0
        %v2736 = vadd.f32 0.0, %v2735
        %2737 = vmatmul.f32.gmra.mxu0 %v2713
        %v2738 = vpop.f32.mrf.mxu0
        %v2739 = vadd.f32 0.0, %v2738
        %2740 = vdwg.mxu0
        %2744 = vrot.lane.b32.xlu0 %v893, 64
        %v2745 = vpop.permute.xlu0 %2744
        %2746 = vrot.lane.b32.xlu0 %v896, 64
        %v2747 = vpop.permute.xlu0 %2746
        %2748 = vrot.lane.b32.xlu0 %v899, 64
        %v2749 = vpop.permute.xlu0 %2748
        %v2754 = vsel %vm2093, %v2369, 0
        %v2757 = vsel %vm2093, %v2384, 0
        %v2760 = vsel %vm2093, %v2399, 0
        %2762 = vmatpush.msra.mxu0 0.0
        %2763 = vmatpush.msra.mxu0 0.0
        %2764 = vmatpush.msra.mxu0 0.0
        %2765 = vmatpush.msra.mxu0 0.0
        %2766 = vmatpush.msra.mxu0 0.0
        %2767 = vmatpush.msra.mxu0 0.0
        %2768 = vmatpush.msra.mxu0 0.0
        %2769 = vmatpush.msra.mxu0 0.0
        %2770 = vmatpush.msra.mxu0 0.0
        %2771 = vmatpush.msra.mxu0 0.0
        %2772 = vmatpush.msra.mxu0 0.0
        %2773 = vmatpush.msra.mxu0 0.0
        %2774 = vmatpush.msra.mxu0 0.0
        %2775 = vmatpush.msra.mxu0 %v2749
        %2776 = vmatpush.msra.mxu0 %v2747
        %2777 = vmatpush.msra.mxu0 %v2745
        %2778 = vmatmul.f32.gmra.mxu0 %v2754
        %v2779 = vpop.f32.mrf.mxu0
        %v2780 = vadd.f32 0.0, %v2779
        %2781 = vmatmul.f32.gmra.mxu0 %v2757
        %v2782 = vpop.f32.mrf.mxu0
        %v2783 = vadd.f32 0.0, %v2782
        %2784 = vmatmul.f32.gmra.mxu0 %v2760
        %v2785 = vpop.f32.mrf.mxu0
        %v2786 = vadd.f32 0.0, %v2785
        %2787 = vdwg.mxu0
        %2791 = vrot.lane.b32.xlu0 %v902, 64
        %v2792 = vpop.permute.xlu0 %2791
        %2793 = vrot.lane.b32.xlu0 %v905, 64
        %v2794 = vpop.permute.xlu0 %2793
        %2795 = vrot.lane.b32.xlu0 %v908, 64
        %v2796 = vpop.permute.xlu0 %2795
        %v2801 = vsel %vm2093, %v2414, 0
        %v2804 = vsel %vm2093, %v2429, 0
        %v2807 = vsel %vm2093, %v2444, 0
        %2809 = vmatpush.msra.mxu0 0.0
        %2810 = vmatpush.msra.mxu0 0.0
        %2811 = vmatpush.msra.mxu0 0.0
        %2812 = vmatpush.msra.mxu0 0.0
        %2813 = vmatpush.msra.mxu0 0.0
        %2814 = vmatpush.msra.mxu0 0.0
        %2815 = vmatpush.msra.mxu0 0.0
        %2816 = vmatpush.msra.mxu0 0.0
        %2817 = vmatpush.msra.mxu0 0.0
        %2818 = vmatpush.msra.mxu0 0.0
        %2819 = vmatpush.msra.mxu0 0.0
        %2820 = vmatpush.msra.mxu0 0.0
        %2821 = vmatpush.msra.mxu0 0.0
        %2822 = vmatpush.msra.mxu0 %v2796
        %2823 = vmatpush.msra.mxu0 %v2794
        %2824 = vmatpush.msra.mxu0 %v2792
        %2825 = vmatmul.f32.gmra.mxu0 %v2801
        %v2826 = vpop.f32.mrf.mxu0
        %v2827 = vadd.f32 0.0, %v2826
        %2828 = vmatmul.f32.gmra.mxu0 %v2804
        %v2829 = vpop.f32.mrf.mxu0
        %v2830 = vadd.f32 0.0, %v2829
        %2831 = vmatmul.f32.gmra.mxu0 %v2807
        %v2832 = vpop.f32.mrf.mxu0
        %v2833 = vadd.f32 0.0, %v2832
        %2834 = vdwg.mxu0
        %2838 = vrot.lane.b32.xlu0 %v911, 64
        %v2839 = vpop.permute.xlu0 %2838
        %2840 = vrot.lane.b32.xlu0 %v914, 64
        %v2841 = vpop.permute.xlu0 %2840
        %2842 = vrot.lane.b32.xlu0 %v917, 64
        %v2843 = vpop.permute.xlu0 %2842
        %v2848 = vsel %vm2093, %v2459, 0
        %v2851 = vsel %vm2093, %v2474, 0
        %v2854 = vsel %vm2093, %v2489, 0
        %2856 = vmatpush.msra.mxu0 0.0
        %2857 = vmatpush.msra.mxu0 0.0
        %2858 = vmatpush.msra.mxu0 0.0
        %2859 = vmatpush.msra.mxu0 0.0
        %2860 = vmatpush.msra.mxu0 0.0
        %2861 = vmatpush.msra.mxu0 0.0
        %2862 = vmatpush.msra.mxu0 0.0
        %2863 = vmatpush.msra.mxu0 0.0
        %2864 = vmatpush.msra.mxu0 0.0
        %2865 = vmatpush.msra.mxu0 0.0
        %2866 = vmatpush.msra.mxu0 0.0
        %2867 = vmatpush.msra.mxu0 0.0
        %2868 = vmatpush.msra.mxu0 0.0
        %2869 = vmatpush.msra.mxu0 %v2843
        %2870 = vmatpush.msra.mxu0 %v2841
        %2871 = vmatpush.msra.mxu0 %v2839
        %2872 = vmatmul.f32.gmra.mxu0 %v2848
        %v2873 = vpop.f32.mrf.mxu0
        %v2874 = vadd.f32 0.0, %v2873
        %2875 = vmatmul.f32.gmra.mxu0 %v2851
        %v2876 = vpop.f32.mrf.mxu0
        %v2877 = vadd.f32 0.0, %v2876
        %2878 = vmatmul.f32.gmra.mxu0 %v2854
        %v2879 = vpop.f32.mrf.mxu0
        %v2880 = vadd.f32 0.0, %v2879
        %2881 = vdwg.mxu0
        %2885 = vrot.lane.b32.xlu0 %v920, 64
        %v2886 = vpop.permute.xlu0 %2885
        %2887 = vrot.lane.b32.xlu0 %v923, 64
        %v2888 = vpop.permute.xlu0 %2887
        %2889 = vrot.lane.b32.xlu0 %v926, 64
        %v2890 = vpop.permute.xlu0 %2889
        %v2895 = vsel %vm2093, %v2504, 0
        %v2898 = vsel %vm2093, %v2519, 0
        %v2901 = vsel %vm2093, %v2534, 0
        %2903 = vmatpush.msra.mxu0 0.0
        %2904 = vmatpush.msra.mxu0 0.0
        %2905 = vmatpush.msra.mxu0 0.0
        %2906 = vmatpush.msra.mxu0 0.0
        %2907 = vmatpush.msra.mxu0 0.0
        %2908 = vmatpush.msra.mxu0 0.0
        %2909 = vmatpush.msra.mxu0 0.0
        %2910 = vmatpush.msra.mxu0 0.0
        %2911 = vmatpush.msra.mxu0 0.0
        %2912 = vmatpush.msra.mxu0 0.0
        %2913 = vmatpush.msra.mxu0 0.0
        %2914 = vmatpush.msra.mxu0 0.0
        %2915 = vmatpush.msra.mxu0 0.0
        %2916 = vmatpush.msra.mxu0 %v2890
        %2917 = vmatpush.msra.mxu0 %v2888
        %2918 = vmatpush.msra.mxu0 %v2886
        %2919 = vmatmul.f32.gmra.mxu0 %v2895
        %v2920 = vpop.f32.mrf.mxu0
        %v2921 = vadd.f32 0.0, %v2920
        %2922 = vmatmul.f32.gmra.mxu0 %v2898
        %v2923 = vpop.f32.mrf.mxu0
        %v2924 = vadd.f32 0.0, %v2923
        %2925 = vmatmul.f32.gmra.mxu0 %v2901
        %v2926 = vpop.f32.mrf.mxu0
        %v2927 = vadd.f32 0.0, %v2926
        %2928 = vdwg.mxu0
        %2932 = vrot.lane.b32.xlu0 %v929, 64
        %v2933 = vpop.permute.xlu0 %2932
        %2934 = vrot.lane.b32.xlu0 %v932, 64
        %v2935 = vpop.permute.xlu0 %2934
        %2936 = vrot.lane.b32.xlu0 %v935, 64
        %v2937 = vpop.permute.xlu0 %2936
        %v2942 = vsel %vm2093, %v2549, 0
        %v2945 = vsel %vm2093, %v2564, 0
        %v2948 = vsel %vm2093, %v2579, 0
        %2950 = vmatpush.msra.mxu0 0.0
        %2951 = vmatpush.msra.mxu0 0.0
        %2952 = vmatpush.msra.mxu0 0.0
        %2953 = vmatpush.msra.mxu0 0.0
        %2954 = vmatpush.msra.mxu0 0.0
        %2955 = vmatpush.msra.mxu0 0.0
        %2956 = vmatpush.msra.mxu0 0.0
        %2957 = vmatpush.msra.mxu0 0.0
        %2958 = vmatpush.msra.mxu0 0.0
        %2959 = vmatpush.msra.mxu0 0.0
        %2960 = vmatpush.msra.mxu0 0.0
        %2961 = vmatpush.msra.mxu0 0.0
        %2962 = vmatpush.msra.mxu0 0.0
        %2963 = vmatpush.msra.mxu0 %v2937
        %2964 = vmatpush.msra.mxu0 %v2935
        %2965 = vmatpush.msra.mxu0 %v2933
        %2966 = vmatmul.f32.gmra.mxu0 %v2942
        %v2967 = vpop.f32.mrf.mxu0
        %v2968 = vadd.f32 0.0, %v2967
        %2969 = vmatmul.f32.gmra.mxu0 %v2945
        %v2970 = vpop.f32.mrf.mxu0
        %v2971 = vadd.f32 0.0, %v2970
        %2972 = vmatmul.f32.gmra.mxu0 %v2948
        %v2973 = vpop.f32.mrf.mxu0
        %v2974 = vadd.f32 0.0, %v2973
        %2975 = vdwg.mxu0
        %2979 = vrot.lane.b32.xlu0 %v938, 64
        %v2980 = vpop.permute.xlu0 %2979
        %2981 = vrot.lane.b32.xlu0 %v941, 64
        %v2982 = vpop.permute.xlu0 %2981
        %2983 = vrot.lane.b32.xlu0 %v944, 64
        %v2984 = vpop.permute.xlu0 %2983
        %v2989 = vsel %vm2093, %v2594, 0
        %v2992 = vsel %vm2093, %v2609, 0
        %v2995 = vsel %vm2093, %v2624, 0
        %2997 = vmatpush.msra.mxu0 0.0
        %2998 = vmatpush.msra.mxu0 0.0
        %2999 = vmatpush.msra.mxu0 0.0
        %3000 = vmatpush.msra.mxu0 0.0
        %3001 = vmatpush.msra.mxu0 0.0
        %3002 = vmatpush.msra.mxu0 0.0
        %3003 = vmatpush.msra.mxu0 0.0
        %3004 = vmatpush.msra.mxu0 0.0
        %3005 = vmatpush.msra.mxu0 0.0
        %3006 = vmatpush.msra.mxu0 0.0
        %3007 = vmatpush.msra.mxu0 0.0
        %3008 = vmatpush.msra.mxu0 0.0
        %3009 = vmatpush.msra.mxu0 0.0
        %3010 = vmatpush.msra.mxu0 %v2984
        %3011 = vmatpush.msra.mxu0 %v2982
        %3012 = vmatpush.msra.mxu0 %v2980
        %3013 = vmatmul.f32.gmra.mxu0 %v2989
        %v3014 = vpop.f32.mrf.mxu0
        %v3015 = vadd.f32 0.0, %v3014
        %3016 = vmatmul.f32.gmra.mxu0 %v2992
        %v3017 = vpop.f32.mrf.mxu0
        %v3018 = vadd.f32 0.0, %v3017
        %3019 = vmatmul.f32.gmra.mxu0 %v2995
        %v3020 = vpop.f32.mrf.mxu0
        %v3021 = vadd.f32 0.0, %v3020
        %3022 = vdwg.mxu0
        %3026 = vrot.lane.b32.xlu0 %v947, 64
        %v3027 = vpop.permute.xlu0 %3026
        %3028 = vrot.lane.b32.xlu0 %v950, 64
        %v3029 = vpop.permute.xlu0 %3028
        %3030 = vrot.lane.b32.xlu0 %v953, 64
        %v3031 = vpop.permute.xlu0 %3030
        %v3036 = vsel %vm2093, %v2639, 0
        %v3039 = vsel %vm2093, %v2654, 0
        %v3042 = vsel %vm2093, %v2669, 0
        %3044 = vmatpush.msra.mxu0 0.0
        %3045 = vmatpush.msra.mxu0 0.0
        %3046 = vmatpush.msra.mxu0 0.0
        %3047 = vmatpush.msra.mxu0 0.0
        %3048 = vmatpush.msra.mxu0 0.0
        %3049 = vmatpush.msra.mxu0 0.0
        %3050 = vmatpush.msra.mxu0 0.0
        %3051 = vmatpush.msra.mxu0 0.0
        %3052 = vmatpush.msra.mxu0 0.0
        %3053 = vmatpush.msra.mxu0 0.0
        %3054 = vmatpush.msra.mxu0 0.0
        %3055 = vmatpush.msra.mxu0 0.0
        %3056 = vmatpush.msra.mxu0 0.0
        %3057 = vmatpush.msra.mxu0 %v3031
        %3058 = vmatpush.msra.mxu0 %v3029
        %3059 = vmatpush.msra.mxu0 %v3027
        %3060 = vmatmul.f32.gmra.mxu0 %v3036
        %v3061 = vpop.f32.mrf.mxu0
        %v3062 = vadd.f32 0.0, %v3061
        %3063 = vmatmul.f32.gmra.mxu0 %v3039
        %v3064 = vpop.f32.mrf.mxu0
        %v3065 = vadd.f32 0.0, %v3064
        %3066 = vmatmul.f32.gmra.mxu0 %v3042
        %v3067 = vpop.f32.mrf.mxu0
        %v3068 = vadd.f32 0.0, %v3067
        %3069 = vdwg.mxu0
        %3094 = vrot.lane.b32.xlu0 %v2733, 32
        %v3095 = vpop.permute.xlu0 %3094
        %3096 = vrot.lane.b32.xlu0 %v2736, 32
        %v3097 = vpop.permute.xlu0 %3096
        %3098 = vrot.lane.b32.xlu0 %v2739, 32
        %v3099 = vpop.permute.xlu0 %3098
        %3100 = vrot.lane.b32.xlu0 %v2780, 32
        %v3101 = vpop.permute.xlu0 %3100
        %3102 = vrot.lane.b32.xlu0 %v2783, 32
        %v3103 = vpop.permute.xlu0 %3102
        %3104 = vrot.lane.b32.xlu0 %v2786, 32
        %v3105 = vpop.permute.xlu0 %3104
        %3106 = vrot.lane.b32.xlu0 %v2827, 32
        %v3107 = vpop.permute.xlu0 %3106
        %3108 = vrot.lane.b32.xlu0 %v2830, 32
        %v3109 = vpop.permute.xlu0 %3108
        %3110 = vrot.lane.b32.xlu0 %v2833, 32
        %v3111 = vpop.permute.xlu0 %3110
        %3112 = vrot.lane.b32.xlu0 %v2874, 32
        %v3113 = vpop.permute.xlu0 %3112
        %3114 = vrot.lane.b32.xlu0 %v2877, 32
        %v3115 = vpop.permute.xlu0 %3114
        %3116 = vrot.lane.b32.xlu0 %v2880, 32
        %v3117 = vpop.permute.xlu0 %3116
        %3118 = vrot.lane.b32.xlu0 %v2921, 32
        %v3119 = vpop.permute.xlu0 %3118
        %3120 = vrot.lane.b32.xlu0 %v2924, 32
        %v3121 = vpop.permute.xlu0 %3120
        %3122 = vrot.lane.b32.xlu0 %v2927, 32
        %v3123 = vpop.permute.xlu0 %3122
        %3124 = vrot.lane.b32.xlu0 %v2968, 32
        %v3125 = vpop.permute.xlu0 %3124
        %3126 = vrot.lane.b32.xlu0 %v2971, 32
        %v3127 = vpop.permute.xlu0 %3126
        %3128 = vrot.lane.b32.xlu0 %v2974, 32
        %v3129 = vpop.permute.xlu0 %3128
        %3130 = vrot.lane.b32.xlu0 %v3015, 32
        %v3131 = vpop.permute.xlu0 %3130
        %3132 = vrot.lane.b32.xlu0 %v3018, 32
        %v3133 = vpop.permute.xlu0 %3132
        %3134 = vrot.lane.b32.xlu0 %v3021, 32
        %v3135 = vpop.permute.xlu0 %3134
        %3136 = vrot.lane.b32.xlu0 %v3062, 32
        %v3137 = vpop.permute.xlu0 %3136
        %3138 = vrot.lane.b32.xlu0 %v3065, 32
        %v3139 = vpop.permute.xlu0 %3138
        %3140 = vrot.lane.b32.xlu0 %v3068, 32
        %v3141 = vpop.permute.xlu0 %3140
        %v3166 = vadd.f32 %v973, %v3095
        %v3167 = vadd.f32 %v976, %v3097
        %v3168 = vadd.f32 %v979, %v3099
        %v3169 = vadd.f32 %v982, %v3101
        %v3170 = vadd.f32 %v985, %v3103
        %v3171 = vadd.f32 %v988, %v3105
        %v3172 = vadd.f32 %v991, %v3107
        %v3173 = vadd.f32 %v994, %v3109
        %v3174 = vadd.f32 %v997, %v3111
        %v3175 = vadd.f32 %v1000, %v3113
        %v3176 = vadd.f32 %v1003, %v3115
        %v3177 = vadd.f32 %v1006, %v3117
        %v3178 = vadd.f32 %v1009, %v3119
        %v3179 = vadd.f32 %v1012, %v3121
        %v3180 = vadd.f32 %v1015, %v3123
        %v3181 = vadd.f32 %v1018, %v3125
        %v3182 = vadd.f32 %v1021, %v3127
        %v3183 = vadd.f32 %v1024, %v3129
        %v3184 = vadd.f32 %v1027, %v3131
        %v3185 = vadd.f32 %v1030, %v3133
        %v3186 = vadd.f32 %v1033, %v3135
        %v3187 = vadd.f32 %v1036, %v3137
        %v3188 = vadd.f32 %v1039, %v3139
        %v3189 = vadd.f32 %v1042, %v3141
        %v3190 = vmax.f32 %v3166, 0.0
        %v3191 = vmax.f32 %v3167, 0.0
        %v3192 = vmax.f32 %v3168, 0.0
        %v3193 = vmax.f32 %v3169, 0.0
        %v3194 = vmax.f32 %v3170, 0.0
        %v3195 = vmax.f32 %v3171, 0.0
        %v3196 = vmax.f32 %v3172, 0.0
        %v3197 = vmax.f32 %v3173, 0.0
        %v3198 = vmax.f32 %v3174, 0.0
        %v3199 = vmax.f32 %v3175, 0.0
        %v3200 = vmax.f32 %v3176, 0.0
        %v3201 = vmax.f32 %v3177, 0.0
        %v3202 = vmax.f32 %v3178, 0.0
        %v3203 = vmax.f32 %v3179, 0.0
        %v3204 = vmax.f32 %v3180, 0.0
        %v3205 = vmax.f32 %v3181, 0.0
        %v3206 = vmax.f32 %v3182, 0.0
        %v3207 = vmax.f32 %v3183, 0.0
        %v3208 = vmax.f32 %v3184, 0.0
        %v3209 = vmax.f32 %v3185, 0.0
        %v3210 = vmax.f32 %v3186, 0.0
        %v3211 = vmax.f32 %v3187, 0.0
        %v3212 = vmax.f32 %v3188, 0.0
        %v3213 = vmax.f32 %v3189, 0.0
        %v3214 = vlaneseq
        %v3215 = vshrl.u32 %v3214, 7
        %v3216 = vadd.s32 %v3215, 8
        %v3217 = vadd.s32 %v3215, 16
        %vm3218 = vcmp.lt.s32.totalorder %v3215, 19
        %vm3219 = vcmp.lt.s32.totalorder %v3216, 19
        %vm3220 = vcmp.lt.s32.totalorder %v3217, 19
        %v3221 = vsel %vm3218, 1, 0
        %v3222 = vsel %vm3219, 1, 0
        %v3223 = vsel %vm3220, 1, 0
        %v3224 = vcvt.s32.f32 %v3221
        %v3225 = vcvt.s32.f32 %v3222
        %v3226 = vcvt.s32.f32 %v3223
        %v3227 = vmul.f32 %v3190, %v3224
        %v3228 = vmul.f32 %v3191, %v3225
        %v3229 = vmul.f32 %v3192, %v3226
        %v3230 = vmul.f32 %v3193, %v3224
        %v3231 = vmul.f32 %v3194, %v3225
        %v3232 = vmul.f32 %v3195, %v3226
        %v3233 = vmul.f32 %v3196, %v3224
        %v3234 = vmul.f32 %v3197, %v3225
        %v3235 = vmul.f32 %v3198, %v3226
        %v3236 = vmul.f32 %v3199, %v3224
        %v3237 = vmul.f32 %v3200, %v3225
        %v3238 = vmul.f32 %v3201, %v3226
        %v3239 = vmul.f32 %v3202, %v3224
        %v3240 = vmul.f32 %v3203, %v3225
        %v3241 = vmul.f32 %v3204, %v3226
        %v3242 = vmul.f32 %v3205, %v3224
        %v3243 = vmul.f32 %v3206, %v3225
        %v3244 = vmul.f32 %v3207, %v3226
        %v3245 = vmul.f32 %v3208, %v3224
        %v3246 = vmul.f32 %v3209, %v3225
        %v3247 = vmul.f32 %v3210, %v3226
        %v3248 = vmul.f32 %v3211, %v3224
        %v3249 = vmul.f32 %v3212, %v3225
        %v3250 = vmul.f32 %v3213, %v3226
        %v3251 = vld [vmem:[%s5] sm:$0xff]
        %v3252 = vld [vmem:[%s5 + $0x8] sm:$0xff]
        %v3253 = vld [vmem:[%s5 + $0x10] sm:$0xff]
        %v3254 = vld [vmem:[%s5 + $0x18] sm:$0xff]
        %3258 = vrot.lane.b32.xlu0 %v3227, 96
        %v3259 = vpop.permute.xlu0 %3258
        %3260 = vrot.lane.b32.xlu0 %v3228, 96
        %v3261 = vpop.permute.xlu0 %3260
        %3262 = vrot.lane.b32.xlu0 %v3229, 96
        %v3263 = vpop.permute.xlu0 %3262
        %v3264 = vsel %vm793, %v3259, 0
        %v3266 = vsel %vm793, %v3261, 0
        %v3268 = vsel %vm793, %v3263, 0
        %3270 = vmatpush.msra.mxu0 0.0
        %3271 = vmatpush.msra.mxu0 0.0
        %3272 = vmatpush.msra.mxu0 0.0
        %3273 = vmatpush.msra.mxu0 0.0
        %3274 = vmatpush.msra.mxu0 0.0
        %3275 = vmatpush.msra.mxu0 0.0
        %3276 = vmatpush.msra.mxu0 0.0
        %3277 = vmatpush.msra.mxu0 0.0
        %3278 = vmatpush.msra.mxu0 0.0
        %3279 = vmatpush.msra.mxu0 0.0
        %3280 = vmatpush.msra.mxu0 0.0
        %3281 = vmatpush.msra.mxu0 0.0
        %3282 = vmatpush.msra.mxu0 %v3254
        %3283 = vmatpush.msra.mxu0 %v3253
        %3284 = vmatpush.msra.mxu0 %v3252
        %3285 = vmatpush.msra.mxu0 %v3251
        %3286 = vmatmul.f32.gmra.mxu0 %v3264
        %v3287 = vpop.f32.mrf.mxu0
        %v3288 = vadd.f32 0.0, %v3287
        %3289 = vmatmul.f32.gmra.mxu0 %v3266
        %v3290 = vpop.f32.mrf.mxu0
        %v3291 = vadd.f32 0.0, %v3290
        %3292 = vmatmul.f32.gmra.mxu0 %v3268
        %v3293 = vpop.f32.mrf.mxu0
        %v3294 = vadd.f32 0.0, %v3293
        %3295 = vdwg.mxu0
        %3299 = vrot.lane.b32.xlu0 %v3230, 96
        %v3300 = vpop.permute.xlu0 %3299
        %3301 = vrot.lane.b32.xlu0 %v3231, 96
        %v3302 = vpop.permute.xlu0 %3301
        %3303 = vrot.lane.b32.xlu0 %v3232, 96
        %v3304 = vpop.permute.xlu0 %3303
        %v3305 = vsel %vm793, %v3300, 0
        %v3307 = vsel %vm793, %v3302, 0
        %v3309 = vsel %vm793, %v3304, 0
        %3311 = vmatpush.msra.mxu0 0.0
        %3312 = vmatpush.msra.mxu0 0.0
        %3313 = vmatpush.msra.mxu0 0.0
        %3314 = vmatpush.msra.mxu0 0.0
        %3315 = vmatpush.msra.mxu0 0.0
        %3316 = vmatpush.msra.mxu0 0.0
        %3317 = vmatpush.msra.mxu0 0.0
        %3318 = vmatpush.msra.mxu0 0.0
        %3319 = vmatpush.msra.mxu0 0.0
        %3320 = vmatpush.msra.mxu0 0.0
        %3321 = vmatpush.msra.mxu0 0.0
        %3322 = vmatpush.msra.mxu0 0.0
        %3323 = vmatpush.msra.mxu0 %v3254
        %3324 = vmatpush.msra.mxu0 %v3253
        %3325 = vmatpush.msra.mxu0 %v3252
        %3326 = vmatpush.msra.mxu0 %v3251
        %3327 = vmatmul.f32.gmra.mxu0 %v3305
        %v3328 = vpop.f32.mrf.mxu0
        %v3329 = vadd.f32 0.0, %v3328
        %3330 = vmatmul.f32.gmra.mxu0 %v3307
        %v3331 = vpop.f32.mrf.mxu0
        %v3332 = vadd.f32 0.0, %v3331
        %3333 = vmatmul.f32.gmra.mxu0 %v3309
        %v3334 = vpop.f32.mrf.mxu0
        %v3335 = vadd.f32 0.0, %v3334
        %3336 = vdwg.mxu0
        %3340 = vrot.lane.b32.xlu0 %v3233, 96
        %v3341 = vpop.permute.xlu0 %3340
        %3342 = vrot.lane.b32.xlu0 %v3234, 96
        %v3343 = vpop.permute.xlu0 %3342
        %3344 = vrot.lane.b32.xlu0 %v3235, 96
        %v3345 = vpop.permute.xlu0 %3344
        %v3346 = vsel %vm793, %v3341, 0
        %v3348 = vsel %vm793, %v3343, 0
        %v3350 = vsel %vm793, %v3345, 0
        %3352 = vmatpush.msra.mxu0 0.0
        %3353 = vmatpush.msra.mxu0 0.0
        %3354 = vmatpush.msra.mxu0 0.0
        %3355 = vmatpush.msra.mxu0 0.0
        %3356 = vmatpush.msra.mxu0 0.0
        %3357 = vmatpush.msra.mxu0 0.0
        %3358 = vmatpush.msra.mxu0 0.0
        %3359 = vmatpush.msra.mxu0 0.0
        %3360 = vmatpush.msra.mxu0 0.0
        %3361 = vmatpush.msra.mxu0 0.0
        %3362 = vmatpush.msra.mxu0 0.0
        %3363 = vmatpush.msra.mxu0 0.0
        %3364 = vmatpush.msra.mxu0 %v3254
        %3365 = vmatpush.msra.mxu0 %v3253
        %3366 = vmatpush.msra.mxu0 %v3252
        %3367 = vmatpush.msra.mxu0 %v3251
        %3368 = vmatmul.f32.gmra.mxu0 %v3346
        %v3369 = vpop.f32.mrf.mxu0
        %v3370 = vadd.f32 0.0, %v3369
        %3371 = vmatmul.f32.gmra.mxu0 %v3348
        %v3372 = vpop.f32.mrf.mxu0
        %v3373 = vadd.f32 0.0, %v3372
        %3374 = vmatmul.f32.gmra.mxu0 %v3350
        %v3375 = vpop.f32.mrf.mxu0
        %v3376 = vadd.f32 0.0, %v3375
        %3377 = vdwg.mxu0
        %3381 = vrot.lane.b32.xlu0 %v3236, 96
        %v3382 = vpop.permute.xlu0 %3381
        %3383 = vrot.lane.b32.xlu0 %v3237, 96
        %v3384 = vpop.permute.xlu0 %3383
        %3385 = vrot.lane.b32.xlu0 %v3238, 96
        %v3386 = vpop.permute.xlu0 %3385
        %v3387 = vsel %vm793, %v3382, 0
        %v3389 = vsel %vm793, %v3384, 0
        %v3391 = vsel %vm793, %v3386, 0
        %3393 = vmatpush.msra.mxu0 0.0
        %3394 = vmatpush.msra.mxu0 0.0
        %3395 = vmatpush.msra.mxu0 0.0
        %3396 = vmatpush.msra.mxu0 0.0
        %3397 = vmatpush.msra.mxu0 0.0
        %3398 = vmatpush.msra.mxu0 0.0
        %3399 = vmatpush.msra.mxu0 0.0
        %3400 = vmatpush.msra.mxu0 0.0
        %3401 = vmatpush.msra.mxu0 0.0
        %3402 = vmatpush.msra.mxu0 0.0
        %3403 = vmatpush.msra.mxu0 0.0
        %3404 = vmatpush.msra.mxu0 0.0
        %3405 = vmatpush.msra.mxu0 %v3254
        %3406 = vmatpush.msra.mxu0 %v3253
        %3407 = vmatpush.msra.mxu0 %v3252
        %3408 = vmatpush.msra.mxu0 %v3251
        %3409 = vmatmul.f32.gmra.mxu0 %v3387
        %v3410 = vpop.f32.mrf.mxu0
        %v3411 = vadd.f32 0.0, %v3410
        %3412 = vmatmul.f32.gmra.mxu0 %v3389
        %v3413 = vpop.f32.mrf.mxu0
        %v3414 = vadd.f32 0.0, %v3413
        %3415 = vmatmul.f32.gmra.mxu0 %v3391
        %v3416 = vpop.f32.mrf.mxu0
        %v3417 = vadd.f32 0.0, %v3416
        %3418 = vdwg.mxu0
        %3422 = vrot.lane.b32.xlu0 %v3239, 96
        %v3423 = vpop.permute.xlu0 %3422
        %3424 = vrot.lane.b32.xlu0 %v3240, 96
        %v3425 = vpop.permute.xlu0 %3424
        %3426 = vrot.lane.b32.xlu0 %v3241, 96
        %v3427 = vpop.permute.xlu0 %3426
        %v3428 = vsel %vm793, %v3423, 0
        %v3430 = vsel %vm793, %v3425, 0
        %v3432 = vsel %vm793, %v3427, 0
        %3434 = vmatpush.msra.mxu0 0.0
        %3435 = vmatpush.msra.mxu0 0.0
        %3436 = vmatpush.msra.mxu0 0.0
        %3437 = vmatpush.msra.mxu0 0.0
        %3438 = vmatpush.msra.mxu0 0.0
        %3439 = vmatpush.msra.mxu0 0.0
        %3440 = vmatpush.msra.mxu0 0.0
        %3441 = vmatpush.msra.mxu0 0.0
        %3442 = vmatpush.msra.mxu0 0.0
        %3443 = vmatpush.msra.mxu0 0.0
        %3444 = vmatpush.msra.mxu0 0.0
        %3445 = vmatpush.msra.mxu0 0.0
        %3446 = vmatpush.msra.mxu0 %v3254
        %3447 = vmatpush.msra.mxu0 %v3253
        %3448 = vmatpush.msra.mxu0 %v3252
        %3449 = vmatpush.msra.mxu0 %v3251
        %3450 = vmatmul.f32.gmra.mxu0 %v3428
        %v3451 = vpop.f32.mrf.mxu0
        %v3452 = vadd.f32 0.0, %v3451
        %3453 = vmatmul.f32.gmra.mxu0 %v3430
        %v3454 = vpop.f32.mrf.mxu0
        %v3455 = vadd.f32 0.0, %v3454
        %3456 = vmatmul.f32.gmra.mxu0 %v3432
        %v3457 = vpop.f32.mrf.mxu0
        %v3458 = vadd.f32 0.0, %v3457
        %3459 = vdwg.mxu0
        %3463 = vrot.lane.b32.xlu0 %v3242, 96
        %v3464 = vpop.permute.xlu0 %3463
        %3465 = vrot.lane.b32.xlu0 %v3243, 96
        %v3466 = vpop.permute.xlu0 %3465
        %3467 = vrot.lane.b32.xlu0 %v3244, 96
        %v3468 = vpop.permute.xlu0 %3467
        %v3469 = vsel %vm793, %v3464, 0
        %v3471 = vsel %vm793, %v3466, 0
        %v3473 = vsel %vm793, %v3468, 0
        %3475 = vmatpush.msra.mxu0 0.0
        %3476 = vmatpush.msra.mxu0 0.0
        %3477 = vmatpush.msra.mxu0 0.0
        %3478 = vmatpush.msra.mxu0 0.0
        %3479 = vmatpush.msra.mxu0 0.0
        %3480 = vmatpush.msra.mxu0 0.0
        %3481 = vmatpush.msra.mxu0 0.0
        %3482 = vmatpush.msra.mxu0 0.0
        %3483 = vmatpush.msra.mxu0 0.0
        %3484 = vmatpush.msra.mxu0 0.0
        %3485 = vmatpush.msra.mxu0 0.0
        %3486 = vmatpush.msra.mxu0 0.0
        %3487 = vmatpush.msra.mxu0 %v3254
        %3488 = vmatpush.msra.mxu0 %v3253
        %3489 = vmatpush.msra.mxu0 %v3252
        %3490 = vmatpush.msra.mxu0 %v3251
        %3491 = vmatmul.f32.gmra.mxu0 %v3469
        %v3492 = vpop.f32.mrf.mxu0
        %v3493 = vadd.f32 0.0, %v3492
        %3494 = vmatmul.f32.gmra.mxu0 %v3471
        %v3495 = vpop.f32.mrf.mxu0
        %v3496 = vadd.f32 0.0, %v3495
        %3497 = vmatmul.f32.gmra.mxu0 %v3473
        %v3498 = vpop.f32.mrf.mxu0
        %v3499 = vadd.f32 0.0, %v3498
        %3500 = vdwg.mxu0
        %3504 = vrot.lane.b32.xlu0 %v3245, 96
        %v3505 = vpop.permute.xlu0 %3504
        %3506 = vrot.lane.b32.xlu0 %v3246, 96
        %v3507 = vpop.permute.xlu0 %3506
        %3508 = vrot.lane.b32.xlu0 %v3247, 96
        %v3509 = vpop.permute.xlu0 %3508
        %v3510 = vsel %vm793, %v3505, 0
        %v3512 = vsel %vm793, %v3507, 0
        %v3514 = vsel %vm793, %v3509, 0
        %3516 = vmatpush.msra.mxu0 0.0
        %3517 = vmatpush.msra.mxu0 0.0
        %3518 = vmatpush.msra.mxu0 0.0
        %3519 = vmatpush.msra.mxu0 0.0
        %3520 = vmatpush.msra.mxu0 0.0
        %3521 = vmatpush.msra.mxu0 0.0
        %3522 = vmatpush.msra.mxu0 0.0
        %3523 = vmatpush.msra.mxu0 0.0
        %3524 = vmatpush.msra.mxu0 0.0
        %3525 = vmatpush.msra.mxu0 0.0
        %3526 = vmatpush.msra.mxu0 0.0
        %3527 = vmatpush.msra.mxu0 0.0
        %3528 = vmatpush.msra.mxu0 %v3254
        %3529 = vmatpush.msra.mxu0 %v3253
        %3530 = vmatpush.msra.mxu0 %v3252
        %3531 = vmatpush.msra.mxu0 %v3251
        %3532 = vmatmul.f32.gmra.mxu0 %v3510
        %v3533 = vpop.f32.mrf.mxu0
        %v3534 = vadd.f32 0.0, %v3533
        %3535 = vmatmul.f32.gmra.mxu0 %v3512
        %v3536 = vpop.f32.mrf.mxu0
        %v3537 = vadd.f32 0.0, %v3536
        %3538 = vmatmul.f32.gmra.mxu0 %v3514
        %v3539 = vpop.f32.mrf.mxu0
        %v3540 = vadd.f32 0.0, %v3539
        %3541 = vdwg.mxu0
        %3545 = vrot.lane.b32.xlu0 %v3248, 96
        %v3546 = vpop.permute.xlu0 %3545
        %3547 = vrot.lane.b32.xlu0 %v3249, 96
        %v3548 = vpop.permute.xlu0 %3547
        %3549 = vrot.lane.b32.xlu0 %v3250, 96
        %v3550 = vpop.permute.xlu0 %3549
        %v3551 = vsel %vm793, %v3546, 0
        %v3553 = vsel %vm793, %v3548, 0
        %v3555 = vsel %vm793, %v3550, 0
        %3557 = vmatpush.msra.mxu0 0.0
        %3558 = vmatpush.msra.mxu0 0.0
        %3559 = vmatpush.msra.mxu0 0.0
        %3560 = vmatpush.msra.mxu0 0.0
        %3561 = vmatpush.msra.mxu0 0.0
        %3562 = vmatpush.msra.mxu0 0.0
        %3563 = vmatpush.msra.mxu0 0.0
        %3564 = vmatpush.msra.mxu0 0.0
        %3565 = vmatpush.msra.mxu0 0.0
        %3566 = vmatpush.msra.mxu0 0.0
        %3567 = vmatpush.msra.mxu0 0.0
        %3568 = vmatpush.msra.mxu0 0.0
        %3569 = vmatpush.msra.mxu0 %v3254
        %3570 = vmatpush.msra.mxu0 %v3253
        %3571 = vmatpush.msra.mxu0 %v3252
        %3572 = vmatpush.msra.mxu0 %v3251
        %3573 = vmatmul.f32.gmra.mxu0 %v3551
        %v3574 = vpop.f32.mrf.mxu0
        %v3575 = vadd.f32 0.0, %v3574
        %3576 = vmatmul.f32.gmra.mxu0 %v3553
        %v3577 = vpop.f32.mrf.mxu0
        %v3578 = vadd.f32 0.0, %v3577
        %3579 = vmatmul.f32.gmra.mxu0 %v3555
        %v3580 = vpop.f32.mrf.mxu0
        %v3581 = vadd.f32 0.0, %v3580
        %3582 = vdwg.mxu0
        %3583 = vmatpush.msra.mxu0 0.0
        %3584 = vmatpush.msra.mxu0 0.0
        %3585 = vmatpush.msra.mxu0 0.0
        %3586 = vmatpush.msra.mxu0 0.0
        %3587 = vmatpush.msra.mxu0 0.0
        %3588 = vmatpush.msra.mxu0 0.0
        %3589 = vmatpush.msra.mxu0 0.0
        %3590 = vmatpush.msra.mxu0 0.0
        %3591 = vmatpush.msra.mxu0 0.0
        %3592 = vmatpush.msra.mxu0 0.0
        %3593 = vmatpush.msra.mxu0 0.0
        %3594 = vmatpush.msra.mxu0 0.0
        %3595 = vmatpush.msra.mxu0 0.0
        %3596 = vmatpush.msra.mxu0 %v3294
        %3597 = vmatpush.msra.mxu0 %v3291
        %3598 = vmatpush.msra.mxu0 %v3288
        %3599 = vmatmul.f32.gmra.mxu0 %v2707
        %v3600 = vpop.f32.mrf.mxu0
        %v3601 = vadd.f32 0.0, %v3600
        %3602 = vmatmul.f32.gmra.mxu0 %v2710
        %v3603 = vpop.f32.mrf.mxu0
        %v3604 = vadd.f32 0.0, %v3603
        %3605 = vmatmul.f32.gmra.mxu0 %v2713
        %v3606 = vpop.f32.mrf.mxu0
        %v3607 = vadd.f32 0.0, %v3606
        %3608 = vdwg.mxu0
        %3609 = vmatpush.msra.mxu0 0.0
        %3610 = vmatpush.msra.mxu0 0.0
        %3611 = vmatpush.msra.mxu0 0.0
        %3612 = vmatpush.msra.mxu0 0.0
        %3613 = vmatpush.msra.mxu0 0.0
        %3614 = vmatpush.msra.mxu0 0.0
        %3615 = vmatpush.msra.mxu0 0.0
        %3616 = vmatpush.msra.mxu0 0.0
        %3617 = vmatpush.msra.mxu0 0.0
        %3618 = vmatpush.msra.mxu0 0.0
        %3619 = vmatpush.msra.mxu0 0.0
        %3620 = vmatpush.msra.mxu0 0.0
        %3621 = vmatpush.msra.mxu0 0.0
        %3622 = vmatpush.msra.mxu0 %v3335
        %3623 = vmatpush.msra.mxu0 %v3332
        %3624 = vmatpush.msra.mxu0 %v3329
        %3625 = vmatmul.f32.gmra.mxu0 %v2754
        %v3626 = vpop.f32.mrf.mxu0
        %v3627 = vadd.f32 0.0, %v3626
        %3628 = vmatmul.f32.gmra.mxu0 %v2757
        %v3629 = vpop.f32.mrf.mxu0
        %v3630 = vadd.f32 0.0, %v3629
        %3631 = vmatmul.f32.gmra.mxu0 %v2760
        %v3632 = vpop.f32.mrf.mxu0
        %v3633 = vadd.f32 0.0, %v3632
        %3634 = vdwg.mxu0
        %3635 = vmatpush.msra.mxu0 0.0
        %3636 = vmatpush.msra.mxu0 0.0
        %3637 = vmatpush.msra.mxu0 0.0
        %3638 = vmatpush.msra.mxu0 0.0
        %3639 = vmatpush.msra.mxu0 0.0
        %3640 = vmatpush.msra.mxu0 0.0
        %3641 = vmatpush.msra.mxu0 0.0
        %3642 = vmatpush.msra.mxu0 0.0
        %3643 = vmatpush.msra.mxu0 0.0
        %3644 = vmatpush.msra.mxu0 0.0
        %3645 = vmatpush.msra.mxu0 0.0
        %3646 = vmatpush.msra.mxu0 0.0
        %3647 = vmatpush.msra.mxu0 0.0
        %3648 = vmatpush.msra.mxu0 %v3376
        %3649 = vmatpush.msra.mxu0 %v3373
        %3650 = vmatpush.msra.mxu0 %v3370
        %3651 = vmatmul.f32.gmra.mxu0 %v2801
        %v3652 = vpop.f32.mrf.mxu0
        %v3653 = vadd.f32 0.0, %v3652
        %3654 = vmatmul.f32.gmra.mxu0 %v2804
        %v3655 = vpop.f32.mrf.mxu0
        %v3656 = vadd.f32 0.0, %v3655
        %3657 = vmatmul.f32.gmra.mxu0 %v2807
        %v3658 = vpop.f32.mrf.mxu0
        %v3659 = vadd.f32 0.0, %v3658
        %3660 = vdwg.mxu0
        %3661 = vmatpush.msra.mxu0 0.0
        %3662 = vmatpush.msra.mxu0 0.0
        %3663 = vmatpush.msra.mxu0 0.0
        %3664 = vmatpush.msra.mxu0 0.0
        %3665 = vmatpush.msra.mxu0 0.0
        %3666 = vmatpush.msra.mxu0 0.0
        %3667 = vmatpush.msra.mxu0 0.0
        %3668 = vmatpush.msra.mxu0 0.0
        %3669 = vmatpush.msra.mxu0 0.0
        %3670 = vmatpush.msra.mxu0 0.0
        %3671 = vmatpush.msra.mxu0 0.0
        %3672 = vmatpush.msra.mxu0 0.0
        %3673 = vmatpush.msra.mxu0 0.0
        %3674 = vmatpush.msra.mxu0 %v3417
        %3675 = vmatpush.msra.mxu0 %v3414
        %3676 = vmatpush.msra.mxu0 %v3411
        %3677 = vmatmul.f32.gmra.mxu0 %v2848
        %v3678 = vpop.f32.mrf.mxu0
        %v3679 = vadd.f32 0.0, %v3678
        %3680 = vmatmul.f32.gmra.mxu0 %v2851
        %v3681 = vpop.f32.mrf.mxu0
        %v3682 = vadd.f32 0.0, %v3681
        %3683 = vmatmul.f32.gmra.mxu0 %v2854
        %v3684 = vpop.f32.mrf.mxu0
        %v3685 = vadd.f32 0.0, %v3684
        %3686 = vdwg.mxu0
        %3687 = vmatpush.msra.mxu0 0.0
        %3688 = vmatpush.msra.mxu0 0.0
        %3689 = vmatpush.msra.mxu0 0.0
        %3690 = vmatpush.msra.mxu0 0.0
        %3691 = vmatpush.msra.mxu0 0.0
        %3692 = vmatpush.msra.mxu0 0.0
        %3693 = vmatpush.msra.mxu0 0.0
        %3694 = vmatpush.msra.mxu0 0.0
        %3695 = vmatpush.msra.mxu0 0.0
        %3696 = vmatpush.msra.mxu0 0.0
        %3697 = vmatpush.msra.mxu0 0.0
        %3698 = vmatpush.msra.mxu0 0.0
        %3699 = vmatpush.msra.mxu0 0.0
        %3700 = vmatpush.msra.mxu0 %v3458
        %3701 = vmatpush.msra.mxu0 %v3455
        %3702 = vmatpush.msra.mxu0 %v3452
        %3703 = vmatmul.f32.gmra.mxu0 %v2895
        %v3704 = vpop.f32.mrf.mxu0
        %v3705 = vadd.f32 0.0, %v3704
        %3706 = vmatmul.f32.gmra.mxu0 %v2898
        %v3707 = vpop.f32.mrf.mxu0
        %v3708 = vadd.f32 0.0, %v3707
        %3709 = vmatmul.f32.gmra.mxu0 %v2901
        %v3710 = vpop.f32.mrf.mxu0
        %v3711 = vadd.f32 0.0, %v3710
        %3712 = vdwg.mxu0
        %3713 = vmatpush.msra.mxu0 0.0
        %3714 = vmatpush.msra.mxu0 0.0
        %3715 = vmatpush.msra.mxu0 0.0
        %3716 = vmatpush.msra.mxu0 0.0
        %3717 = vmatpush.msra.mxu0 0.0
        %3718 = vmatpush.msra.mxu0 0.0
        %3719 = vmatpush.msra.mxu0 0.0
        %3720 = vmatpush.msra.mxu0 0.0
        %3721 = vmatpush.msra.mxu0 0.0
        %3722 = vmatpush.msra.mxu0 0.0
        %3723 = vmatpush.msra.mxu0 0.0
        %3724 = vmatpush.msra.mxu0 0.0
        %3725 = vmatpush.msra.mxu0 0.0
        %3726 = vmatpush.msra.mxu0 %v3499
        %3727 = vmatpush.msra.mxu0 %v3496
        %3728 = vmatpush.msra.mxu0 %v3493
        %3729 = vmatmul.f32.gmra.mxu0 %v2942
        %v3730 = vpop.f32.mrf.mxu0
        %v3731 = vadd.f32 0.0, %v3730
        %3732 = vmatmul.f32.gmra.mxu0 %v2945
        %v3733 = vpop.f32.mrf.mxu0
        %v3734 = vadd.f32 0.0, %v3733
        %3735 = vmatmul.f32.gmra.mxu0 %v2948
        %v3736 = vpop.f32.mrf.mxu0
        %v3737 = vadd.f32 0.0, %v3736
        %3738 = vdwg.mxu0
        %3739 = vmatpush.msra.mxu0 0.0
        %3740 = vmatpush.msra.mxu0 0.0
        %3741 = vmatpush.msra.mxu0 0.0
        %3742 = vmatpush.msra.mxu0 0.0
        %3743 = vmatpush.msra.mxu0 0.0
        %3744 = vmatpush.msra.mxu0 0.0
        %3745 = vmatpush.msra.mxu0 0.0
        %3746 = vmatpush.msra.mxu0 0.0
        %3747 = vmatpush.msra.mxu0 0.0
        %3748 = vmatpush.msra.mxu0 0.0
        %3749 = vmatpush.msra.mxu0 0.0
        %3750 = vmatpush.msra.mxu0 0.0
        %3751 = vmatpush.msra.mxu0 0.0
        %3752 = vmatpush.msra.mxu0 %v3540
        %3753 = vmatpush.msra.mxu0 %v3537
        %3754 = vmatpush.msra.mxu0 %v3534
        %3755 = vmatmul.f32.gmra.mxu0 %v2989
        %v3756 = vpop.f32.mrf.mxu0
        %v3757 = vadd.f32 0.0, %v3756
        %3758 = vmatmul.f32.gmra.mxu0 %v2992
        %v3759 = vpop.f32.mrf.mxu0
        %v3760 = vadd.f32 0.0, %v3759
        %3761 = vmatmul.f32.gmra.mxu0 %v2995
        %v3762 = vpop.f32.mrf.mxu0
        %v3763 = vadd.f32 0.0, %v3762
        %3764 = vdwg.mxu0
        %3765 = vmatpush.msra.mxu0 0.0
        %3766 = vmatpush.msra.mxu0 0.0
        %3767 = vmatpush.msra.mxu0 0.0
        %3768 = vmatpush.msra.mxu0 0.0
        %3769 = vmatpush.msra.mxu0 0.0
        %3770 = vmatpush.msra.mxu0 0.0
        %3771 = vmatpush.msra.mxu0 0.0
        %3772 = vmatpush.msra.mxu0 0.0
        %3773 = vmatpush.msra.mxu0 0.0
        %3774 = vmatpush.msra.mxu0 0.0
        %3775 = vmatpush.msra.mxu0 0.0
        %3776 = vmatpush.msra.mxu0 0.0
        %3777 = vmatpush.msra.mxu0 0.0
        %3778 = vmatpush.msra.mxu0 %v3581
        %3779 = vmatpush.msra.mxu0 %v3578
        %3780 = vmatpush.msra.mxu0 %v3575
        %3781 = vmatmul.f32.gmra.mxu0 %v3036
        %v3782 = vpop.f32.mrf.mxu0
        %v3783 = vadd.f32 0.0, %v3782
        %3784 = vmatmul.f32.gmra.mxu0 %v3039
        %v3785 = vpop.f32.mrf.mxu0
        %v3786 = vadd.f32 0.0, %v3785
        %3787 = vmatmul.f32.gmra.mxu0 %v3042
        %v3788 = vpop.f32.mrf.mxu0
        %v3789 = vadd.f32 0.0, %v3788
        %3790 = vdwg.mxu0
        %vm3791 = vcmask 31744
        %v3792 = vsel %vm3791, %v3601, -inf
        %3793 = vmax.xlane.f32.xlu0 %v3792
        %v3794 = vpop.xlane.xlu0 %3793
        %v3795 = vsel %vm3791, %v3604, -inf
        %3796 = vmax.xlane.f32.xlu0 %v3795
        %v3797 = vpop.xlane.xlu0 %3796
        %v3798 = vsel %vm3791, %v3607, -inf
        %3799 = vmax.xlane.f32.xlu0 %v3798
        %v3800 = vpop.xlane.xlu0 %3799
        %v3801 = vsel %vm3791, %v3627, -inf
        %3802 = vmax.xlane.f32.xlu0 %v3801
        %v3803 = vpop.xlane.xlu0 %3802
        %v3804 = vsel %vm3791, %v3630, -inf
        %3805 = vmax.xlane.f32.xlu0 %v3804
        %v3806 = vpop.xlane.xlu0 %3805
        %v3807 = vsel %vm3791, %v3633, -inf
        %3808 = vmax.xlane.f32.xlu0 %v3807
        %v3809 = vpop.xlane.xlu0 %3808
        %v3810 = vsel %vm3791, %v3653, -inf
        %3811 = vmax.xlane.f32.xlu0 %v3810
        %v3812 = vpop.xlane.xlu0 %3811
        %v3813 = vsel %vm3791, %v3656, -inf
        %3814 = vmax.xlane.f32.xlu0 %v3813
        %v3815 = vpop.xlane.xlu0 %3814
        %v3816 = vsel %vm3791, %v3659, -inf
        %3817 = vmax.xlane.f32.xlu0 %v3816
        %v3818 = vpop.xlane.xlu0 %3817
        %v3819 = vsel %vm3791, %v3679, -inf
        %3820 = vmax.xlane.f32.xlu0 %v3819
        %v3821 = vpop.xlane.xlu0 %3820
        %v3822 = vsel %vm3791, %v3682, -inf
        %3823 = vmax.xlane.f32.xlu0 %v3822
        %v3824 = vpop.xlane.xlu0 %3823
        %v3825 = vsel %vm3791, %v3685, -inf
        %3826 = vmax.xlane.f32.xlu0 %v3825
        %v3827 = vpop.xlane.xlu0 %3826
        %v3828 = vsel %vm3791, %v3705, -inf
        %3829 = vmax.xlane.f32.xlu0 %v3828
        %v3830 = vpop.xlane.xlu0 %3829
        %v3831 = vsel %vm3791, %v3708, -inf
        %3832 = vmax.xlane.f32.xlu0 %v3831
        %v3833 = vpop.xlane.xlu0 %3832
        %v3834 = vsel %vm3791, %v3711, -inf
        %3835 = vmax.xlane.f32.xlu0 %v3834
        %v3836 = vpop.xlane.xlu0 %3835
        %v3837 = vsel %vm3791, %v3731, -inf
        %3838 = vmax.xlane.f32.xlu0 %v3837
        %v3839 = vpop.xlane.xlu0 %3838
        %v3840 = vsel %vm3791, %v3734, -inf
        %3841 = vmax.xlane.f32.xlu0 %v3840
        %v3842 = vpop.xlane.xlu0 %3841
        %v3843 = vsel %vm3791, %v3737, -inf
        %3844 = vmax.xlane.f32.xlu0 %v3843
        %v3845 = vpop.xlane.xlu0 %3844
        %v3846 = vsel %vm3791, %v3757, -inf
        %3847 = vmax.xlane.f32.xlu0 %v3846
        %v3848 = vpop.xlane.xlu0 %3847
        %v3849 = vsel %vm3791, %v3760, -inf
        %3850 = vmax.xlane.f32.xlu0 %v3849
        %v3851 = vpop.xlane.xlu0 %3850
        %v3852 = vsel %vm3791, %v3763, -inf
        %3853 = vmax.xlane.f32.xlu0 %v3852
        %v3854 = vpop.xlane.xlu0 %3853
        %v3855 = vsel %vm3791, %v3783, -inf
        %3856 = vmax.xlane.f32.xlu0 %v3855
        %v3857 = vpop.xlane.xlu0 %3856
        %v3858 = vsel %vm3791, %v3786, -inf
        %3859 = vmax.xlane.f32.xlu0 %v3858
        %v3860 = vpop.xlane.xlu0 %3859
        %v3861 = vsel %vm3791, %v3789, -inf
        %3862 = vmax.xlane.f32.xlu0 %v3861
        %v3863 = vpop.xlane.xlu0 %3862
        %v3864 = vsub.f32 %v3601, %v3794
        %v3865 = vsub.f32 %v3604, %v3797
        %v3866 = vsub.f32 %v3607, %v3800
        %v3867 = vsub.f32 %v3627, %v3803
        %v3868 = vsub.f32 %v3630, %v3806
        %v3869 = vsub.f32 %v3633, %v3809
        %v3870 = vsub.f32 %v3653, %v3812
        %v3871 = vsub.f32 %v3656, %v3815
        %v3872 = vsub.f32 %v3659, %v3818
        %v3873 = vsub.f32 %v3679, %v3821
        %v3874 = vsub.f32 %v3682, %v3824
        %v3875 = vsub.f32 %v3685, %v3827
        %v3876 = vsub.f32 %v3705, %v3830
        %v3877 = vsub.f32 %v3708, %v3833
        %v3878 = vsub.f32 %v3711, %v3836
        %v3879 = vsub.f32 %v3731, %v3839
        %v3880 = vsub.f32 %v3734, %v3842
        %v3881 = vsub.f32 %v3737, %v3845
        %v3882 = vsub.f32 %v3757, %v3848
        %v3883 = vsub.f32 %v3760, %v3851
        %v3884 = vsub.f32 %v3763, %v3854
        %v3885 = vsub.f32 %v3783, %v3857
        %v3886 = vsub.f32 %v3786, %v3860
        %v3887 = vsub.f32 %v3789, %v3863
        %v3888 = vmul.f32 %v3864, 1.442695
        %v3889 = vpow.pop %v3888
        %v3890 = vmul.f32 %v3865, 1.442695
        %v3891 = vpow.pop %v3890
        %v3892 = vmul.f32 %v3866, 1.442695
        %v3893 = vpow.pop %v3892
        %v3894 = vmul.f32 %v3867, 1.442695
        %v3895 = vpow.pop %v3894
        %v3896 = vmul.f32 %v3868, 1.442695
        %v3897 = vpow.pop %v3896
        %v3898 = vmul.f32 %v3869, 1.442695
        %v3899 = vpow.pop %v3898
        %v3900 = vmul.f32 %v3870, 1.442695
        %v3901 = vpow.pop %v3900
        %v3902 = vmul.f32 %v3871, 1.442695
        %v3903 = vpow.pop %v3902
        %v3904 = vmul.f32 %v3872, 1.442695
        %v3905 = vpow.pop %v3904
        %v3906 = vmul.f32 %v3873, 1.442695
        %v3907 = vpow.pop %v3906
        %v3908 = vmul.f32 %v3874, 1.442695
        %v3909 = vpow.pop %v3908
        %v3910 = vmul.f32 %v3875, 1.442695
        %v3911 = vpow.pop %v3910
        %v3912 = vmul.f32 %v3876, 1.442695
        %v3913 = vpow.pop %v3912
        %v3914 = vmul.f32 %v3877, 1.442695
        %v3915 = vpow.pop %v3914
        %v3916 = vmul.f32 %v3878, 1.442695
        %v3917 = vpow.pop %v3916
        %v3918 = vmul.f32 %v3879, 1.442695
        %v3919 = vpow.pop %v3918
        %v3920 = vmul.f32 %v3880, 1.442695
        %v3921 = vpow.pop %v3920
        %v3922 = vmul.f32 %v3881, 1.442695
        %v3923 = vpow.pop %v3922
        %v3924 = vmul.f32 %v3882, 1.442695
        %v3925 = vpow.pop %v3924
        %v3926 = vmul.f32 %v3883, 1.442695
        %v3927 = vpow.pop %v3926
        %v3928 = vmul.f32 %v3884, 1.442695
        %v3929 = vpow.pop %v3928
        %v3930 = vmul.f32 %v3885, 1.442695
        %v3931 = vpow.pop %v3930
        %v3932 = vmul.f32 %v3886, 1.442695
        %v3933 = vpow.pop %v3932
        %v3934 = vmul.f32 %v3887, 1.442695
        %v3935 = vpow.pop %v3934
        %v3936 = vsel %vm3791, %v3889, 0.0
        %3937 = vadd.xlane.f32.xlu0 %v3936
        %v3938 = vpop.xlane.xlu0 %3937
        %v3939 = vsel %vm3791, %v3891, 0.0
        %3940 = vadd.xlane.f32.xlu0 %v3939
        %v3941 = vpop.xlane.xlu0 %3940
        %v3942 = vsel %vm3791, %v3893, 0.0
        %3943 = vadd.xlane.f32.xlu0 %v3942
        %v3944 = vpop.xlane.xlu0 %3943
        %v3945 = vsel %vm3791, %v3895, 0.0
        %3946 = vadd.xlane.f32.xlu0 %v3945
        %v3947 = vpop.xlane.xlu0 %3946
        %v3948 = vsel %vm3791, %v3897, 0.0
        %3949 = vadd.xlane.f32.xlu0 %v3948
        %v3950 = vpop.xlane.xlu0 %3949
        %v3951 = vsel %vm3791, %v3899, 0.0
        %3952 = vadd.xlane.f32.xlu0 %v3951
        %v3953 = vpop.xlane.xlu0 %3952
        %v3954 = vsel %vm3791, %v3901, 0.0
        %3955 = vadd.xlane.f32.xlu0 %v3954
        %v3956 = vpop.xlane.xlu0 %3955
        %v3957 = vsel %vm3791, %v3903, 0.0
        %3958 = vadd.xlane.f32.xlu0 %v3957
        %v3959 = vpop.xlane.xlu0 %3958
        %v3960 = vsel %vm3791, %v3905, 0.0
        %3961 = vadd.xlane.f32.xlu0 %v3960
        %v3962 = vpop.xlane.xlu0 %3961
        %v3963 = vsel %vm3791, %v3907, 0.0
        %3964 = vadd.xlane.f32.xlu0 %v3963
        %v3965 = vpop.xlane.xlu0 %3964
        %v3966 = vsel %vm3791, %v3909, 0.0
        %3967 = vadd.xlane.f32.xlu0 %v3966
        %v3968 = vpop.xlane.xlu0 %3967
        %v3969 = vsel %vm3791, %v3911, 0.0
        %3970 = vadd.xlane.f32.xlu0 %v3969
        %v3971 = vpop.xlane.xlu0 %3970
        %v3972 = vsel %vm3791, %v3913, 0.0
        %3973 = vadd.xlane.f32.xlu0 %v3972
        %v3974 = vpop.xlane.xlu0 %3973
        %v3975 = vsel %vm3791, %v3915, 0.0
        %3976 = vadd.xlane.f32.xlu0 %v3975
        %v3977 = vpop.xlane.xlu0 %3976
        %v3978 = vsel %vm3791, %v3917, 0.0
        %3979 = vadd.xlane.f32.xlu0 %v3978
        %v3980 = vpop.xlane.xlu0 %3979
        %v3981 = vsel %vm3791, %v3919, 0.0
        %3982 = vadd.xlane.f32.xlu0 %v3981
        %v3983 = vpop.xlane.xlu0 %3982
        %v3984 = vsel %vm3791, %v3921, 0.0
        %3985 = vadd.xlane.f32.xlu0 %v3984
        %v3986 = vpop.xlane.xlu0 %3985
        %v3987 = vsel %vm3791, %v3923, 0.0
        %3988 = vadd.xlane.f32.xlu0 %v3987
        %v3989 = vpop.xlane.xlu0 %3988
        %v3990 = vsel %vm3791, %v3925, 0.0
        %3991 = vadd.xlane.f32.xlu0 %v3990
        %v3992 = vpop.xlane.xlu0 %3991
        %v3993 = vsel %vm3791, %v3927, 0.0
        %3994 = vadd.xlane.f32.xlu0 %v3993
        %v3995 = vpop.xlane.xlu0 %3994
        %v3996 = vsel %vm3791, %v3929, 0.0
        %3997 = vadd.xlane.f32.xlu0 %v3996
        %v3998 = vpop.xlane.xlu0 %3997
        %v3999 = vsel %vm3791, %v3931, 0.0
        %4000 = vadd.xlane.f32.xlu0 %v3999
        %v4001 = vpop.xlane.xlu0 %4000
        %v4002 = vsel %vm3791, %v3933, 0.0
        %4003 = vadd.xlane.f32.xlu0 %v4002
        %v4004 = vpop.xlane.xlu0 %4003
        %v4005 = vsel %vm3791, %v3935, 0.0
        %4006 = vadd.xlane.f32.xlu0 %v4005
        %v4007 = vpop.xlane.xlu0 %4006
        %v4008 = vrcp.pop %v3938
        %v4009 = vmul.f32 %v3938, %v4008
        %v4010 = vsub.f32 1.0, %v4009
        %v4011 = vmul.f32 %v4008, %v4010
        %v4012 = vadd.f32 %v4008, %v4011
        %vm4013 = vweird.f32 %v3938
        %vm4014 = vweird.f32 %v4008
        %vm4015 = vmor %vm4013, %vm4014
        %v4016 = vsel %vm4015, %v4008, %v4012
        %v4017 = vand.u32 2147483647, %v3938
        %vm4018 = vcmp.eq.f32.partialorder %v4017, 8.507059e+37
        %v4019 = vand.u32 %v3938, 2147483648
        %v4020 = vor.u32 1.1754944e-38, %v4019
        %v4021 = vsel %vm4018, %v4020, %v4016
        %v4022 = vmul.f32 %v3889, %v4021
        %v4023 = vrcp.pop %v3941
        %v4024 = vmul.f32 %v3941, %v4023
        %v4025 = vsub.f32 1.0, %v4024
        %v4026 = vmul.f32 %v4023, %v4025
        %v4027 = vadd.f32 %v4023, %v4026
        %vm4028 = vweird.f32 %v3941
        %vm4029 = vweird.f32 %v4023
        %vm4030 = vmor %vm4028, %vm4029
        %v4031 = vsel %vm4030, %v4023, %v4027
        %v4032 = vand.u32 2147483647, %v3941
        %vm4033 = vcmp.eq.f32.partialorder %v4032, 8.507059e+37
        %v4034 = vand.u32 %v3941, 2147483648
        %v4035 = vor.u32 1.1754944e-38, %v4034
        %v4036 = vsel %vm4033, %v4035, %v4031
        %v4037 = vmul.f32 %v3891, %v4036
        %v4038 = vrcp.pop %v3944
        %v4039 = vmul.f32 %v3944, %v4038
        %v4040 = vsub.f32 1.0, %v4039
        %v4041 = vmul.f32 %v4038, %v4040
        %v4042 = vadd.f32 %v4038, %v4041
        %vm4043 = vweird.f32 %v3944
        %vm4044 = vweird.f32 %v4038
        %vm4045 = vmor %vm4043, %vm4044
        %v4046 = vsel %vm4045, %v4038, %v4042
        %v4047 = vand.u32 2147483647, %v3944
        %vm4048 = vcmp.eq.f32.partialorder %v4047, 8.507059e+37
        %v4049 = vand.u32 %v3944, 2147483648
        %v4050 = vor.u32 1.1754944e-38, %v4049
        %v4051 = vsel %vm4048, %v4050, %v4046
        %v4052 = vmul.f32 %v3893, %v4051
        %v4053 = vrcp.pop %v3947
        %v4054 = vmul.f32 %v3947, %v4053
        %v4055 = vsub.f32 1.0, %v4054
        %v4056 = vmul.f32 %v4053, %v4055
        %v4057 = vadd.f32 %v4053, %v4056
        %vm4058 = vweird.f32 %v3947
        %vm4059 = vweird.f32 %v4053
        %vm4060 = vmor %vm4058, %vm4059
        %v4061 = vsel %vm4060, %v4053, %v4057
        %v4062 = vand.u32 2147483647, %v3947
        %vm4063 = vcmp.eq.f32.partialorder %v4062, 8.507059e+37
        %v4064 = vand.u32 %v3947, 2147483648
        %v4065 = vor.u32 1.1754944e-38, %v4064
        %v4066 = vsel %vm4063, %v4065, %v4061
        %v4067 = vmul.f32 %v3895, %v4066
        %v4068 = vrcp.pop %v3950
        %v4069 = vmul.f32 %v3950, %v4068
        %v4070 = vsub.f32 1.0, %v4069
        %v4071 = vmul.f32 %v4068, %v4070
        %v4072 = vadd.f32 %v4068, %v4071
        %vm4073 = vweird.f32 %v3950
        %vm4074 = vweird.f32 %v4068
        %vm4075 = vmor %vm4073, %vm4074
        %v4076 = vsel %vm4075, %v4068, %v4072
        %v4077 = vand.u32 2147483647, %v3950
        %vm4078 = vcmp.eq.f32.partialorder %v4077, 8.507059e+37
        %v4079 = vand.u32 %v3950, 2147483648
        %v4080 = vor.u32 1.1754944e-38, %v4079
        %v4081 = vsel %vm4078, %v4080, %v4076
        %v4082 = vmul.f32 %v3897, %v4081
        %v4083 = vrcp.pop %v3953
        %v4084 = vmul.f32 %v3953, %v4083
        %v4085 = vsub.f32 1.0, %v4084
        %v4086 = vmul.f32 %v4083, %v4085
        %v4087 = vadd.f32 %v4083, %v4086
        %vm4088 = vweird.f32 %v3953
        %vm4089 = vweird.f32 %v4083
        %vm4090 = vmor %vm4088, %vm4089
        %v4091 = vsel %vm4090, %v4083, %v4087
        %v4092 = vand.u32 2147483647, %v3953
        %vm4093 = vcmp.eq.f32.partialorder %v4092, 8.507059e+37
        %v4094 = vand.u32 %v3953, 2147483648
        %v4095 = vor.u32 1.1754944e-38, %v4094
        %v4096 = vsel %vm4093, %v4095, %v4091
        %v4097 = vmul.f32 %v3899, %v4096
        %v4098 = vrcp.pop %v3956
        %v4099 = vmul.f32 %v3956, %v4098
        %v4100 = vsub.f32 1.0, %v4099
        %v4101 = vmul.f32 %v4098, %v4100
        %v4102 = vadd.f32 %v4098, %v4101
        %vm4103 = vweird.f32 %v3956
        %vm4104 = vweird.f32 %v4098
        %vm4105 = vmor %vm4103, %vm4104
        %v4106 = vsel %vm4105, %v4098, %v4102
        %v4107 = vand.u32 2147483647, %v3956
        %vm4108 = vcmp.eq.f32.partialorder %v4107, 8.507059e+37
        %v4109 = vand.u32 %v3956, 2147483648
        %v4110 = vor.u32 1.1754944e-38, %v4109
        %v4111 = vsel %vm4108, %v4110, %v4106
        %v4112 = vmul.f32 %v3901, %v4111
        %v4113 = vrcp.pop %v3959
        %v4114 = vmul.f32 %v3959, %v4113
        %v4115 = vsub.f32 1.0, %v4114
        %v4116 = vmul.f32 %v4113, %v4115
        %v4117 = vadd.f32 %v4113, %v4116
        %vm4118 = vweird.f32 %v3959
        %vm4119 = vweird.f32 %v4113
        %vm4120 = vmor %vm4118, %vm4119
        %v4121 = vsel %vm4120, %v4113, %v4117
        %v4122 = vand.u32 2147483647, %v3959
        %vm4123 = vcmp.eq.f32.partialorder %v4122, 8.507059e+37
        %v4124 = vand.u32 %v3959, 2147483648
        %v4125 = vor.u32 1.1754944e-38, %v4124
        %v4126 = vsel %vm4123, %v4125, %v4121
        %v4127 = vmul.f32 %v3903, %v4126
        %v4128 = vrcp.pop %v3962
        %v4129 = vmul.f32 %v3962, %v4128
        %v4130 = vsub.f32 1.0, %v4129
        %v4131 = vmul.f32 %v4128, %v4130
        %v4132 = vadd.f32 %v4128, %v4131
        %vm4133 = vweird.f32 %v3962
        %vm4134 = vweird.f32 %v4128
        %vm4135 = vmor %vm4133, %vm4134
        %v4136 = vsel %vm4135, %v4128, %v4132
        %v4137 = vand.u32 2147483647, %v3962
        %vm4138 = vcmp.eq.f32.partialorder %v4137, 8.507059e+37
        %v4139 = vand.u32 %v3962, 2147483648
        %v4140 = vor.u32 1.1754944e-38, %v4139
        %v4141 = vsel %vm4138, %v4140, %v4136
        %v4142 = vmul.f32 %v3905, %v4141
        %v4143 = vrcp.pop %v3965
        %v4144 = vmul.f32 %v3965, %v4143
        %v4145 = vsub.f32 1.0, %v4144
        %v4146 = vmul.f32 %v4143, %v4145
        %v4147 = vadd.f32 %v4143, %v4146
        %vm4148 = vweird.f32 %v3965
        %vm4149 = vweird.f32 %v4143
        %vm4150 = vmor %vm4148, %vm4149
        %v4151 = vsel %vm4150, %v4143, %v4147
        %v4152 = vand.u32 2147483647, %v3965
        %vm4153 = vcmp.eq.f32.partialorder %v4152, 8.507059e+37
        %v4154 = vand.u32 %v3965, 2147483648
        %v4155 = vor.u32 1.1754944e-38, %v4154
        %v4156 = vsel %vm4153, %v4155, %v4151
        %v4157 = vmul.f32 %v3907, %v4156
        %v4158 = vrcp.pop %v3968
        %v4159 = vmul.f32 %v3968, %v4158
        %v4160 = vsub.f32 1.0, %v4159
        %v4161 = vmul.f32 %v4158, %v4160
        %v4162 = vadd.f32 %v4158, %v4161
        %vm4163 = vweird.f32 %v3968
        %vm4164 = vweird.f32 %v4158
        %vm4165 = vmor %vm4163, %vm4164
        %v4166 = vsel %vm4165, %v4158, %v4162
        %v4167 = vand.u32 2147483647, %v3968
        %vm4168 = vcmp.eq.f32.partialorder %v4167, 8.507059e+37
        %v4169 = vand.u32 %v3968, 2147483648
        %v4170 = vor.u32 1.1754944e-38, %v4169
        %v4171 = vsel %vm4168, %v4170, %v4166
        %v4172 = vmul.f32 %v3909, %v4171
        %v4173 = vrcp.pop %v3971
        %v4174 = vmul.f32 %v3971, %v4173
        %v4175 = vsub.f32 1.0, %v4174
        %v4176 = vmul.f32 %v4173, %v4175
        %v4177 = vadd.f32 %v4173, %v4176
        %vm4178 = vweird.f32 %v3971
        %vm4179 = vweird.f32 %v4173
        %vm4180 = vmor %vm4178, %vm4179
        %v4181 = vsel %vm4180, %v4173, %v4177
        %v4182 = vand.u32 2147483647, %v3971
        %vm4183 = vcmp.eq.f32.partialorder %v4182, 8.507059e+37
        %v4184 = vand.u32 %v3971, 2147483648
        %v4185 = vor.u32 1.1754944e-38, %v4184
        %v4186 = vsel %vm4183, %v4185, %v4181
        %v4187 = vmul.f32 %v3911, %v4186
        %v4188 = vrcp.pop %v3974
        %v4189 = vmul.f32 %v3974, %v4188
        %v4190 = vsub.f32 1.0, %v4189
        %v4191 = vmul.f32 %v4188, %v4190
        %v4192 = vadd.f32 %v4188, %v4191
        %vm4193 = vweird.f32 %v3974
        %vm4194 = vweird.f32 %v4188
        %vm4195 = vmor %vm4193, %vm4194
        %v4196 = vsel %vm4195, %v4188, %v4192
        %v4197 = vand.u32 2147483647, %v3974
        %vm4198 = vcmp.eq.f32.partialorder %v4197, 8.507059e+37
        %v4199 = vand.u32 %v3974, 2147483648
        %v4200 = vor.u32 1.1754944e-38, %v4199
        %v4201 = vsel %vm4198, %v4200, %v4196
        %v4202 = vmul.f32 %v3913, %v4201
        %v4203 = vrcp.pop %v3977
        %v4204 = vmul.f32 %v3977, %v4203
        %v4205 = vsub.f32 1.0, %v4204
        %v4206 = vmul.f32 %v4203, %v4205
        %v4207 = vadd.f32 %v4203, %v4206
        %vm4208 = vweird.f32 %v3977
        %vm4209 = vweird.f32 %v4203
        %vm4210 = vmor %vm4208, %vm4209
        %v4211 = vsel %vm4210, %v4203, %v4207
        %v4212 = vand.u32 2147483647, %v3977
        %vm4213 = vcmp.eq.f32.partialorder %v4212, 8.507059e+37
        %v4214 = vand.u32 %v3977, 2147483648
        %v4215 = vor.u32 1.1754944e-38, %v4214
        %v4216 = vsel %vm4213, %v4215, %v4211
        %v4217 = vmul.f32 %v3915, %v4216
        %v4218 = vrcp.pop %v3980
        %v4219 = vmul.f32 %v3980, %v4218
        %v4220 = vsub.f32 1.0, %v4219
        %v4221 = vmul.f32 %v4218, %v4220
        %v4222 = vadd.f32 %v4218, %v4221
        %vm4223 = vweird.f32 %v3980
        %vm4224 = vweird.f32 %v4218
        %vm4225 = vmor %vm4223, %vm4224
        %v4226 = vsel %vm4225, %v4218, %v4222
        %v4227 = vand.u32 2147483647, %v3980
        %vm4228 = vcmp.eq.f32.partialorder %v4227, 8.507059e+37
        %v4229 = vand.u32 %v3980, 2147483648
        %v4230 = vor.u32 1.1754944e-38, %v4229
        %v4231 = vsel %vm4228, %v4230, %v4226
        %v4232 = vmul.f32 %v3917, %v4231
        %v4233 = vrcp.pop %v3983
        %v4234 = vmul.f32 %v3983, %v4233
        %v4235 = vsub.f32 1.0, %v4234
        %v4236 = vmul.f32 %v4233, %v4235
        %v4237 = vadd.f32 %v4233, %v4236
        %vm4238 = vweird.f32 %v3983
        %vm4239 = vweird.f32 %v4233
        %vm4240 = vmor %vm4238, %vm4239
        %v4241 = vsel %vm4240, %v4233, %v4237
        %v4242 = vand.u32 2147483647, %v3983
        %vm4243 = vcmp.eq.f32.partialorder %v4242, 8.507059e+37
        %v4244 = vand.u32 %v3983, 2147483648
        %v4245 = vor.u32 1.1754944e-38, %v4244
        %v4246 = vsel %vm4243, %v4245, %v4241
        %v4247 = vmul.f32 %v3919, %v4246
        %v4248 = vrcp.pop %v3986
        %v4249 = vmul.f32 %v3986, %v4248
        %v4250 = vsub.f32 1.0, %v4249
        %v4251 = vmul.f32 %v4248, %v4250
        %v4252 = vadd.f32 %v4248, %v4251
        %vm4253 = vweird.f32 %v3986
        %vm4254 = vweird.f32 %v4248
        %vm4255 = vmor %vm4253, %vm4254
        %v4256 = vsel %vm4255, %v4248, %v4252
        %v4257 = vand.u32 2147483647, %v3986
        %vm4258 = vcmp.eq.f32.partialorder %v4257, 8.507059e+37
        %v4259 = vand.u32 %v3986, 2147483648
        %v4260 = vor.u32 1.1754944e-38, %v4259
        %v4261 = vsel %vm4258, %v4260, %v4256
        %v4262 = vmul.f32 %v3921, %v4261
        %v4263 = vrcp.pop %v3989
        %v4264 = vmul.f32 %v3989, %v4263
        %v4265 = vsub.f32 1.0, %v4264
        %v4266 = vmul.f32 %v4263, %v4265
        %v4267 = vadd.f32 %v4263, %v4266
        %vm4268 = vweird.f32 %v3989
        %vm4269 = vweird.f32 %v4263
        %vm4270 = vmor %vm4268, %vm4269
        %v4271 = vsel %vm4270, %v4263, %v4267
        %v4272 = vand.u32 2147483647, %v3989
        %vm4273 = vcmp.eq.f32.partialorder %v4272, 8.507059e+37
        %v4274 = vand.u32 %v3989, 2147483648
        %v4275 = vor.u32 1.1754944e-38, %v4274
        %v4276 = vsel %vm4273, %v4275, %v4271
        %v4277 = vmul.f32 %v3923, %v4276
        %v4278 = vrcp.pop %v3992
        %v4279 = vmul.f32 %v3992, %v4278
        %v4280 = vsub.f32 1.0, %v4279
        %v4281 = vmul.f32 %v4278, %v4280
        %v4282 = vadd.f32 %v4278, %v4281
        %vm4283 = vweird.f32 %v3992
        %vm4284 = vweird.f32 %v4278
        %vm4285 = vmor %vm4283, %vm4284
        %v4286 = vsel %vm4285, %v4278, %v4282
        %v4287 = vand.u32 2147483647, %v3992
        %vm4288 = vcmp.eq.f32.partialorder %v4287, 8.507059e+37
        %v4289 = vand.u32 %v3992, 2147483648
        %v4290 = vor.u32 1.1754944e-38, %v4289
        %v4291 = vsel %vm4288, %v4290, %v4286
        %v4292 = vmul.f32 %v3925, %v4291
        %v4293 = vrcp.pop %v3995
        %v4294 = vmul.f32 %v3995, %v4293
        %v4295 = vsub.f32 1.0, %v4294
        %v4296 = vmul.f32 %v4293, %v4295
        %v4297 = vadd.f32 %v4293, %v4296
        %vm4298 = vweird.f32 %v3995
        %vm4299 = vweird.f32 %v4293
        %vm4300 = vmor %vm4298, %vm4299
        %v4301 = vsel %vm4300, %v4293, %v4297
        %v4302 = vand.u32 2147483647, %v3995
        %vm4303 = vcmp.eq.f32.partialorder %v4302, 8.507059e+37
        %v4304 = vand.u32 %v3995, 2147483648
        %v4305 = vor.u32 1.1754944e-38, %v4304
        %v4306 = vsel %vm4303, %v4305, %v4301
        %v4307 = vmul.f32 %v3927, %v4306
        %v4308 = vrcp.pop %v3998
        %v4309 = vmul.f32 %v3998, %v4308
        %v4310 = vsub.f32 1.0, %v4309
        %v4311 = vmul.f32 %v4308, %v4310
        %v4312 = vadd.f32 %v4308, %v4311
        %vm4313 = vweird.f32 %v3998
        %vm4314 = vweird.f32 %v4308
        %vm4315 = vmor %vm4313, %vm4314
        %v4316 = vsel %vm4315, %v4308, %v4312
        %v4317 = vand.u32 2147483647, %v3998
        %vm4318 = vcmp.eq.f32.partialorder %v4317, 8.507059e+37
        %v4319 = vand.u32 %v3998, 2147483648
        %v4320 = vor.u32 1.1754944e-38, %v4319
        %v4321 = vsel %vm4318, %v4320, %v4316
        %v4322 = vmul.f32 %v3929, %v4321
        %v4323 = vrcp.pop %v4001
        %v4324 = vmul.f32 %v4001, %v4323
        %v4325 = vsub.f32 1.0, %v4324
        %v4326 = vmul.f32 %v4323, %v4325
        %v4327 = vadd.f32 %v4323, %v4326
        %vm4328 = vweird.f32 %v4001
        %vm4329 = vweird.f32 %v4323
        %vm4330 = vmor %vm4328, %vm4329
        %v4331 = vsel %vm4330, %v4323, %v4327
        %v4332 = vand.u32 2147483647, %v4001
        %vm4333 = vcmp.eq.f32.partialorder %v4332, 8.507059e+37
        %v4334 = vand.u32 %v4001, 2147483648
        %v4335 = vor.u32 1.1754944e-38, %v4334
        %v4336 = vsel %vm4333, %v4335, %v4331
        %v4337 = vmul.f32 %v3931, %v4336
        %v4338 = vrcp.pop %v4004
        %v4339 = vmul.f32 %v4004, %v4338
        %v4340 = vsub.f32 1.0, %v4339
        %v4341 = vmul.f32 %v4338, %v4340
        %v4342 = vadd.f32 %v4338, %v4341
        %vm4343 = vweird.f32 %v4004
        %vm4344 = vweird.f32 %v4338
        %vm4345 = vmor %vm4343, %vm4344
        %v4346 = vsel %vm4345, %v4338, %v4342
        %v4347 = vand.u32 2147483647, %v4004
        %vm4348 = vcmp.eq.f32.partialorder %v4347, 8.507059e+37
        %v4349 = vand.u32 %v4004, 2147483648
        %v4350 = vor.u32 1.1754944e-38, %v4349
        %v4351 = vsel %vm4348, %v4350, %v4346
        %v4352 = vmul.f32 %v3933, %v4351
        %v4353 = vrcp.pop %v4007
        %v4354 = vmul.f32 %v4007, %v4353
        %v4355 = vsub.f32 1.0, %v4354
        %v4356 = vmul.f32 %v4353, %v4355
        %v4357 = vadd.f32 %v4353, %v4356
        %vm4358 = vweird.f32 %v4007
        %vm4359 = vweird.f32 %v4353
        %vm4360 = vmor %vm4358, %vm4359
        %v4361 = vsel %vm4360, %v4353, %v4357
        %v4362 = vand.u32 2147483647, %v4007
        %vm4363 = vcmp.eq.f32.partialorder %v4362, 8.507059e+37
        %v4364 = vand.u32 %v4007, 2147483648
        %v4365 = vor.u32 1.1754944e-38, %v4364
        %v4366 = vsel %vm4363, %v4365, %v4361
        %v4367 = vmul.f32 %v3935, %v4366
        %4368 = vst.msk [vmem:[%s440] sm:$0xff] %vm3791, %v4022
        %4369 = vst.msk [vmem:[%s440 + $0x8] sm:$0xff] %vm3791, %v4037
        %4370 = vst.msk [vmem:[%s440 + $0x10] sm:$0xff] %vm3791, %v4052
        %4371 = vst.msk [vmem:[%s440 + $0x18] sm:$0xff] %vm3791, %v4067
        %4372 = vst.msk [vmem:[%s440 + $0x20] sm:$0xff] %vm3791, %v4082
        %4373 = vst.msk [vmem:[%s440 + $0x28] sm:$0xff] %vm3791, %v4097
        %4374 = vst.msk [vmem:[%s440 + $0x30] sm:$0xff] %vm3791, %v4112
        %4375 = vst.msk [vmem:[%s440 + $0x38] sm:$0xff] %vm3791, %v4127
        %4376 = vst.msk [vmem:[%s440 + $0x40] sm:$0xff] %vm3791, %v4142
        %4377 = vst.msk [vmem:[%s440 + $0x48] sm:$0xff] %vm3791, %v4157
        %4378 = vst.msk [vmem:[%s440 + $0x50] sm:$0xff] %vm3791, %v4172
        %4379 = vst.msk [vmem:[%s440 + $0x58] sm:$0xff] %vm3791, %v4187
        %4380 = vst.msk [vmem:[%s440 + $0x60] sm:$0xff] %vm3791, %v4202
        %4381 = vst.msk [vmem:[%s440 + $0x68] sm:$0xff] %vm3791, %v4217
        %4382 = vst.msk [vmem:[%s440 + $0x70] sm:$0xff] %vm3791, %v4232
        %4383 = vst.msk [vmem:[%s440 + $0x78] sm:$0xff] %vm3791, %v4247
        %4384 = vst.msk [vmem:[%s440 + $0x80] sm:$0xff] %vm3791, %v4262
        %4385 = vst.msk [vmem:[%s440 + $0x88] sm:$0xff] %vm3791, %v4277
        %4386 = vst.msk [vmem:[%s440 + $0x90] sm:$0xff] %vm3791, %v4292
        %4387 = vst.msk [vmem:[%s440 + $0x98] sm:$0xff] %vm3791, %v4307
        %4388 = vst.msk [vmem:[%s440 + $0xa0] sm:$0xff] %vm3791, %v4322
        %4389 = vst.msk [vmem:[%s440 + $0xa8] sm:$0xff] %vm3791, %v4337
        %4390 = vst.msk [vmem:[%s440 + $0xb0] sm:$0xff] %vm3791, %v4352
        %4391 = vst.msk [vmem:[%s440 + $0xb8] sm:$0xff] %vm3791, %v4367
        %4393 = vset.pattern.permute.xlu0 0
        %4394 = vperm.xlu0 %4393, %v4022
        %v4395 = vpop.permute.xlu0 %4394
        %4398 = vset.pattern.permute.xlu0 0
        %4399 = vperm.xlu0 %4398, %v4037
        %v4400 = vpop.permute.xlu0 %4399
        %4403 = vset.pattern.permute.xlu0 0
        %4404 = vperm.xlu0 %4403, %v4052
        %v4405 = vpop.permute.xlu0 %4404
        %4408 = vset.pattern.permute.xlu0 0
        %4409 = vperm.xlu0 %4408, %v4067
        %v4410 = vpop.permute.xlu0 %4409
        %4413 = vset.pattern.permute.xlu0 0
        %4414 = vperm.xlu0 %4413, %v4082
        %v4415 = vpop.permute.xlu0 %4414
        %4418 = vset.pattern.permute.xlu0 0
        %4419 = vperm.xlu0 %4418, %v4097
        %v4420 = vpop.permute.xlu0 %4419
        %4423 = vset.pattern.permute.xlu0 0
        %4424 = vperm.xlu0 %4423, %v4112
        %v4425 = vpop.permute.xlu0 %4424
        %4428 = vset.pattern.permute.xlu0 0
        %4429 = vperm.xlu0 %4428, %v4127
        %v4430 = vpop.permute.xlu0 %4429
        %4433 = vset.pattern.permute.xlu0 0
        %4434 = vperm.xlu0 %4433, %v4142
        %v4435 = vpop.permute.xlu0 %4434
        %4438 = vset.pattern.permute.xlu0 0
        %4439 = vperm.xlu0 %4438, %v4157
        %v4440 = vpop.permute.xlu0 %4439
        %4443 = vset.pattern.permute.xlu0 0
        %4444 = vperm.xlu0 %4443, %v4172
        %v4445 = vpop.permute.xlu0 %4444
        %4448 = vset.pattern.permute.xlu0 0
        %4449 = vperm.xlu0 %4448, %v4187
        %v4450 = vpop.permute.xlu0 %4449
        %4453 = vset.pattern.permute.xlu0 0
        %4454 = vperm.xlu0 %4453, %v4202
        %v4455 = vpop.permute.xlu0 %4454
        %4458 = vset.pattern.permute.xlu0 0
        %4459 = vperm.xlu0 %4458, %v4217
        %v4460 = vpop.permute.xlu0 %4459
        %4463 = vset.pattern.permute.xlu0 0
        %4464 = vperm.xlu0 %4463, %v4232
        %v4465 = vpop.permute.xlu0 %4464
        %4468 = vset.pattern.permute.xlu0 0
        %4469 = vperm.xlu0 %4468, %v4247
        %v4470 = vpop.permute.xlu0 %4469
        %4473 = vset.pattern.permute.xlu0 0
        %4474 = vperm.xlu0 %4473, %v4262
        %v4475 = vpop.permute.xlu0 %4474
        %4478 = vset.pattern.permute.xlu0 0
        %4479 = vperm.xlu0 %4478, %v4277
        %v4480 = vpop.permute.xlu0 %4479
        %4483 = vset.pattern.permute.xlu0 0
        %4484 = vperm.xlu0 %4483, %v4292
        %v4485 = vpop.permute.xlu0 %4484
        %4488 = vset.pattern.permute.xlu0 0
        %4489 = vperm.xlu0 %4488, %v4307
        %v4490 = vpop.permute.xlu0 %4489
        %4493 = vset.pattern.permute.xlu0 0
        %4494 = vperm.xlu0 %4493, %v4322
        %v4495 = vpop.permute.xlu0 %4494
        %4498 = vset.pattern.permute.xlu0 0
        %4499 = vperm.xlu0 %4498, %v4337
        %v4500 = vpop.permute.xlu0 %4499
        %4503 = vset.pattern.permute.xlu0 0
        %4504 = vperm.xlu0 %4503, %v4352
        %v4505 = vpop.permute.xlu0 %4504
        %4508 = vset.pattern.permute.xlu0 0
        %4509 = vperm.xlu0 %4508, %v4367
        %v4510 = vpop.permute.xlu0 %4509
        %v4512 = vmul.f32 %v4395, %v3227
        %v4513 = vmul.f32 %v4400, %v3228
        %v4514 = vmul.f32 %v4405, %v3229
        %v4515 = vmul.f32 %v4410, %v3230
        %v4516 = vmul.f32 %v4415, %v3231
        %v4517 = vmul.f32 %v4420, %v3232
        %v4518 = vmul.f32 %v4425, %v3233
        %v4519 = vmul.f32 %v4430, %v3234
        %v4520 = vmul.f32 %v4435, %v3235
        %v4521 = vmul.f32 %v4440, %v3236
        %v4522 = vmul.f32 %v4445, %v3237
        %v4523 = vmul.f32 %v4450, %v3238
        %v4524 = vmul.f32 %v4455, %v3239
        %v4525 = vmul.f32 %v4460, %v3240
        %v4526 = vmul.f32 %v4465, %v3241
        %v4527 = vmul.f32 %v4470, %v3242
        %v4528 = vmul.f32 %v4475, %v3243
        %v4529 = vmul.f32 %v4480, %v3244
        %v4530 = vmul.f32 %v4485, %v3245
        %v4531 = vmul.f32 %v4490, %v3246
        %v4532 = vmul.f32 %v4495, %v3247
        %v4533 = vmul.f32 %v4500, %v3248
        %v4534 = vmul.f32 %v4505, %v3249
        %v4535 = vmul.f32 %v4510, %v3250
        %vm4536 = vcmask 523520
        %v4537 = vsel %vm4536, %v4512, 0.0
        %v4538 = vsel %vm4536, %v4513, 0.0
        %v4539 = vadd.f32 %v4537, %v4538
        %v4540 = vsel %vm4536, %v4514, 0.0
        %v4541 = vadd.f32 %v4539, %v4540
        %v4542 = vrot.slane %v4541, 4
        %v4543 = vadd.f32 %v4541, %v4542
        %v4544 = vrot.slane %v4543, 2
        %v4545 = vadd.f32 %v4543, %v4544
        %v4546 = vrot.slane %v4545, 1
        %v4547 = vadd.f32 %v4545, %v4546
        %v4548 = vsel %vm4536, %v4515, 0.0
        %v4549 = vsel %vm4536, %v4516, 0.0
        %v4550 = vadd.f32 %v4548, %v4549
        %v4551 = vsel %vm4536, %v4517, 0.0
        %v4552 = vadd.f32 %v4550, %v4551
        %v4553 = vrot.slane %v4552, 4
        %v4554 = vadd.f32 %v4552, %v4553
        %v4555 = vrot.slane %v4554, 2
        %v4556 = vadd.f32 %v4554, %v4555
        %v4557 = vrot.slane %v4556, 1
        %v4558 = vadd.f32 %v4556, %v4557
        %v4559 = vsel %vm4536, %v4518, 0.0
        %v4560 = vsel %vm4536, %v4519, 0.0
        %v4561 = vadd.f32 %v4559, %v4560
        %v4562 = vsel %vm4536, %v4520, 0.0
        %v4563 = vadd.f32 %v4561, %v4562
        %v4564 = vrot.slane %v4563, 4
        %v4565 = vadd.f32 %v4563, %v4564
        %v4566 = vrot.slane %v4565, 2
        %v4567 = vadd.f32 %v4565, %v4566
        %v4568 = vrot.slane %v4567, 1
        %v4569 = vadd.f32 %v4567, %v4568
        %v4570 = vsel %vm4536, %v4521, 0.0
        %v4571 = vsel %vm4536, %v4522, 0.0
        %v4572 = vadd.f32 %v4570, %v4571
        %v4573 = vsel %vm4536, %v4523, 0.0
        %v4574 = vadd.f32 %v4572, %v4573
        %v4575 = vrot.slane %v4574, 4
        %v4576 = vadd.f32 %v4574, %v4575
        %v4577 = vrot.slane %v4576, 2
        %v4578 = vadd.f32 %v4576, %v4577
        %v4579 = vrot.slane %v4578, 1
        %v4580 = vadd.f32 %v4578, %v4579
        %v4581 = vsel %vm4536, %v4524, 0.0
        %v4582 = vsel %vm4536, %v4525, 0.0
        %v4583 = vadd.f32 %v4581, %v4582
        %v4584 = vsel %vm4536, %v4526, 0.0
        %v4585 = vadd.f32 %v4583, %v4584
        %v4586 = vrot.slane %v4585, 4
        %v4587 = vadd.f32 %v4585, %v4586
        %v4588 = vrot.slane %v4587, 2
        %v4589 = vadd.f32 %v4587, %v4588
        %v4590 = vrot.slane %v4589, 1
        %v4591 = vadd.f32 %v4589, %v4590
        %v4592 = vsel %vm4536, %v4527, 0.0
        %v4593 = vsel %vm4536, %v4528, 0.0
        %v4594 = vadd.f32 %v4592, %v4593
        %v4595 = vsel %vm4536, %v4529, 0.0
        %v4596 = vadd.f32 %v4594, %v4595
        %v4597 = vrot.slane %v4596, 4
        %v4598 = vadd.f32 %v4596, %v4597
        %v4599 = vrot.slane %v4598, 2
        %v4600 = vadd.f32 %v4598, %v4599
        %v4601 = vrot.slane %v4600, 1
        %v4602 = vadd.f32 %v4600, %v4601
        %v4603 = vsel %vm4536, %v4530, 0.0
        %v4604 = vsel %vm4536, %v4531, 0.0
        %v4605 = vadd.f32 %v4603, %v4604
        %v4606 = vsel %vm4536, %v4532, 0.0
        %v4607 = vadd.f32 %v4605, %v4606
        %v4608 = vrot.slane %v4607, 4
        %v4609 = vadd.f32 %v4607, %v4608
        %v4610 = vrot.slane %v4609, 2
        %v4611 = vadd.f32 %v4609, %v4610
        %v4612 = vrot.slane %v4611, 1
        %v4613 = vadd.f32 %v4611, %v4612
        %v4614 = vsel %vm4536, %v4533, 0.0
        %v4615 = vsel %vm4536, %v4534, 0.0
        %v4616 = vadd.f32 %v4614, %v4615
        %v4617 = vsel %vm4536, %v4535, 0.0
        %v4618 = vadd.f32 %v4616, %v4617
        %v4619 = vrot.slane %v4618, 4
        %v4620 = vadd.f32 %v4618, %v4619
        %v4621 = vrot.slane %v4620, 2
        %v4622 = vadd.f32 %v4620, %v4621
        %v4623 = vrot.slane %v4622, 1
        %v4624 = vadd.f32 %v4622, %v4623
        %v4625 = vmul.f32 %v4395, %v4547
        %v4626 = vmul.f32 %v4400, %v4547
        %v4627 = vmul.f32 %v4405, %v4547
        %v4628 = vmul.f32 %v4410, %v4558
        %v4629 = vmul.f32 %v4415, %v4558
        %v4630 = vmul.f32 %v4420, %v4558
        %v4631 = vmul.f32 %v4425, %v4569
        %v4632 = vmul.f32 %v4430, %v4569
        %v4633 = vmul.f32 %v4435, %v4569
        %v4634 = vmul.f32 %v4440, %v4580
        %v4635 = vmul.f32 %v4445, %v4580
        %v4636 = vmul.f32 %v4450, %v4580
        %v4637 = vmul.f32 %v4455, %v4591
        %v4638 = vmul.f32 %v4460, %v4591
        %v4639 = vmul.f32 %v4465, %v4591
        %v4640 = vmul.f32 %v4470, %v4602
        %v4641 = vmul.f32 %v4475, %v4602
        %v4642 = vmul.f32 %v4480, %v4602
        %v4643 = vmul.f32 %v4485, %v4613
        %v4644 = vmul.f32 %v4490, %v4613
        %v4645 = vmul.f32 %v4495, %v4613
        %v4646 = vmul.f32 %v4500, %v4624
        %v4647 = vmul.f32 %v4505, %v4624
        %v4648 = vmul.f32 %v4510, %v4624
        %4649 = vset.pattern.permute.xlu0 1
        %4650 = vperm.xlu0 %4649, %v4022
        %v4651 = vpop.permute.xlu0 %4650
        %4653 = vset.pattern.permute.xlu0 1
        %4654 = vperm.xlu0 %4653, %v4037
        %v4655 = vpop.permute.xlu0 %4654
        %4657 = vset.pattern.permute.xlu0 1
        %4658 = vperm.xlu0 %4657, %v4052
        %v4659 = vpop.permute.xlu0 %4658
        %4661 = vset.pattern.permute.xlu0 1
        %4662 = vperm.xlu0 %4661, %v4067
        %v4663 = vpop.permute.xlu0 %4662
        %4665 = vset.pattern.permute.xlu0 1
        %4666 = vperm.xlu0 %4665, %v4082
        %v4667 = vpop.permute.xlu0 %4666
        %4669 = vset.pattern.permute.xlu0 1
        %4670 = vperm.xlu0 %4669, %v4097
        %v4671 = vpop.permute.xlu0 %4670
        %4673 = vset.pattern.permute.xlu0 1
        %4674 = vperm.xlu0 %4673, %v4112
        %v4675 = vpop.permute.xlu0 %4674
        %4677 = vset.pattern.permute.xlu0 1
        %4678 = vperm.xlu0 %4677, %v4127
        %v4679 = vpop.permute.xlu0 %4678
        %4681 = vset.pattern.permute.xlu0 1
        %4682 = vperm.xlu0 %4681, %v4142
        %v4683 = vpop.permute.xlu0 %4682
        %4685 = vset.pattern.permute.xlu0 1
        %4686 = vperm.xlu0 %4685, %v4157
        %v4687 = vpop.permute.xlu0 %4686
        %4689 = vset.pattern.permute.xlu0 1
        %4690 = vperm.xlu0 %4689, %v4172
        %v4691 = vpop.permute.xlu0 %4690
        %4693 = vset.pattern.permute.xlu0 1
        %4694 = vperm.xlu0 %4693, %v4187
        %v4695 = vpop.permute.xlu0 %4694
        %4697 = vset.pattern.permute.xlu0 1
        %4698 = vperm.xlu0 %4697, %v4202
        %v4699 = vpop.permute.xlu0 %4698
        %4701 = vset.pattern.permute.xlu0 1
        %4702 = vperm.xlu0 %4701, %v4217
        %v4703 = vpop.permute.xlu0 %4702
        %4705 = vset.pattern.permute.xlu0 1
        %4706 = vperm.xlu0 %4705, %v4232
        %v4707 = vpop.permute.xlu0 %4706
        %4709 = vset.pattern.permute.xlu0 1
        %4710 = vperm.xlu0 %4709, %v4247
        %v4711 = vpop.permute.xlu0 %4710
        %4713 = vset.pattern.permute.xlu0 1
        %4714 = vperm.xlu0 %4713, %v4262
        %v4715 = vpop.permute.xlu0 %4714
        %4717 = vset.pattern.permute.xlu0 1
        %4718 = vperm.xlu0 %4717, %v4277
        %v4719 = vpop.permute.xlu0 %4718
        %4721 = vset.pattern.permute.xlu0 1
        %4722 = vperm.xlu0 %4721, %v4292
        %v4723 = vpop.permute.xlu0 %4722
        %4725 = vset.pattern.permute.xlu0 1
        %4726 = vperm.xlu0 %4725, %v4307
        %v4727 = vpop.permute.xlu0 %4726
        %4729 = vset.pattern.permute.xlu0 1
        %4730 = vperm.xlu0 %4729, %v4322
        %v4731 = vpop.permute.xlu0 %4730
        %4733 = vset.pattern.permute.xlu0 1
        %4734 = vperm.xlu0 %4733, %v4337
        %v4735 = vpop.permute.xlu0 %4734
        %4737 = vset.pattern.permute.xlu0 1
        %4738 = vperm.xlu0 %4737, %v4352
        %v4739 = vpop.permute.xlu0 %4738
        %4741 = vset.pattern.permute.xlu0 1
        %4742 = vperm.xlu0 %4741, %v4367
        %v4743 = vpop.permute.xlu0 %4742
        %v4745 = vmul.f32 %v4651, %v3227
        %v4746 = vmul.f32 %v4655, %v3228
        %v4747 = vmul.f32 %v4659, %v3229
        %v4748 = vmul.f32 %v4663, %v3230
        %v4749 = vmul.f32 %v4667, %v3231
        %v4750 = vmul.f32 %v4671, %v3232
        %v4751 = vmul.f32 %v4675, %v3233
        %v4752 = vmul.f32 %v4679, %v3234
        %v4753 = vmul.f32 %v4683, %v3235
        %v4754 = vmul.f32 %v4687, %v3236
        %v4755 = vmul.f32 %v4691, %v3237
        %v4756 = vmul.f32 %v4695, %v3238
        %v4757 = vmul.f32 %v4699, %v3239
        %v4758 = vmul.f32 %v4703, %v3240
        %v4759 = vmul.f32 %v4707, %v3241
        %v4760 = vmul.f32 %v4711, %v3242
        %v4761 = vmul.f32 %v4715, %v3243
        %v4762 = vmul.f32 %v4719, %v3244
        %v4763 = vmul.f32 %v4723, %v3245
        %v4764 = vmul.f32 %v4727, %v3246
        %v4765 = vmul.f32 %v4731, %v3247
        %v4766 = vmul.f32 %v4735, %v3248
        %v4767 = vmul.f32 %v4739, %v3249
        %v4768 = vmul.f32 %v4743, %v3250
        %v4769 = vsel %vm4536, %v4745, 0.0
        %v4770 = vsel %vm4536, %v4746, 0.0
        %v4771 = vadd.f32 %v4769, %v4770
        %v4772 = vsel %vm4536, %v4747, 0.0
        %v4773 = vadd.f32 %v4771, %v4772
        %v4774 = vrot.slane %v4773, 4
        %v4775 = vadd.f32 %v4773, %v4774
        %v4776 = vrot.slane %v4775, 2
        %v4777 = vadd.f32 %v4775, %v4776
        %v4778 = vrot.slane %v4777, 1
        %v4779 = vadd.f32 %v4777, %v4778
        %v4780 = vsel %vm4536, %v4748, 0.0
        %v4781 = vsel %vm4536, %v4749, 0.0
        %v4782 = vadd.f32 %v4780, %v4781
        %v4783 = vsel %vm4536, %v4750, 0.0
        %v4784 = vadd.f32 %v4782, %v4783
        %v4785 = vrot.slane %v4784, 4
        %v4786 = vadd.f32 %v4784, %v4785
        %v4787 = vrot.slane %v4786, 2
        %v4788 = vadd.f32 %v4786, %v4787
        %v4789 = vrot.slane %v4788, 1
        %v4790 = vadd.f32 %v4788, %v4789
        %v4791 = vsel %vm4536, %v4751, 0.0
        %v4792 = vsel %vm4536, %v4752, 0.0
        %v4793 = vadd.f32 %v4791, %v4792
        %v4794 = vsel %vm4536, %v4753, 0.0
        %v4795 = vadd.f32 %v4793, %v4794
        %v4796 = vrot.slane %v4795, 4
        %v4797 = vadd.f32 %v4795, %v4796
        %v4798 = vrot.slane %v4797, 2
        %v4799 = vadd.f32 %v4797, %v4798
        %v4800 = vrot.slane %v4799, 1
        %v4801 = vadd.f32 %v4799, %v4800
        %v4802 = vsel %vm4536, %v4754, 0.0
        %v4803 = vsel %vm4536, %v4755, 0.0
        %v4804 = vadd.f32 %v4802, %v4803
        %v4805 = vsel %vm4536, %v4756, 0.0
        %v4806 = vadd.f32 %v4804, %v4805
        %v4807 = vrot.slane %v4806, 4
        %v4808 = vadd.f32 %v4806, %v4807
        %v4809 = vrot.slane %v4808, 2
        %v4810 = vadd.f32 %v4808, %v4809
        %v4811 = vrot.slane %v4810, 1
        %v4812 = vadd.f32 %v4810, %v4811
        %v4813 = vsel %vm4536, %v4757, 0.0
        %v4814 = vsel %vm4536, %v4758, 0.0
        %v4815 = vadd.f32 %v4813, %v4814
        %v4816 = vsel %vm4536, %v4759, 0.0
        %v4817 = vadd.f32 %v4815, %v4816
        %v4818 = vrot.slane %v4817, 4
        %v4819 = vadd.f32 %v4817, %v4818
        %v4820 = vrot.slane %v4819, 2
        %v4821 = vadd.f32 %v4819, %v4820
        %v4822 = vrot.slane %v4821, 1
        %v4823 = vadd.f32 %v4821, %v4822
        %v4824 = vsel %vm4536, %v4760, 0.0
        %v4825 = vsel %vm4536, %v4761, 0.0
        %v4826 = vadd.f32 %v4824, %v4825
        %v4827 = vsel %vm4536, %v4762, 0.0
        %v4828 = vadd.f32 %v4826, %v4827
        %v4829 = vrot.slane %v4828, 4
        %v4830 = vadd.f32 %v4828, %v4829
        %v4831 = vrot.slane %v4830, 2
        %v4832 = vadd.f32 %v4830, %v4831
        %v4833 = vrot.slane %v4832, 1
        %v4834 = vadd.f32 %v4832, %v4833
        %v4835 = vsel %vm4536, %v4763, 0.0
        %v4836 = vsel %vm4536, %v4764, 0.0
        %v4837 = vadd.f32 %v4835, %v4836
        %v4838 = vsel %vm4536, %v4765, 0.0
        %v4839 = vadd.f32 %v4837, %v4838
        %v4840 = vrot.slane %v4839, 4
        %v4841 = vadd.f32 %v4839, %v4840
        %v4842 = vrot.slane %v4841, 2
        %v4843 = vadd.f32 %v4841, %v4842
        %v4844 = vrot.slane %v4843, 1
        %v4845 = vadd.f32 %v4843, %v4844
        %v4846 = vsel %vm4536, %v4766, 0.0
        %v4847 = vsel %vm4536, %v4767, 0.0
        %v4848 = vadd.f32 %v4846, %v4847
        %v4849 = vsel %vm4536, %v4768, 0.0
        %v4850 = vadd.f32 %v4848, %v4849
        %v4851 = vrot.slane %v4850, 4
        %v4852 = vadd.f32 %v4850, %v4851
        %v4853 = vrot.slane %v4852, 2
        %v4854 = vadd.f32 %v4852, %v4853
        %v4855 = vrot.slane %v4854, 1
        %v4856 = vadd.f32 %v4854, %v4855
        %v4857 = vmul.f32 %v4651, %v4779
        %v4858 = vmul.f32 %v4655, %v4779
        %v4859 = vmul.f32 %v4659, %v4779
        %v4860 = vmul.f32 %v4663, %v4790
        %v4861 = vmul.f32 %v4667, %v4790
        %v4862 = vmul.f32 %v4671, %v4790
        %v4863 = vmul.f32 %v4675, %v4801
        %v4864 = vmul.f32 %v4679, %v4801
        %v4865 = vmul.f32 %v4683, %v4801
        %v4866 = vmul.f32 %v4687, %v4812
        %v4867 = vmul.f32 %v4691, %v4812
        %v4868 = vmul.f32 %v4695, %v4812
        %v4869 = vmul.f32 %v4699, %v4823
        %v4870 = vmul.f32 %v4703, %v4823
        %v4871 = vmul.f32 %v4707, %v4823
        %v4872 = vmul.f32 %v4711, %v4834
        %v4873 = vmul.f32 %v4715, %v4834
        %v4874 = vmul.f32 %v4719, %v4834
        %v4875 = vmul.f32 %v4723, %v4845
        %v4876 = vmul.f32 %v4727, %v4845
        %v4877 = vmul.f32 %v4731, %v4845
        %v4878 = vmul.f32 %v4735, %v4856
        %v4879 = vmul.f32 %v4739, %v4856
        %v4880 = vmul.f32 %v4743, %v4856
        %v4881 = vadd.f32 %v4625, %v4857
        %v4882 = vadd.f32 %v4626, %v4858
        %v4883 = vadd.f32 %v4627, %v4859
        %v4884 = vadd.f32 %v4628, %v4860
        %v4885 = vadd.f32 %v4629, %v4861
        %v4886 = vadd.f32 %v4630, %v4862
        %v4887 = vadd.f32 %v4631, %v4863
        %v4888 = vadd.f32 %v4632, %v4864
        %v4889 = vadd.f32 %v4633, %v4865
        %v4890 = vadd.f32 %v4634, %v4866
        %v4891 = vadd.f32 %v4635, %v4867
        %v4892 = vadd.f32 %v4636, %v4868
        %v4893 = vadd.f32 %v4637, %v4869
        %v4894 = vadd.f32 %v4638, %v4870
        %v4895 = vadd.f32 %v4639, %v4871
        %v4896 = vadd.f32 %v4640, %v4872
        %v4897 = vadd.f32 %v4641, %v4873
        %v4898 = vadd.f32 %v4642, %v4874
        %v4899 = vadd.f32 %v4643, %v4875
        %v4900 = vadd.f32 %v4644, %v4876
        %v4901 = vadd.f32 %v4645, %v4877
        %v4902 = vadd.f32 %v4646, %v4878
        %v4903 = vadd.f32 %v4647, %v4879
        %v4904 = vadd.f32 %v4648, %v4880
        %4905 = vset.pattern.permute.xlu0 2
        %4906 = vperm.xlu0 %4905, %v4022
        %v4907 = vpop.permute.xlu0 %4906
        %4909 = vset.pattern.permute.xlu0 2
        %4910 = vperm.xlu0 %4909, %v4037
        %v4911 = vpop.permute.xlu0 %4910
        %4913 = vset.pattern.permute.xlu0 2
        %4914 = vperm.xlu0 %4913, %v4052
        %v4915 = vpop.permute.xlu0 %4914
        %4917 = vset.pattern.permute.xlu0 2
        %4918 = vperm.xlu0 %4917, %v4067
        %v4919 = vpop.permute.xlu0 %4918
        %4921 = vset.pattern.permute.xlu0 2
        %4922 = vperm.xlu0 %4921, %v4082
        %v4923 = vpop.permute.xlu0 %4922
        %4925 = vset.pattern.permute.xlu0 2
        %4926 = vperm.xlu0 %4925, %v4097
        %v4927 = vpop.permute.xlu0 %4926
        %4929 = vset.pattern.permute.xlu0 2
        %4930 = vperm.xlu0 %4929, %v4112
        %v4931 = vpop.permute.xlu0 %4930
        %4933 = vset.pattern.permute.xlu0 2
        %4934 = vperm.xlu0 %4933, %v4127
        %v4935 = vpop.permute.xlu0 %4934
        %4937 = vset.pattern.permute.xlu0 2
        %4938 = vperm.xlu0 %4937, %v4142
        %v4939 = vpop.permute.xlu0 %4938
        %4941 = vset.pattern.permute.xlu0 2
        %4942 = vperm.xlu0 %4941, %v4157
        %v4943 = vpop.permute.xlu0 %4942
        %4945 = vset.pattern.permute.xlu0 2
        %4946 = vperm.xlu0 %4945, %v4172
        %v4947 = vpop.permute.xlu0 %4946
        %4949 = vset.pattern.permute.xlu0 2
        %4950 = vperm.xlu0 %4949, %v4187
        %v4951 = vpop.permute.xlu0 %4950
        %4953 = vset.pattern.permute.xlu0 2
        %4954 = vperm.xlu0 %4953, %v4202
        %v4955 = vpop.permute.xlu0 %4954
        %4957 = vset.pattern.permute.xlu0 2
        %4958 = vperm.xlu0 %4957, %v4217
        %v4959 = vpop.permute.xlu0 %4958
        %4961 = vset.pattern.permute.xlu0 2
        %4962 = vperm.xlu0 %4961, %v4232
        %v4963 = vpop.permute.xlu0 %4962
        %4965 = vset.pattern.permute.xlu0 2
        %4966 = vperm.xlu0 %4965, %v4247
        %v4967 = vpop.permute.xlu0 %4966
        %4969 = vset.pattern.permute.xlu0 2
        %4970 = vperm.xlu0 %4969, %v4262
        %v4971 = vpop.permute.xlu0 %4970
        %4973 = vset.pattern.permute.xlu0 2
        %4974 = vperm.xlu0 %4973, %v4277
        %v4975 = vpop.permute.xlu0 %4974
        %4977 = vset.pattern.permute.xlu0 2
        %4978 = vperm.xlu0 %4977, %v4292
        %v4979 = vpop.permute.xlu0 %4978
        %4981 = vset.pattern.permute.xlu0 2
        %4982 = vperm.xlu0 %4981, %v4307
        %v4983 = vpop.permute.xlu0 %4982
        %4985 = vset.pattern.permute.xlu0 2
        %4986 = vperm.xlu0 %4985, %v4322
        %v4987 = vpop.permute.xlu0 %4986
        %4989 = vset.pattern.permute.xlu0 2
        %4990 = vperm.xlu0 %4989, %v4337
        %v4991 = vpop.permute.xlu0 %4990
        %4993 = vset.pattern.permute.xlu0 2
        %4994 = vperm.xlu0 %4993, %v4352
        %v4995 = vpop.permute.xlu0 %4994
        %4997 = vset.pattern.permute.xlu0 2
        %4998 = vperm.xlu0 %4997, %v4367
        %v4999 = vpop.permute.xlu0 %4998
        %v5001 = vmul.f32 %v4907, %v3227
        %v5002 = vmul.f32 %v4911, %v3228
        %v5003 = vmul.f32 %v4915, %v3229
        %v5004 = vmul.f32 %v4919, %v3230
        %v5005 = vmul.f32 %v4923, %v3231
        %v5006 = vmul.f32 %v4927, %v3232
        %v5007 = vmul.f32 %v4931, %v3233
        %v5008 = vmul.f32 %v4935, %v3234
        %v5009 = vmul.f32 %v4939, %v3235
        %v5010 = vmul.f32 %v4943, %v3236
        %v5011 = vmul.f32 %v4947, %v3237
        %v5012 = vmul.f32 %v4951, %v3238
        %v5013 = vmul.f32 %v4955, %v3239
        %v5014 = vmul.f32 %v4959, %v3240
        %v5015 = vmul.f32 %v4963, %v3241
        %v5016 = vmul.f32 %v4967, %v3242
        %v5017 = vmul.f32 %v4971, %v3243
        %v5018 = vmul.f32 %v4975, %v3244
        %v5019 = vmul.f32 %v4979, %v3245
        %v5020 = vmul.f32 %v4983, %v3246
        %v5021 = vmul.f32 %v4987, %v3247
        %v5022 = vmul.f32 %v4991, %v3248
        %v5023 = vmul.f32 %v4995, %v3249
        %v5024 = vmul.f32 %v4999, %v3250
        %v5025 = vsel %vm4536, %v5001, 0.0
        %v5026 = vsel %vm4536, %v5002, 0.0
        %v5027 = vadd.f32 %v5025, %v5026
        %v5028 = vsel %vm4536, %v5003, 0.0
        %v5029 = vadd.f32 %v5027, %v5028
        %v5030 = vrot.slane %v5029, 4
        %v5031 = vadd.f32 %v5029, %v5030
        %v5032 = vrot.slane %v5031, 2
        %v5033 = vadd.f32 %v5031, %v5032
        %v5034 = vrot.slane %v5033, 1
        %v5035 = vadd.f32 %v5033, %v5034
        %v5036 = vsel %vm4536, %v5004, 0.0
        %v5037 = vsel %vm4536, %v5005, 0.0
        %v5038 = vadd.f32 %v5036, %v5037
        %v5039 = vsel %vm4536, %v5006, 0.0
        %v5040 = vadd.f32 %v5038, %v5039
        %v5041 = vrot.slane %v5040, 4
        %v5042 = vadd.f32 %v5040, %v5041
        %v5043 = vrot.slane %v5042, 2
        %v5044 = vadd.f32 %v5042, %v5043
        %v5045 = vrot.slane %v5044, 1
        %v5046 = vadd.f32 %v5044, %v5045
        %v5047 = vsel %vm4536, %v5007, 0.0
        %v5048 = vsel %vm4536, %v5008, 0.0
        %v5049 = vadd.f32 %v5047, %v5048
        %v5050 = vsel %vm4536, %v5009, 0.0
        %v5051 = vadd.f32 %v5049, %v5050
        %v5052 = vrot.slane %v5051, 4
        %v5053 = vadd.f32 %v5051, %v5052
        %v5054 = vrot.slane %v5053, 2
        %v5055 = vadd.f32 %v5053, %v5054
        %v5056 = vrot.slane %v5055, 1
        %v5057 = vadd.f32 %v5055, %v5056
        %v5058 = vsel %vm4536, %v5010, 0.0
        %v5059 = vsel %vm4536, %v5011, 0.0
        %v5060 = vadd.f32 %v5058, %v5059
        %v5061 = vsel %vm4536, %v5012, 0.0
        %v5062 = vadd.f32 %v5060, %v5061
        %v5063 = vrot.slane %v5062, 4
        %v5064 = vadd.f32 %v5062, %v5063
        %v5065 = vrot.slane %v5064, 2
        %v5066 = vadd.f32 %v5064, %v5065
        %v5067 = vrot.slane %v5066, 1
        %v5068 = vadd.f32 %v5066, %v5067
        %v5069 = vsel %vm4536, %v5013, 0.0
        %v5070 = vsel %vm4536, %v5014, 0.0
        %v5071 = vadd.f32 %v5069, %v5070
        %v5072 = vsel %vm4536, %v5015, 0.0
        %v5073 = vadd.f32 %v5071, %v5072
        %v5074 = vrot.slane %v5073, 4
        %v5075 = vadd.f32 %v5073, %v5074
        %v5076 = vrot.slane %v5075, 2
        %v5077 = vadd.f32 %v5075, %v5076
        %v5078 = vrot.slane %v5077, 1
        %v5079 = vadd.f32 %v5077, %v5078
        %v5080 = vsel %vm4536, %v5016, 0.0
        %v5081 = vsel %vm4536, %v5017, 0.0
        %v5082 = vadd.f32 %v5080, %v5081
        %v5083 = vsel %vm4536, %v5018, 0.0
        %v5084 = vadd.f32 %v5082, %v5083
        %v5085 = vrot.slane %v5084, 4
        %v5086 = vadd.f32 %v5084, %v5085
        %v5087 = vrot.slane %v5086, 2
        %v5088 = vadd.f32 %v5086, %v5087
        %v5089 = vrot.slane %v5088, 1
        %v5090 = vadd.f32 %v5088, %v5089
        %v5091 = vsel %vm4536, %v5019, 0.0
        %v5092 = vsel %vm4536, %v5020, 0.0
        %v5093 = vadd.f32 %v5091, %v5092
        %v5094 = vsel %vm4536, %v5021, 0.0
        %v5095 = vadd.f32 %v5093, %v5094
        %v5096 = vrot.slane %v5095, 4
        %v5097 = vadd.f32 %v5095, %v5096
        %v5098 = vrot.slane %v5097, 2
        %v5099 = vadd.f32 %v5097, %v5098
        %v5100 = vrot.slane %v5099, 1
        %v5101 = vadd.f32 %v5099, %v5100
        %v5102 = vsel %vm4536, %v5022, 0.0
        %v5103 = vsel %vm4536, %v5023, 0.0
        %v5104 = vadd.f32 %v5102, %v5103
        %v5105 = vsel %vm4536, %v5024, 0.0
        %v5106 = vadd.f32 %v5104, %v5105
        %v5107 = vrot.slane %v5106, 4
        %v5108 = vadd.f32 %v5106, %v5107
        %v5109 = vrot.slane %v5108, 2
        %v5110 = vadd.f32 %v5108, %v5109
        %v5111 = vrot.slane %v5110, 1
        %v5112 = vadd.f32 %v5110, %v5111
        %v5113 = vmul.f32 %v4907, %v5035
        %v5114 = vmul.f32 %v4911, %v5035
        %v5115 = vmul.f32 %v4915, %v5035
        %v5116 = vmul.f32 %v4919, %v5046
        %v5117 = vmul.f32 %v4923, %v5046
        %v5118 = vmul.f32 %v4927, %v5046
        %v5119 = vmul.f32 %v4931, %v5057
        %v5120 = vmul.f32 %v4935, %v5057
        %v5121 = vmul.f32 %v4939, %v5057
        %v5122 = vmul.f32 %v4943, %v5068
        %v5123 = vmul.f32 %v4947, %v5068
        %v5124 = vmul.f32 %v4951, %v5068
        %v5125 = vmul.f32 %v4955, %v5079
        %v5126 = vmul.f32 %v4959, %v5079
        %v5127 = vmul.f32 %v4963, %v5079
        %v5128 = vmul.f32 %v4967, %v5090
        %v5129 = vmul.f32 %v4971, %v5090
        %v5130 = vmul.f32 %v4975, %v5090
        %v5131 = vmul.f32 %v4979, %v5101
        %v5132 = vmul.f32 %v4983, %v5101
        %v5133 = vmul.f32 %v4987, %v5101
        %v5134 = vmul.f32 %v4991, %v5112
        %v5135 = vmul.f32 %v4995, %v5112
        %v5136 = vmul.f32 %v4999, %v5112
        %v5137 = vadd.f32 %v4881, %v5113
        %v5138 = vadd.f32 %v4882, %v5114
        %v5139 = vadd.f32 %v4883, %v5115
        %v5140 = vadd.f32 %v4884, %v5116
        %v5141 = vadd.f32 %v4885, %v5117
        %v5142 = vadd.f32 %v4886, %v5118
        %v5143 = vadd.f32 %v4887, %v5119
        %v5144 = vadd.f32 %v4888, %v5120
        %v5145 = vadd.f32 %v4889, %v5121
        %v5146 = vadd.f32 %v4890, %v5122
        %v5147 = vadd.f32 %v4891, %v5123
        %v5148 = vadd.f32 %v4892, %v5124
        %v5149 = vadd.f32 %v4893, %v5125
        %v5150 = vadd.f32 %v4894, %v5126
        %v5151 = vadd.f32 %v4895, %v5127
        %v5152 = vadd.f32 %v4896, %v5128
        %v5153 = vadd.f32 %v4897, %v5129
        %v5154 = vadd.f32 %v4898, %v5130
        %v5155 = vadd.f32 %v4899, %v5131
        %v5156 = vadd.f32 %v4900, %v5132
        %v5157 = vadd.f32 %v4901, %v5133
        %v5158 = vadd.f32 %v4902, %v5134
        %v5159 = vadd.f32 %v4903, %v5135
        %v5160 = vadd.f32 %v4904, %v5136
        %5161 = vset.pattern.permute.xlu0 3
        %5162 = vperm.xlu0 %5161, %v4022
        %v5163 = vpop.permute.xlu0 %5162
        %5165 = vset.pattern.permute.xlu0 3
        %5166 = vperm.xlu0 %5165, %v4037
        %v5167 = vpop.permute.xlu0 %5166
        %5169 = vset.pattern.permute.xlu0 3
        %5170 = vperm.xlu0 %5169, %v4052
        %v5171 = vpop.permute.xlu0 %5170
        %5173 = vset.pattern.permute.xlu0 3
        %5174 = vperm.xlu0 %5173, %v4067
        %v5175 = vpop.permute.xlu0 %5174
        %5177 = vset.pattern.permute.xlu0 3
        %5178 = vperm.xlu0 %5177, %v4082
        %v5179 = vpop.permute.xlu0 %5178
        %5181 = vset.pattern.permute.xlu0 3
        %5182 = vperm.xlu0 %5181, %v4097
        %v5183 = vpop.permute.xlu0 %5182
        %5185 = vset.pattern.permute.xlu0 3
        %5186 = vperm.xlu0 %5185, %v4112
        %v5187 = vpop.permute.xlu0 %5186
        %5189 = vset.pattern.permute.xlu0 3
        %5190 = vperm.xlu0 %5189, %v4127
        %v5191 = vpop.permute.xlu0 %5190
        %5193 = vset.pattern.permute.xlu0 3
        %5194 = vperm.xlu0 %5193, %v4142
        %v5195 = vpop.permute.xlu0 %5194
        %5197 = vset.pattern.permute.xlu0 3
        %5198 = vperm.xlu0 %5197, %v4157
        %v5199 = vpop.permute.xlu0 %5198
        %5201 = vset.pattern.permute.xlu0 3
        %5202 = vperm.xlu0 %5201, %v4172
        %v5203 = vpop.permute.xlu0 %5202
        %5205 = vset.pattern.permute.xlu0 3
        %5206 = vperm.xlu0 %5205, %v4187
        %v5207 = vpop.permute.xlu0 %5206
        %5209 = vset.pattern.permute.xlu0 3
        %5210 = vperm.xlu0 %5209, %v4202
        %v5211 = vpop.permute.xlu0 %5210
        %5213 = vset.pattern.permute.xlu0 3
        %5214 = vperm.xlu0 %5213, %v4217
        %v5215 = vpop.permute.xlu0 %5214
        %5217 = vset.pattern.permute.xlu0 3
        %5218 = vperm.xlu0 %5217, %v4232
        %v5219 = vpop.permute.xlu0 %5218
        %5221 = vset.pattern.permute.xlu0 3
        %5222 = vperm.xlu0 %5221, %v4247
        %v5223 = vpop.permute.xlu0 %5222
        %5225 = vset.pattern.permute.xlu0 3
        %5226 = vperm.xlu0 %5225, %v4262
        %v5227 = vpop.permute.xlu0 %5226
        %5229 = vset.pattern.permute.xlu0 3
        %5230 = vperm.xlu0 %5229, %v4277
        %v5231 = vpop.permute.xlu0 %5230
        %5233 = vset.pattern.permute.xlu0 3
        %5234 = vperm.xlu0 %5233, %v4292
        %v5235 = vpop.permute.xlu0 %5234
        %5237 = vset.pattern.permute.xlu0 3
        %5238 = vperm.xlu0 %5237, %v4307
        %v5239 = vpop.permute.xlu0 %5238
        %5241 = vset.pattern.permute.xlu0 3
        %5242 = vperm.xlu0 %5241, %v4322
        %v5243 = vpop.permute.xlu0 %5242
        %5245 = vset.pattern.permute.xlu0 3
        %5246 = vperm.xlu0 %5245, %v4337
        %v5247 = vpop.permute.xlu0 %5246
        %5249 = vset.pattern.permute.xlu0 3
        %5250 = vperm.xlu0 %5249, %v4352
        %v5251 = vpop.permute.xlu0 %5250
        %5253 = vset.pattern.permute.xlu0 3
        %5254 = vperm.xlu0 %5253, %v4367
        %v5255 = vpop.permute.xlu0 %5254
        %v5257 = vmul.f32 %v5163, %v3227
        %v5258 = vmul.f32 %v5167, %v3228
        %v5259 = vmul.f32 %v5171, %v3229
        %v5260 = vmul.f32 %v5175, %v3230
        %v5261 = vmul.f32 %v5179, %v3231
        %v5262 = vmul.f32 %v5183, %v3232
        %v5263 = vmul.f32 %v5187, %v3233
        %v5264 = vmul.f32 %v5191, %v3234
        %v5265 = vmul.f32 %v5195, %v3235
        %v5266 = vmul.f32 %v5199, %v3236
        %v5267 = vmul.f32 %v5203, %v3237
        %v5268 = vmul.f32 %v5207, %v3238
        %v5269 = vmul.f32 %v5211, %v3239
        %v5270 = vmul.f32 %v5215, %v3240
        %v5271 = vmul.f32 %v5219, %v3241
        %v5272 = vmul.f32 %v5223, %v3242
        %v5273 = vmul.f32 %v5227, %v3243
        %v5274 = vmul.f32 %v5231, %v3244
        %v5275 = vmul.f32 %v5235, %v3245
        %v5276 = vmul.f32 %v5239, %v3246
        %v5277 = vmul.f32 %v5243, %v3247
        %v5278 = vmul.f32 %v5247, %v3248
        %v5279 = vmul.f32 %v5251, %v3249
        %v5280 = vmul.f32 %v5255, %v3250
        %v5281 = vsel %vm4536, %v5257, 0.0
        %v5282 = vsel %vm4536, %v5258, 0.0
        %v5283 = vadd.f32 %v5281, %v5282
        %v5284 = vsel %vm4536, %v5259, 0.0
        %v5285 = vadd.f32 %v5283, %v5284
        %v5286 = vrot.slane %v5285, 4
        %v5287 = vadd.f32 %v5285, %v5286
        %v5288 = vrot.slane %v5287, 2
        %v5289 = vadd.f32 %v5287, %v5288
        %v5290 = vrot.slane %v5289, 1
        %v5291 = vadd.f32 %v5289, %v5290
        %v5292 = vsel %vm4536, %v5260, 0.0
        %v5293 = vsel %vm4536, %v5261, 0.0
        %v5294 = vadd.f32 %v5292, %v5293
        %v5295 = vsel %vm4536, %v5262, 0.0
        %v5296 = vadd.f32 %v5294, %v5295
        %v5297 = vrot.slane %v5296, 4
        %v5298 = vadd.f32 %v5296, %v5297
        %v5299 = vrot.slane %v5298, 2
        %v5300 = vadd.f32 %v5298, %v5299
        %v5301 = vrot.slane %v5300, 1
        %v5302 = vadd.f32 %v5300, %v5301
        %v5303 = vsel %vm4536, %v5263, 0.0
        %v5304 = vsel %vm4536, %v5264, 0.0
        %v5305 = vadd.f32 %v5303, %v5304
        %v5306 = vsel %vm4536, %v5265, 0.0
        %v5307 = vadd.f32 %v5305, %v5306
        %v5308 = vrot.slane %v5307, 4
        %v5309 = vadd.f32 %v5307, %v5308
        %v5310 = vrot.slane %v5309, 2
        %v5311 = vadd.f32 %v5309, %v5310
        %v5312 = vrot.slane %v5311, 1
        %v5313 = vadd.f32 %v5311, %v5312
        %v5314 = vsel %vm4536, %v5266, 0.0
        %v5315 = vsel %vm4536, %v5267, 0.0
        %v5316 = vadd.f32 %v5314, %v5315
        %v5317 = vsel %vm4536, %v5268, 0.0
        %v5318 = vadd.f32 %v5316, %v5317
        %v5319 = vrot.slane %v5318, 4
        %v5320 = vadd.f32 %v5318, %v5319
        %v5321 = vrot.slane %v5320, 2
        %v5322 = vadd.f32 %v5320, %v5321
        %v5323 = vrot.slane %v5322, 1
        %v5324 = vadd.f32 %v5322, %v5323
        %v5325 = vsel %vm4536, %v5269, 0.0
        %v5326 = vsel %vm4536, %v5270, 0.0
        %v5327 = vadd.f32 %v5325, %v5326
        %v5328 = vsel %vm4536, %v5271, 0.0
        %v5329 = vadd.f32 %v5327, %v5328
        %v5330 = vrot.slane %v5329, 4
        %v5331 = vadd.f32 %v5329, %v5330
        %v5332 = vrot.slane %v5331, 2
        %v5333 = vadd.f32 %v5331, %v5332
        %v5334 = vrot.slane %v5333, 1
        %v5335 = vadd.f32 %v5333, %v5334
        %v5336 = vsel %vm4536, %v5272, 0.0
        %v5337 = vsel %vm4536, %v5273, 0.0
        %v5338 = vadd.f32 %v5336, %v5337
        %v5339 = vsel %vm4536, %v5274, 0.0
        %v5340 = vadd.f32 %v5338, %v5339
        %v5341 = vrot.slane %v5340, 4
        %v5342 = vadd.f32 %v5340, %v5341
        %v5343 = vrot.slane %v5342, 2
        %v5344 = vadd.f32 %v5342, %v5343
        %v5345 = vrot.slane %v5344, 1
        %v5346 = vadd.f32 %v5344, %v5345
        %v5347 = vsel %vm4536, %v5275, 0.0
        %v5348 = vsel %vm4536, %v5276, 0.0
        %v5349 = vadd.f32 %v5347, %v5348
        %v5350 = vsel %vm4536, %v5277, 0.0
        %v5351 = vadd.f32 %v5349, %v5350
        %v5352 = vrot.slane %v5351, 4
        %v5353 = vadd.f32 %v5351, %v5352
        %v5354 = vrot.slane %v5353, 2
        %v5355 = vadd.f32 %v5353, %v5354
        %v5356 = vrot.slane %v5355, 1
        %v5357 = vadd.f32 %v5355, %v5356
        %v5358 = vsel %vm4536, %v5278, 0.0
        %v5359 = vsel %vm4536, %v5279, 0.0
        %v5360 = vadd.f32 %v5358, %v5359
        %v5361 = vsel %vm4536, %v5280, 0.0
        %v5362 = vadd.f32 %v5360, %v5361
        %v5363 = vrot.slane %v5362, 4
        %v5364 = vadd.f32 %v5362, %v5363
        %v5365 = vrot.slane %v5364, 2
        %v5366 = vadd.f32 %v5364, %v5365
        %v5367 = vrot.slane %v5366, 1
        %v5368 = vadd.f32 %v5366, %v5367
        %v5369 = vmul.f32 %v5163, %v5291
        %v5370 = vmul.f32 %v5167, %v5291
        %v5371 = vmul.f32 %v5171, %v5291
        %v5372 = vmul.f32 %v5175, %v5302
        %v5373 = vmul.f32 %v5179, %v5302
        %v5374 = vmul.f32 %v5183, %v5302
        %v5375 = vmul.f32 %v5187, %v5313
        %v5376 = vmul.f32 %v5191, %v5313
        %v5377 = vmul.f32 %v5195, %v5313
        %v5378 = vmul.f32 %v5199, %v5324
        %v5379 = vmul.f32 %v5203, %v5324
        %v5380 = vmul.f32 %v5207, %v5324
        %v5381 = vmul.f32 %v5211, %v5335
        %v5382 = vmul.f32 %v5215, %v5335
        %v5383 = vmul.f32 %v5219, %v5335
        %v5384 = vmul.f32 %v5223, %v5346
        %v5385 = vmul.f32 %v5227, %v5346
        %v5386 = vmul.f32 %v5231, %v5346
        %v5387 = vmul.f32 %v5235, %v5357
        %v5388 = vmul.f32 %v5239, %v5357
        %v5389 = vmul.f32 %v5243, %v5357
        %v5390 = vmul.f32 %v5247, %v5368
        %v5391 = vmul.f32 %v5251, %v5368
        %v5392 = vmul.f32 %v5255, %v5368
        %v5393 = vadd.f32 %v5137, %v5369
        %v5394 = vadd.f32 %v5138, %v5370
        %v5395 = vadd.f32 %v5139, %v5371
        %v5396 = vadd.f32 %v5140, %v5372
        %v5397 = vadd.f32 %v5141, %v5373
        %v5398 = vadd.f32 %v5142, %v5374
        %v5399 = vadd.f32 %v5143, %v5375
        %v5400 = vadd.f32 %v5144, %v5376
        %v5401 = vadd.f32 %v5145, %v5377
        %v5402 = vadd.f32 %v5146, %v5378
        %v5403 = vadd.f32 %v5147, %v5379
        %v5404 = vadd.f32 %v5148, %v5380
        %v5405 = vadd.f32 %v5149, %v5381
        %v5406 = vadd.f32 %v5150, %v5382
        %v5407 = vadd.f32 %v5151, %v5383
        %v5408 = vadd.f32 %v5152, %v5384
        %v5409 = vadd.f32 %v5153, %v5385
        %v5410 = vadd.f32 %v5154, %v5386
        %v5411 = vadd.f32 %v5155, %v5387
        %v5412 = vadd.f32 %v5156, %v5388
        %v5413 = vadd.f32 %v5157, %v5389
        %v5414 = vadd.f32 %v5158, %v5390
        %v5415 = vadd.f32 %v5159, %v5391
        %v5416 = vadd.f32 %v5160, %v5392
        %v5417 = vld [vmem:[#allocation7] sm:$0xff]
        %v5418 = vld [vmem:[#allocation7 + $0x8] sm:$0xff]
        %v5419 = vld [vmem:[#allocation7 + $0x10] sm:$0xff]
        %5423 = vrot.lane.b32.xlu0 %v5417, 32
        %v5424 = vpop.permute.xlu0 %5423
        %5425 = vrot.lane.b32.xlu0 %v5418, 32
        %v5426 = vpop.permute.xlu0 %5425
        %5427 = vrot.lane.b32.xlu0 %v5419, 32
        %v5428 = vpop.permute.xlu0 %5427
        %v5432 = vmul.f32 %v5393, %v5424
        %v5433 = vmul.f32 %v5394, %v5426
        %v5434 = vmul.f32 %v5395, %v5428
        %v5435 = vmul.f32 %v5396, %v5424
        %v5436 = vmul.f32 %v5397, %v5426
        %v5437 = vmul.f32 %v5398, %v5428
        %v5438 = vmul.f32 %v5399, %v5424
        %v5439 = vmul.f32 %v5400, %v5426
        %v5440 = vmul.f32 %v5401, %v5428
        %v5441 = vmul.f32 %v5402, %v5424
        %v5442 = vmul.f32 %v5403, %v5426
        %v5443 = vmul.f32 %v5404, %v5428
        %v5444 = vmul.f32 %v5405, %v5424
        %v5445 = vmul.f32 %v5406, %v5426
        %v5446 = vmul.f32 %v5407, %v5428
        %v5447 = vmul.f32 %v5408, %v5424
        %v5448 = vmul.f32 %v5409, %v5426
        %v5449 = vmul.f32 %v5410, %v5428
        %v5450 = vmul.f32 %v5411, %v5424
        %v5451 = vmul.f32 %v5412, %v5426
        %v5452 = vmul.f32 %v5413, %v5428
        %v5453 = vmul.f32 %v5414, %v5424
        %v5454 = vmul.f32 %v5415, %v5426
        %v5455 = vmul.f32 %v5416, %v5428
        %5456 = vrot.lane.b32.xlu0 %v5417, 64
        %v5457 = vpop.permute.xlu0 %5456
        %5458 = vrot.lane.b32.xlu0 %v5418, 64
        %v5459 = vpop.permute.xlu0 %5458
        %5460 = vrot.lane.b32.xlu0 %v5419, 64
        %v5461 = vpop.permute.xlu0 %5460
        %v5465 = vmul.f32 %v1760, %v5457
        %v5466 = vmul.f32 %v1761, %v5459
        %v5467 = vmul.f32 %v1762, %v5461
        %v5468 = vmul.f32 %v1763, %v5457
        %v5469 = vmul.f32 %v1764, %v5459
        %v5470 = vmul.f32 %v1765, %v5461
        %v5471 = vmul.f32 %v1766, %v5457
        %v5472 = vmul.f32 %v1767, %v5459
        %v5473 = vmul.f32 %v1768, %v5461
        %v5474 = vmul.f32 %v1769, %v5457
        %v5475 = vmul.f32 %v1770, %v5459
        %v5476 = vmul.f32 %v1771, %v5461
        %v5477 = vmul.f32 %v1772, %v5457
        %v5478 = vmul.f32 %v1773, %v5459
        %v5479 = vmul.f32 %v1774, %v5461
        %v5480 = vmul.f32 %v1775, %v5457
        %v5481 = vmul.f32 %v1776, %v5459
        %v5482 = vmul.f32 %v1777, %v5461
        %v5483 = vmul.f32 %v1778, %v5457
        %v5484 = vmul.f32 %v1779, %v5459
        %v5485 = vmul.f32 %v1780, %v5461
        %v5486 = vmul.f32 %v1781, %v5457
        %v5487 = vmul.f32 %v1782, %v5459
        %v5488 = vmul.f32 %v1783, %v5461
        %5513 = vrot.lane.b32.xlu0 %v5465, 64
        %v5514 = vpop.permute.xlu0 %5513
        %5515 = vrot.lane.b32.xlu0 %v5466, 64
        %v5516 = vpop.permute.xlu0 %5515
        %5517 = vrot.lane.b32.xlu0 %v5467, 64
        %v5518 = vpop.permute.xlu0 %5517
        %5519 = vrot.lane.b32.xlu0 %v5468, 64
        %v5520 = vpop.permute.xlu0 %5519
        %5521 = vrot.lane.b32.xlu0 %v5469, 64
        %v5522 = vpop.permute.xlu0 %5521
        %5523 = vrot.lane.b32.xlu0 %v5470, 64
        %v5524 = vpop.permute.xlu0 %5523
        %5525 = vrot.lane.b32.xlu0 %v5471, 64
        %v5526 = vpop.permute.xlu0 %5525
        %5527 = vrot.lane.b32.xlu0 %v5472, 64
        %v5528 = vpop.permute.xlu0 %5527
        %5529 = vrot.lane.b32.xlu0 %v5473, 64
        %v5530 = vpop.permute.xlu0 %5529
        %5531 = vrot.lane.b32.xlu0 %v5474, 64
        %v5532 = vpop.permute.xlu0 %5531
        %5533 = vrot.lane.b32.xlu0 %v5475, 64
        %v5534 = vpop.permute.xlu0 %5533
        %5535 = vrot.lane.b32.xlu0 %v5476, 64
        %v5536 = vpop.permute.xlu0 %5535
        %5537 = vrot.lane.b32.xlu0 %v5477, 64
        %v5538 = vpop.permute.xlu0 %5537
        %5539 = vrot.lane.b32.xlu0 %v5478, 64
        %v5540 = vpop.permute.xlu0 %5539
        %5541 = vrot.lane.b32.xlu0 %v5479, 64
        %v5542 = vpop.permute.xlu0 %5541
        %5543 = vrot.lane.b32.xlu0 %v5480, 64
        %v5544 = vpop.permute.xlu0 %5543
        %5545 = vrot.lane.b32.xlu0 %v5481, 64
        %v5546 = vpop.permute.xlu0 %5545
        %5547 = vrot.lane.b32.xlu0 %v5482, 64
        %v5548 = vpop.permute.xlu0 %5547
        %5549 = vrot.lane.b32.xlu0 %v5483, 64
        %v5550 = vpop.permute.xlu0 %5549
        %5551 = vrot.lane.b32.xlu0 %v5484, 64
        %v5552 = vpop.permute.xlu0 %5551
        %5553 = vrot.lane.b32.xlu0 %v5485, 64
        %v5554 = vpop.permute.xlu0 %5553
        %5555 = vrot.lane.b32.xlu0 %v5486, 64
        %v5556 = vpop.permute.xlu0 %5555
        %5557 = vrot.lane.b32.xlu0 %v5487, 64
        %v5558 = vpop.permute.xlu0 %5557
        %5559 = vrot.lane.b32.xlu0 %v5488, 64
        %v5560 = vpop.permute.xlu0 %5559
        %v5585 = vadd.f32 %v5432, %v5514
        %v5586 = vadd.f32 %v5433, %v5516
        %v5587 = vadd.f32 %v5434, %v5518
        %v5588 = vadd.f32 %v5435, %v5520
        %v5589 = vadd.f32 %v5436, %v5522
        %v5590 = vadd.f32 %v5437, %v5524
        %v5591 = vadd.f32 %v5438, %v5526
        %v5592 = vadd.f32 %v5439, %v5528
        %v5593 = vadd.f32 %v5440, %v5530
        %v5594 = vadd.f32 %v5441, %v5532
        %v5595 = vadd.f32 %v5442, %v5534
        %v5596 = vadd.f32 %v5443, %v5536
        %v5597 = vadd.f32 %v5444, %v5538
        %v5598 = vadd.f32 %v5445, %v5540
        %v5599 = vadd.f32 %v5446, %v5542
        %v5600 = vadd.f32 %v5447, %v5544
        %v5601 = vadd.f32 %v5448, %v5546
        %v5602 = vadd.f32 %v5449, %v5548
        %v5603 = vadd.f32 %v5450, %v5550
        %v5604 = vadd.f32 %v5451, %v5552
        %v5605 = vadd.f32 %v5452, %v5554
        %v5606 = vadd.f32 %v5453, %v5556
        %v5607 = vadd.f32 %v5454, %v5558
        %v5608 = vadd.f32 %v5455, %v5560
        %5633 = vrot.lane.b32.xlu0 %v5585, 96
        %v5634 = vpop.permute.xlu0 %5633
        %5635 = vrot.lane.b32.xlu0 %v5586, 96
        %v5636 = vpop.permute.xlu0 %5635
        %5637 = vrot.lane.b32.xlu0 %v5587, 96
        %v5638 = vpop.permute.xlu0 %5637
        %5639 = vrot.lane.b32.xlu0 %v5588, 96
        %v5640 = vpop.permute.xlu0 %5639
        %5641 = vrot.lane.b32.xlu0 %v5589, 96
        %v5642 = vpop.permute.xlu0 %5641
        %5643 = vrot.lane.b32.xlu0 %v5590, 96
        %v5644 = vpop.permute.xlu0 %5643
        %5645 = vrot.lane.b32.xlu0 %v5591, 96
        %v5646 = vpop.permute.xlu0 %5645
        %5647 = vrot.lane.b32.xlu0 %v5592, 96
        %v5648 = vpop.permute.xlu0 %5647
        %5649 = vrot.lane.b32.xlu0 %v5593, 96
        %v5650 = vpop.permute.xlu0 %5649
        %5651 = vrot.lane.b32.xlu0 %v5594, 96
        %v5652 = vpop.permute.xlu0 %5651
        %5653 = vrot.lane.b32.xlu0 %v5595, 96
        %v5654 = vpop.permute.xlu0 %5653
        %5655 = vrot.lane.b32.xlu0 %v5596, 96
        %v5656 = vpop.permute.xlu0 %5655
        %5657 = vrot.lane.b32.xlu0 %v5597, 96
        %v5658 = vpop.permute.xlu0 %5657
        %5659 = vrot.lane.b32.xlu0 %v5598, 96
        %v5660 = vpop.permute.xlu0 %5659
        %5661 = vrot.lane.b32.xlu0 %v5599, 96
        %v5662 = vpop.permute.xlu0 %5661
        %5663 = vrot.lane.b32.xlu0 %v5600, 96
        %v5664 = vpop.permute.xlu0 %5663
        %5665 = vrot.lane.b32.xlu0 %v5601, 96
        %v5666 = vpop.permute.xlu0 %5665
        %5667 = vrot.lane.b32.xlu0 %v5602, 96
        %v5668 = vpop.permute.xlu0 %5667
        %5669 = vrot.lane.b32.xlu0 %v5603, 96
        %v5670 = vpop.permute.xlu0 %5669
        %5671 = vrot.lane.b32.xlu0 %v5604, 96
        %v5672 = vpop.permute.xlu0 %5671
        %5673 = vrot.lane.b32.xlu0 %v5605, 96
        %v5674 = vpop.permute.xlu0 %5673
        %5675 = vrot.lane.b32.xlu0 %v5606, 96
        %v5676 = vpop.permute.xlu0 %5675
        %5677 = vrot.lane.b32.xlu0 %v5607, 96
        %v5678 = vpop.permute.xlu0 %5677
        %5679 = vrot.lane.b32.xlu0 %v5608, 96
        %v5680 = vpop.permute.xlu0 %5679
        %v5705 = vsel %vm793, %v5634, 0.0
        %5706 = vadd.xlane.f32.xlu0 %v5705
        %v5707 = vpop.xlane.xlu0 %5706
        %v5708 = vsel %vm793, %v5636, 0.0
        %5709 = vadd.xlane.f32.xlu0 %v5708
        %v5710 = vpop.xlane.xlu0 %5709
        %v5711 = vsel %vm793, %v5638, 0.0
        %5712 = vadd.xlane.f32.xlu0 %v5711
        %v5713 = vpop.xlane.xlu0 %5712
        %v5714 = vsel %vm793, %v5640, 0.0
        %5715 = vadd.xlane.f32.xlu0 %v5714
        %v5716 = vpop.xlane.xlu0 %5715
        %v5717 = vsel %vm793, %v5642, 0.0
        %5718 = vadd.xlane.f32.xlu0 %v5717
        %v5719 = vpop.xlane.xlu0 %5718
        %v5720 = vsel %vm793, %v5644, 0.0
        %5721 = vadd.xlane.f32.xlu0 %v5720
        %v5722 = vpop.xlane.xlu0 %5721
        %v5723 = vsel %vm793, %v5646, 0.0
        %5724 = vadd.xlane.f32.xlu0 %v5723
        %v5725 = vpop.xlane.xlu0 %5724
        %v5726 = vsel %vm793, %v5648, 0.0
        %5727 = vadd.xlane.f32.xlu0 %v5726
        %v5728 = vpop.xlane.xlu0 %5727
        %v5729 = vsel %vm793, %v5650, 0.0
        %5730 = vadd.xlane.f32.xlu0 %v5729
        %v5731 = vpop.xlane.xlu0 %5730
        %v5732 = vsel %vm793, %v5652, 0.0
        %5733 = vadd.xlane.f32.xlu0 %v5732
        %v5734 = vpop.xlane.xlu0 %5733
        %v5735 = vsel %vm793, %v5654, 0.0
        %5736 = vadd.xlane.f32.xlu0 %v5735
        %v5737 = vpop.xlane.xlu0 %5736
        %v5738 = vsel %vm793, %v5656, 0.0
        %5739 = vadd.xlane.f32.xlu0 %v5738
        %v5740 = vpop.xlane.xlu0 %5739
        %v5741 = vsel %vm793, %v5658, 0.0
        %5742 = vadd.xlane.f32.xlu0 %v5741
        %v5743 = vpop.xlane.xlu0 %5742
        %v5744 = vsel %vm793, %v5660, 0.0
        %5745 = vadd.xlane.f32.xlu0 %v5744
        %v5746 = vpop.xlane.xlu0 %5745
        %v5747 = vsel %vm793, %v5662, 0.0
        %5748 = vadd.xlane.f32.xlu0 %v5747
        %v5749 = vpop.xlane.xlu0 %5748
        %v5750 = vsel %vm793, %v5664, 0.0
        %5751 = vadd.xlane.f32.xlu0 %v5750
        %v5752 = vpop.xlane.xlu0 %5751
        %v5753 = vsel %vm793, %v5666, 0.0
        %5754 = vadd.xlane.f32.xlu0 %v5753
        %v5755 = vpop.xlane.xlu0 %5754
        %v5756 = vsel %vm793, %v5668, 0.0
        %5757 = vadd.xlane.f32.xlu0 %v5756
        %v5758 = vpop.xlane.xlu0 %5757
        %v5759 = vsel %vm793, %v5670, 0.0
        %5760 = vadd.xlane.f32.xlu0 %v5759
        %v5761 = vpop.xlane.xlu0 %5760
        %v5762 = vsel %vm793, %v5672, 0.0
        %5763 = vadd.xlane.f32.xlu0 %v5762
        %v5764 = vpop.xlane.xlu0 %5763
        %v5765 = vsel %vm793, %v5674, 0.0
        %5766 = vadd.xlane.f32.xlu0 %v5765
        %v5767 = vpop.xlane.xlu0 %5766
        %v5768 = vsel %vm793, %v5676, 0.0
        %5769 = vadd.xlane.f32.xlu0 %v5768
        %v5770 = vpop.xlane.xlu0 %5769
        %v5771 = vsel %vm793, %v5678, 0.0
        %5772 = vadd.xlane.f32.xlu0 %v5771
        %v5773 = vpop.xlane.xlu0 %5772
        %v5774 = vsel %vm793, %v5680, 0.0
        %5775 = vadd.xlane.f32.xlu0 %v5774
        %v5776 = vpop.xlane.xlu0 %5775
        %v5777 = vadd.f32 %v5707, %v5710
        %v5778 = vadd.f32 %v5777, %v5713
        %v5779 = vrot.slane %v5778, 4
        %v5780 = vadd.f32 %v5778, %v5779
        %v5781 = vrot.slane %v5780, 2
        %v5782 = vadd.f32 %v5780, %v5781
        %v5783 = vrot.slane %v5782, 1
        %v5784 = vadd.f32 %v5782, %v5783
        %v5785 = vadd.f32 %v5716, %v5719
        %v5786 = vadd.f32 %v5785, %v5722
        %v5787 = vrot.slane %v5786, 4
        %v5788 = vadd.f32 %v5786, %v5787
        %v5789 = vrot.slane %v5788, 2
        %v5790 = vadd.f32 %v5788, %v5789
        %v5791 = vrot.slane %v5790, 1
        %v5792 = vadd.f32 %v5790, %v5791
        %v5793 = vadd.f32 %v5725, %v5728
        %v5794 = vadd.f32 %v5793, %v5731
        %v5795 = vrot.slane %v5794, 4
        %v5796 = vadd.f32 %v5794, %v5795
        %v5797 = vrot.slane %v5796, 2
        %v5798 = vadd.f32 %v5796, %v5797
        %v5799 = vrot.slane %v5798, 1
        %v5800 = vadd.f32 %v5798, %v5799
        %v5801 = vadd.f32 %v5734, %v5737
        %v5802 = vadd.f32 %v5801, %v5740
        %v5803 = vrot.slane %v5802, 4
        %v5804 = vadd.f32 %v5802, %v5803
        %v5805 = vrot.slane %v5804, 2
        %v5806 = vadd.f32 %v5804, %v5805
        %v5807 = vrot.slane %v5806, 1
        %v5808 = vadd.f32 %v5806, %v5807
        %v5809 = vadd.f32 %v5743, %v5746
        %v5810 = vadd.f32 %v5809, %v5749
        %v5811 = vrot.slane %v5810, 4
        %v5812 = vadd.f32 %v5810, %v5811
        %v5813 = vrot.slane %v5812, 2
        %v5814 = vadd.f32 %v5812, %v5813
        %v5815 = vrot.slane %v5814, 1
        %v5816 = vadd.f32 %v5814, %v5815
        %v5817 = vadd.f32 %v5752, %v5755
        %v5818 = vadd.f32 %v5817, %v5758
        %v5819 = vrot.slane %v5818, 4
        %v5820 = vadd.f32 %v5818, %v5819
        %v5821 = vrot.slane %v5820, 2
        %v5822 = vadd.f32 %v5820, %v5821
        %v5823 = vrot.slane %v5822, 1
        %v5824 = vadd.f32 %v5822, %v5823
        %v5825 = vadd.f32 %v5761, %v5764
        %v5826 = vadd.f32 %v5825, %v5767
        %v5827 = vrot.slane %v5826, 4
        %v5828 = vadd.f32 %v5826, %v5827
        %v5829 = vrot.slane %v5828, 2
        %v5830 = vadd.f32 %v5828, %v5829
        %v5831 = vrot.slane %v5830, 1
        %v5832 = vadd.f32 %v5830, %v5831
        %v5833 = vadd.f32 %v5770, %v5773
        %v5834 = vadd.f32 %v5833, %v5776
        %v5835 = vrot.slane %v5834, 4
        %v5836 = vadd.f32 %v5834, %v5835
        %v5837 = vrot.slane %v5836, 2
        %v5838 = vadd.f32 %v5836, %v5837
        %v5839 = vrot.slane %v5838, 1
        %v5840 = vadd.f32 %v5838, %v5839
        %s5841 = scalar_lea.vmem [#allocation7], 24
        %v5842 = vld [vmem:[%s5841] sm:$0xff]
        %v5843 = vld [vmem:[%s5841 + $0x8] sm:$0xff]
        %v5844 = vld [vmem:[%s5841 + $0x10] sm:$0xff]
        %5848 = vrot.lane.b32.xlu0 %v5842, 32
        %v5849 = vpop.permute.xlu0 %5848
        %5850 = vrot.lane.b32.xlu0 %v5843, 32
        %v5851 = vpop.permute.xlu0 %5850
        %5852 = vrot.lane.b32.xlu0 %v5844, 32
        %v5853 = vpop.permute.xlu0 %5852
        %v5857 = vmul.f32 %v5393, %v5849
        %v5858 = vmul.f32 %v5394, %v5851
        %v5859 = vmul.f32 %v5395, %v5853
        %v5860 = vmul.f32 %v5396, %v5849
        %v5861 = vmul.f32 %v5397, %v5851
        %v5862 = vmul.f32 %v5398, %v5853
        %v5863 = vmul.f32 %v5399, %v5849
        %v5864 = vmul.f32 %v5400, %v5851
        %v5865 = vmul.f32 %v5401, %v5853
        %v5866 = vmul.f32 %v5402, %v5849
        %v5867 = vmul.f32 %v5403, %v5851
        %v5868 = vmul.f32 %v5404, %v5853
        %v5869 = vmul.f32 %v5405, %v5849
        %v5870 = vmul.f32 %v5406, %v5851
        %v5871 = vmul.f32 %v5407, %v5853
        %v5872 = vmul.f32 %v5408, %v5849
        %v5873 = vmul.f32 %v5409, %v5851
        %v5874 = vmul.f32 %v5410, %v5853
        %v5875 = vmul.f32 %v5411, %v5849
        %v5876 = vmul.f32 %v5412, %v5851
        %v5877 = vmul.f32 %v5413, %v5853
        %v5878 = vmul.f32 %v5414, %v5849
        %v5879 = vmul.f32 %v5415, %v5851
        %v5880 = vmul.f32 %v5416, %v5853
        %5881 = vrot.lane.b32.xlu0 %v5842, 64
        %v5882 = vpop.permute.xlu0 %5881
        %5883 = vrot.lane.b32.xlu0 %v5843, 64
        %v5884 = vpop.permute.xlu0 %5883
        %5885 = vrot.lane.b32.xlu0 %v5844, 64
        %v5886 = vpop.permute.xlu0 %5885
        %v5890 = vmul.f32 %v1760, %v5882
        %v5891 = vmul.f32 %v1761, %v5884
        %v5892 = vmul.f32 %v1762, %v5886
        %v5893 = vmul.f32 %v1763, %v5882
        %v5894 = vmul.f32 %v1764, %v5884
        %v5895 = vmul.f32 %v1765, %v5886
        %v5896 = vmul.f32 %v1766, %v5882
        %v5897 = vmul.f32 %v1767, %v5884
        %v5898 = vmul.f32 %v1768, %v5886
        %v5899 = vmul.f32 %v1769, %v5882
        %v5900 = vmul.f32 %v1770, %v5884
        %v5901 = vmul.f32 %v1771, %v5886
        %v5902 = vmul.f32 %v1772, %v5882
        %v5903 = vmul.f32 %v1773, %v5884
        %v5904 = vmul.f32 %v1774, %v5886
        %v5905 = vmul.f32 %v1775, %v5882
        %v5906 = vmul.f32 %v1776, %v5884
        %v5907 = vmul.f32 %v1777, %v5886
        %v5908 = vmul.f32 %v1778, %v5882
        %v5909 = vmul.f32 %v1779, %v5884
        %v5910 = vmul.f32 %v1780, %v5886
        %v5911 = vmul.f32 %v1781, %v5882
        %v5912 = vmul.f32 %v1782, %v5884
        %v5913 = vmul.f32 %v1783, %v5886
        %5938 = vrot.lane.b32.xlu0 %v5890, 64
        %v5939 = vpop.permute.xlu0 %5938
        %5940 = vrot.lane.b32.xlu0 %v5891, 64
        %v5941 = vpop.permute.xlu0 %5940
        %5942 = vrot.lane.b32.xlu0 %v5892, 64
        %v5943 = vpop.permute.xlu0 %5942
        %5944 = vrot.lane.b32.xlu0 %v5893, 64
        %v5945 = vpop.permute.xlu0 %5944
        %5946 = vrot.lane.b32.xlu0 %v5894, 64
        %v5947 = vpop.permute.xlu0 %5946
        %5948 = vrot.lane.b32.xlu0 %v5895, 64
        %v5949 = vpop.permute.xlu0 %5948
        %5950 = vrot.lane.b32.xlu0 %v5896, 64
        %v5951 = vpop.permute.xlu0 %5950
        %5952 = vrot.lane.b32.xlu0 %v5897, 64
        %v5953 = vpop.permute.xlu0 %5952
        %5954 = vrot.lane.b32.xlu0 %v5898, 64
        %v5955 = vpop.permute.xlu0 %5954
        %5956 = vrot.lane.b32.xlu0 %v5899, 64
        %v5957 = vpop.permute.xlu0 %5956
        %5958 = vrot.lane.b32.xlu0 %v5900, 64
        %v5959 = vpop.permute.xlu0 %5958
        %5960 = vrot.lane.b32.xlu0 %v5901, 64
        %v5961 = vpop.permute.xlu0 %5960
        %5962 = vrot.lane.b32.xlu0 %v5902, 64
        %v5963 = vpop.permute.xlu0 %5962
        %5964 = vrot.lane.b32.xlu0 %v5903, 64
        %v5965 = vpop.permute.xlu0 %5964
        %5966 = vrot.lane.b32.xlu0 %v5904, 64
        %v5967 = vpop.permute.xlu0 %5966
        %5968 = vrot.lane.b32.xlu0 %v5905, 64
        %v5969 = vpop.permute.xlu0 %5968
        %5970 = vrot.lane.b32.xlu0 %v5906, 64
        %v5971 = vpop.permute.xlu0 %5970
        %5972 = vrot.lane.b32.xlu0 %v5907, 64
        %v5973 = vpop.permute.xlu0 %5972
        %5974 = vrot.lane.b32.xlu0 %v5908, 64
        %v5975 = vpop.permute.xlu0 %5974
        %5976 = vrot.lane.b32.xlu0 %v5909, 64
        %v5977 = vpop.permute.xlu0 %5976
        %5978 = vrot.lane.b32.xlu0 %v5910, 64
        %v5979 = vpop.permute.xlu0 %5978
        %5980 = vrot.lane.b32.xlu0 %v5911, 64
        %v5981 = vpop.permute.xlu0 %5980
        %5982 = vrot.lane.b32.xlu0 %v5912, 64
        %v5983 = vpop.permute.xlu0 %5982
        %5984 = vrot.lane.b32.xlu0 %v5913, 64
        %v5985 = vpop.permute.xlu0 %5984
        %v6010 = vadd.f32 %v5857, %v5939
        %v6011 = vadd.f32 %v5858, %v5941
        %v6012 = vadd.f32 %v5859, %v5943
        %v6013 = vadd.f32 %v5860, %v5945
        %v6014 = vadd.f32 %v5861, %v5947
        %v6015 = vadd.f32 %v5862, %v5949
        %v6016 = vadd.f32 %v5863, %v5951
        %v6017 = vadd.f32 %v5864, %v5953
        %v6018 = vadd.f32 %v5865, %v5955
        %v6019 = vadd.f32 %v5866, %v5957
        %v6020 = vadd.f32 %v5867, %v5959
        %v6021 = vadd.f32 %v5868, %v5961
        %v6022 = vadd.f32 %v5869, %v5963
        %v6023 = vadd.f32 %v5870, %v5965
        %v6024 = vadd.f32 %v5871, %v5967
        %v6025 = vadd.f32 %v5872, %v5969
        %v6026 = vadd.f32 %v5873, %v5971
        %v6027 = vadd.f32 %v5874, %v5973
        %v6028 = vadd.f32 %v5875, %v5975
        %v6029 = vadd.f32 %v5876, %v5977
        %v6030 = vadd.f32 %v5877, %v5979
        %v6031 = vadd.f32 %v5878, %v5981
        %v6032 = vadd.f32 %v5879, %v5983
        %v6033 = vadd.f32 %v5880, %v5985
        %6058 = vrot.lane.b32.xlu0 %v6010, 96
        %v6059 = vpop.permute.xlu0 %6058
        %6060 = vrot.lane.b32.xlu0 %v6011, 96
        %v6061 = vpop.permute.xlu0 %6060
        %6062 = vrot.lane.b32.xlu0 %v6012, 96
        %v6063 = vpop.permute.xlu0 %6062
        %6064 = vrot.lane.b32.xlu0 %v6013, 96
        %v6065 = vpop.permute.xlu0 %6064
        %6066 = vrot.lane.b32.xlu0 %v6014, 96
        %v6067 = vpop.permute.xlu0 %6066
        %6068 = vrot.lane.b32.xlu0 %v6015, 96
        %v6069 = vpop.permute.xlu0 %6068
        %6070 = vrot.lane.b32.xlu0 %v6016, 96
        %v6071 = vpop.permute.xlu0 %6070
        %6072 = vrot.lane.b32.xlu0 %v6017, 96
        %v6073 = vpop.permute.xlu0 %6072
        %6074 = vrot.lane.b32.xlu0 %v6018, 96
        %v6075 = vpop.permute.xlu0 %6074
        %6076 = vrot.lane.b32.xlu0 %v6019, 96
        %v6077 = vpop.permute.xlu0 %6076
        %6078 = vrot.lane.b32.xlu0 %v6020, 96
        %v6079 = vpop.permute.xlu0 %6078
        %6080 = vrot.lane.b32.xlu0 %v6021, 96
        %v6081 = vpop.permute.xlu0 %6080
        %6082 = vrot.lane.b32.xlu0 %v6022, 96
        %v6083 = vpop.permute.xlu0 %6082
        %6084 = vrot.lane.b32.xlu0 %v6023, 96
        %v6085 = vpop.permute.xlu0 %6084
        %6086 = vrot.lane.b32.xlu0 %v6024, 96
        %v6087 = vpop.permute.xlu0 %6086
        %6088 = vrot.lane.b32.xlu0 %v6025, 96
        %v6089 = vpop.permute.xlu0 %6088
        %6090 = vrot.lane.b32.xlu0 %v6026, 96
        %v6091 = vpop.permute.xlu0 %6090
        %6092 = vrot.lane.b32.xlu0 %v6027, 96
        %v6093 = vpop.permute.xlu0 %6092
        %6094 = vrot.lane.b32.xlu0 %v6028, 96
        %v6095 = vpop.permute.xlu0 %6094
        %6096 = vrot.lane.b32.xlu0 %v6029, 96
        %v6097 = vpop.permute.xlu0 %6096
        %6098 = vrot.lane.b32.xlu0 %v6030, 96
        %v6099 = vpop.permute.xlu0 %6098
        %6100 = vrot.lane.b32.xlu0 %v6031, 96
        %v6101 = vpop.permute.xlu0 %6100
        %6102 = vrot.lane.b32.xlu0 %v6032, 96
        %v6103 = vpop.permute.xlu0 %6102
        %6104 = vrot.lane.b32.xlu0 %v6033, 96
        %v6105 = vpop.permute.xlu0 %6104
        %v6130 = vsel %vm793, %v6059, 0.0
        %6131 = vadd.xlane.f32.xlu0 %v6130
        %v6132 = vpop.xlane.xlu0 %6131
        %v6133 = vsel %vm793, %v6061, 0.0
        %6134 = vadd.xlane.f32.xlu0 %v6133
        %v6135 = vpop.xlane.xlu0 %6134
        %v6136 = vsel %vm793, %v6063, 0.0
        %6137 = vadd.xlane.f32.xlu0 %v6136
        %v6138 = vpop.xlane.xlu0 %6137
        %v6139 = vsel %vm793, %v6065, 0.0
        %6140 = vadd.xlane.f32.xlu0 %v6139
        %v6141 = vpop.xlane.xlu0 %6140
        %v6142 = vsel %vm793, %v6067, 0.0
        %6143 = vadd.xlane.f32.xlu0 %v6142
        %v6144 = vpop.xlane.xlu0 %6143
        %v6145 = vsel %vm793, %v6069, 0.0
        %6146 = vadd.xlane.f32.xlu0 %v6145
        %v6147 = vpop.xlane.xlu0 %6146
        %v6148 = vsel %vm793, %v6071, 0.0
        %6149 = vadd.xlane.f32.xlu0 %v6148
        %v6150 = vpop.xlane.xlu0 %6149
        %v6151 = vsel %vm793, %v6073, 0.0
        %6152 = vadd.xlane.f32.xlu0 %v6151
        %v6153 = vpop.xlane.xlu0 %6152
        %v6154 = vsel %vm793, %v6075, 0.0
        %6155 = vadd.xlane.f32.xlu0 %v6154
        %v6156 = vpop.xlane.xlu0 %6155
        %v6157 = vsel %vm793, %v6077, 0.0
        %6158 = vadd.xlane.f32.xlu0 %v6157
        %v6159 = vpop.xlane.xlu0 %6158
        %v6160 = vsel %vm793, %v6079, 0.0
        %6161 = vadd.xlane.f32.xlu0 %v6160
        %v6162 = vpop.xlane.xlu0 %6161
        %v6163 = vsel %vm793, %v6081, 0.0
        %6164 = vadd.xlane.f32.xlu0 %v6163
        %v6165 = vpop.xlane.xlu0 %6164
        %v6166 = vsel %vm793, %v6083, 0.0
        %6167 = vadd.xlane.f32.xlu0 %v6166
        %v6168 = vpop.xlane.xlu0 %6167
        %v6169 = vsel %vm793, %v6085, 0.0
        %6170 = vadd.xlane.f32.xlu0 %v6169
        %v6171 = vpop.xlane.xlu0 %6170
        %v6172 = vsel %vm793, %v6087, 0.0
        %6173 = vadd.xlane.f32.xlu0 %v6172
        %v6174 = vpop.xlane.xlu0 %6173
        %v6175 = vsel %vm793, %v6089, 0.0
        %6176 = vadd.xlane.f32.xlu0 %v6175
        %v6177 = vpop.xlane.xlu0 %6176
        %v6178 = vsel %vm793, %v6091, 0.0
        %6179 = vadd.xlane.f32.xlu0 %v6178
        %v6180 = vpop.xlane.xlu0 %6179
        %v6181 = vsel %vm793, %v6093, 0.0
        %6182 = vadd.xlane.f32.xlu0 %v6181
        %v6183 = vpop.xlane.xlu0 %6182
        %v6184 = vsel %vm793, %v6095, 0.0
        %6185 = vadd.xlane.f32.xlu0 %v6184
        %v6186 = vpop.xlane.xlu0 %6185
        %v6187 = vsel %vm793, %v6097, 0.0
        %6188 = vadd.xlane.f32.xlu0 %v6187
        %v6189 = vpop.xlane.xlu0 %6188
        %v6190 = vsel %vm793, %v6099, 0.0
        %6191 = vadd.xlane.f32.xlu0 %v6190
        %v6192 = vpop.xlane.xlu0 %6191
        %v6193 = vsel %vm793, %v6101, 0.0
        %6194 = vadd.xlane.f32.xlu0 %v6193
        %v6195 = vpop.xlane.xlu0 %6194
        %v6196 = vsel %vm793, %v6103, 0.0
        %6197 = vadd.xlane.f32.xlu0 %v6196
        %v6198 = vpop.xlane.xlu0 %6197
        %v6199 = vsel %vm793, %v6105, 0.0
        %6200 = vadd.xlane.f32.xlu0 %v6199
        %v6201 = vpop.xlane.xlu0 %6200
        %v6202 = vadd.f32 %v6132, %v6135
        %v6203 = vadd.f32 %v6202, %v6138
        %v6204 = vrot.slane %v6203, 4
        %v6205 = vadd.f32 %v6203, %v6204
        %v6206 = vrot.slane %v6205, 2
        %v6207 = vadd.f32 %v6205, %v6206
        %v6208 = vrot.slane %v6207, 1
        %v6209 = vadd.f32 %v6207, %v6208
        %v6210 = vadd.f32 %v6141, %v6144
        %v6211 = vadd.f32 %v6210, %v6147
        %v6212 = vrot.slane %v6211, 4
        %v6213 = vadd.f32 %v6211, %v6212
        %v6214 = vrot.slane %v6213, 2
        %v6215 = vadd.f32 %v6213, %v6214
        %v6216 = vrot.slane %v6215, 1
        %v6217 = vadd.f32 %v6215, %v6216
        %v6218 = vadd.f32 %v6150, %v6153
        %v6219 = vadd.f32 %v6218, %v6156
        %v6220 = vrot.slane %v6219, 4
        %v6221 = vadd.f32 %v6219, %v6220
        %v6222 = vrot.slane %v6221, 2
        %v6223 = vadd.f32 %v6221, %v6222
        %v6224 = vrot.slane %v6223, 1
        %v6225 = vadd.f32 %v6223, %v6224
        %v6226 = vadd.f32 %v6159, %v6162
        %v6227 = vadd.f32 %v6226, %v6165
        %v6228 = vrot.slane %v6227, 4
        %v6229 = vadd.f32 %v6227, %v6228
        %v6230 = vrot.slane %v6229, 2
        %v6231 = vadd.f32 %v6229, %v6230
        %v6232 = vrot.slane %v6231, 1
        %v6233 = vadd.f32 %v6231, %v6232
        %v6234 = vadd.f32 %v6168, %v6171
        %v6235 = vadd.f32 %v6234, %v6174
        %v6236 = vrot.slane %v6235, 4
        %v6237 = vadd.f32 %v6235, %v6236
        %v6238 = vrot.slane %v6237, 2
        %v6239 = vadd.f32 %v6237, %v6238
        %v6240 = vrot.slane %v6239, 1
        %v6241 = vadd.f32 %v6239, %v6240
        %v6242 = vadd.f32 %v6177, %v6180
        %v6243 = vadd.f32 %v6242, %v6183
        %v6244 = vrot.slane %v6243, 4
        %v6245 = vadd.f32 %v6243, %v6244
        %v6246 = vrot.slane %v6245, 2
        %v6247 = vadd.f32 %v6245, %v6246
        %v6248 = vrot.slane %v6247, 1
        %v6249 = vadd.f32 %v6247, %v6248
        %v6250 = vadd.f32 %v6186, %v6189
        %v6251 = vadd.f32 %v6250, %v6192
        %v6252 = vrot.slane %v6251, 4
        %v6253 = vadd.f32 %v6251, %v6252
        %v6254 = vrot.slane %v6253, 2
        %v6255 = vadd.f32 %v6253, %v6254
        %v6256 = vrot.slane %v6255, 1
        %v6257 = vadd.f32 %v6255, %v6256
        %v6258 = vadd.f32 %v6195, %v6198
        %v6259 = vadd.f32 %v6258, %v6201
        %v6260 = vrot.slane %v6259, 4
        %v6261 = vadd.f32 %v6259, %v6260
        %v6262 = vrot.slane %v6261, 2
        %v6263 = vadd.f32 %v6261, %v6262
        %v6264 = vrot.slane %v6263, 1
        %v6265 = vadd.f32 %v6263, %v6264
        %vm6266 = vcmask 7168
        %v6267 = vsel %vm6266, %v5784, %v6209
        %v6268 = vsel %vm6266, %v5792, %v6217
        %v6269 = vsel %vm6266, %v5800, %v6225
        %v6270 = vsel %vm6266, %v5808, %v6233
        %v6271 = vsel %vm6266, %v5816, %v6241
        %v6272 = vsel %vm6266, %v5824, %v6249
        %v6273 = vsel %vm6266, %v5832, %v6257
        %v6274 = vsel %vm6266, %v5840, %v6265
        %v6275 = vld [vmem:[%s7] sm:$0x1]
        %v6276 = vmul.f32 %v6267, %v6275
        %v6277 = vmul.f32 %v6268, %v6275
        %v6278 = vmul.f32 %v6269, %v6275
        %v6279 = vmul.f32 %v6270, %v6275
        %v6280 = vmul.f32 %v6271, %v6275
        %v6281 = vmul.f32 %v6272, %v6275
        %v6282 = vmul.f32 %v6273, %v6275
        %v6283 = vmul.f32 %v6274, %v6275
        %v6284 = vld [vmem:[%s7 + $0x1] sm:$0x1]
        %v6285 = vadd.f32 %v6276, %v6284
        %v6286 = vadd.f32 %v6277, %v6284
        %v6287 = vadd.f32 %v6278, %v6284
        %v6288 = vadd.f32 %v6279, %v6284
        %v6289 = vadd.f32 %v6280, %v6284
        %v6290 = vadd.f32 %v6281, %v6284
        %v6291 = vadd.f32 %v6282, %v6284
        %v6292 = vadd.f32 %v6283, %v6284
        %vm6293 = vcmask 8192
        %6294 = vst.msk [vmem:[%s433] sm:$0x1] %vm6293, %v6285
        %6295 = vst.msk [vmem:[%s433 + $0x1] sm:$0x1] %vm6293, %v6286
        %6296 = vst.msk [vmem:[%s433 + $0x2] sm:$0x1] %vm6293, %v6287
        %6297 = vst.msk [vmem:[%s433 + $0x3] sm:$0x1] %vm6293, %v6288
        %6298 = vst.msk [vmem:[%s433 + $0x4] sm:$0x1] %vm6293, %v6289
        %6299 = vst.msk [vmem:[%s433 + $0x5] sm:$0x1] %vm6293, %v6290
        %6300 = vst.msk [vmem:[%s433 + $0x6] sm:$0x1] %vm6293, %v6291
        %6301 = vst.msk [vmem:[%s433 + $0x7] sm:$0x1] %vm6293, %v6292
        %s6302 = smul.u32 8, %s29
        %p6303 = scmp.lt.s32.totalorder %s6302, 15
        %s6304 = scalar_select %p6303, %s6302, 15
        %s6305 = scalar_lea.vmem %s8, %s6304
        %s6306 = smul.u32 8, %s29
        %p6307 = scmp.lt.s32.totalorder %s6306, 15
        %s6308 = scalar_select %p6307, %s6306, 15
        %s6309 = smul.addr %s6308, 3
        %s6310 = smul.addr %s6309, 8
        %s6311 = scalar_lea.vmem %s9, %s6310
        %s6312 = sand.u32 %s262, 1
        %s6313 = scalar_lea.sflag [#allocation4], %s6312
        %s6314 = sand.u32 %s262, 1
        %s6315 = smul.addr %s6314, 192
        %s6316 = scalar_lea.vmem [#allocation8], %s6315
        // Predicated region
        $region65: #{tpu_custom_call.1} parent=51 // pred_check
          %p6317 = pneg %p220
        $region66: #{tpu_custom_call.1} parent=51 // pred_check_branch
          %6319 = sbr.rel (%p6317) target = $region68
        $region67: #{tpu_custom_call.1} parent=51 // pred_region
          %s6320 = smul.u32 8, %s29
        $region68: #{tpu_custom_call.1} parent=51 // pred_fallthru
          _
        // Predicated region
        $region69: #{tpu_custom_call.1} parent=51 // pred_check
          %p6321 = pneg %p246
        $region70: #{tpu_custom_call.1} parent=51 // pred_check_branch
          %6323 = sbr.rel (%p6321) target = $region72
        $region71: #{tpu_custom_call.1} parent=51 // pred_region
          %s6324 = smul.u32 8, %s29
        $region72: #{tpu_custom_call.1} parent=51 // pred_fallthru
          _
        // Predicated region
        $region73: #{tpu_custom_call.1} parent=51 // pred_check
          %p6325 = pneg %p272
        $region74: #{tpu_custom_call.1} parent=51 // pred_check_branch
          %6327 = sbr.rel (%p6325) target = $region76
        $region75: #{tpu_custom_call.1} parent=51 // pred_region
          %s6328 = smul.u32 8, %s29
          %6330 = vsyncadd %s6313, 0
          %s6331 = smul.addr %s6328, 3
          %s6332 = smul.addr %s6331, 8
          %s6333 = scalar_lea.hbm %s10, %s6332
          %s6334 = sshll.u32 %s6316, 4
          %s6335 = int_to_ptr.vmem [resolvable:$true] %s6334
          %s6336 = sshll.u32 %s6333, 4
          %s6337 = int_to_ptr.hbm [resolvable:$true] %s6336
          %6342 = dma.vmem_to_hbm [thread:$0]  %s6335, 3072, %s6337, %s6313, 128, 128, 8
        $region76: #{tpu_custom_call.1} parent=51 // pred_fallthru
          _
      $region52: #{tpu_custom_call.1} parent=5 // pred_fallthru
        _
      %p6343 = scmp.le.s32.totalorder 2, %s24
      // Predicated region
      $region77: #{tpu_custom_call.1} parent=5 // pred_check
        %p6344 = pneg %p6343
      $region78: #{tpu_custom_call.1} parent=5 // pred_check_branch
        %6346 = sbr.rel (%p6344) target = $region80
      $region79: #{tpu_custom_call.1} parent=5 // pred_region
        %s6347 = ssub.s32 %s24, 2
        // Predicated region
        $region81: #{tpu_custom_call.1} parent=79 // pred_check
          %p6348 = pneg %p226
        $region82: #{tpu_custom_call.1} parent=79 // pred_check_branch
          %6350 = sbr.rel (%p6348) target = $region84
        $region83: #{tpu_custom_call.1} parent=79 // pred_region
          %s6351 = smul.u32 8, %s30
          %p6352 = scmp.lt.s32.totalorder %s6351, 15
          %s6353 = scalar_select %p6352, %s6351, 15
          %s6354 = scalar_lea.vmem %s8, %s6353
        $region84: #{tpu_custom_call.1} parent=79 // pred_fallthru
          _
        // Predicated region
        $region85: #{tpu_custom_call.1} parent=79 // pred_check
          %p6355 = pneg %p252
        $region86: #{tpu_custom_call.1} parent=79 // pred_check_branch
          %6357 = sbr.rel (%p6355) target = $region88
        $region87: #{tpu_custom_call.1} parent=79 // pred_region
          %s6358 = smul.u32 8, %s30
          %p6359 = scmp.lt.s32.totalorder %s6358, 15
          %s6360 = scalar_select %p6359, %s6358, 15
          %s6361 = smul.addr %s6360, 3
          %s6362 = smul.addr %s6361, 8
          %s6363 = scalar_lea.vmem %s9, %s6362
        $region88: #{tpu_custom_call.1} parent=79 // pred_fallthru
          _
        // Predicated region
        $region89: #{tpu_custom_call.1} parent=79 // pred_check
          %p6364 = pneg %p278
        $region90: #{tpu_custom_call.1} parent=79 // pred_check_branch
          %6366 = sbr.rel (%p6364) target = $region92
        $region91: #{tpu_custom_call.1} parent=79 // pred_region
          %s6367 = sand.u32 %s263, 1
          %s6368 = scalar_lea.sflag [#allocation4], %s6367
          %s6369 = sand.u32 %s263, 1
          %s6370 = smul.addr %s6369, 192
          %s6371 = scalar_lea.vmem [#allocation8], %s6370
          %6373 = dma.done %s6368, 3072
        $region92: #{tpu_custom_call.1} parent=79 // pred_fallthru
          _
      $region80: #{tpu_custom_call.1} parent=5 // pred_fallthru
        _
    $region6: #{tpu_custom_call.1} parent=1 // loop_footer
      %s28 = sadd.s32 1, %s24
    $region7: #{tpu_custom_call.1} parent=1 // loop_footer_branch
      %23 = sbr.rel target = $region3
    $region8: #{tpu_custom_call.1} parent=1 // loop_exit
      _
    %6374 = vsyncpa [#allocation3], 1
    %s6375 = scalar_lea.sflag [#allocation3], 1
    %6376 = vsyncpa %s6375, 1
    %6377 = vsyncpa [#allocation6], 1
    %6378 = vsyncpa [#allocation4], 1
    %s6379 = scalar_lea.sflag [#allocation4], 1
    %6380 = vsyncpa %s6379, 1

</llo_original>
